<compile_context>
chip_gen: v5e
topology: v5e:2x2
jax: 0.10.0
libtpu: 0.0.40
codegen_flags: <defaults>
</compile_context>

<pallas_src>
import functools

import jax
import jax.numpy as jnp
from jax import lax
from jax.experimental import pallas as pl
from jax.experimental.pallas import tpu as pltpu


# --------------------------------------------------------------------------- #
# Helpers shared by kernel + wrapper
# --------------------------------------------------------------------------- #
def _round_up(v, m):
    return ((v + m - 1) // m) * m


def _staging_geometry(H, W, kmax):
    """Row geometry of the dy-replicated out1 staging buffer."""
    pad = kmax // 2
    HW = H * W
    base = _round_up(pad * W, 8)          # buffer row of image position 0
    rows = _round_up(base + HW + pad * W, 8)
    return pad, HW, base, rows


# --------------------------------------------------------------------------- #
# Fused Pallas kernel: conv1 -> merged/grouped PyConv2d -> conv3 (+residual)
# --------------------------------------------------------------------------- #
def _fused_bottleneck_kernel(x_ref, w1_ref, b1_ref, w2_ref, b2_ref, w3_ref, b3_ref,
                             o_ref, o1y_ref, *, H, W, kmax, hidden):
    pad, HW, base, rows = _staging_geometry(H, W, kmax)
    w2cols = kmax * hidden

    x = x_ref[...]                                                  # (HW, Cin) bf16

    # ---- conv1: 1x1 conv (BN1 scale pre-folded into w1) + bias + ReLU (f32 epilogue)
    out1 = jnp.dot(x, w1_ref[...], preferred_element_type=jnp.float32) + b1_ref[...]
    out1 = jnp.maximum(out1, 0.0)

    # ---- stage out1 replicated per vertical tap dy: lane block dy of buffer row r
    # holds out1[r - base + (dy - pad) * W].  Row offsets are multiples of W, so all
    # kmax stores are sublane-aligned.  Only the small vertical halo bands (rows that
    # can be read but are not rewritten with valid data this step) are re-zeroed.
    zt0 = max(0, ((base - pad) // 8) * 8)
    zt1 = base + pad * W
    zb0 = base + HW - pad * W
    zb1 = min(rows, _round_up(base + HW + pad, 8))
    o1y_ref[zt0:zt1, :] = jnp.zeros((zt1 - zt0, w2cols), jnp.float32)
    o1y_ref[zb0:zb1, :] = jnp.zeros((zb1 - zb0, w2cols), jnp.float32)
    for dy in range(kmax):
        rs = base + (pad - dy) * W                                  # aligned (mult of W)
        o1y_ref[rs:rs + HW, dy * hidden:(dy + 1) * hidden] = out1

    # ---- conv2: merged PyConv pyramid == one kmax x kmax conv, grouped by dx.
    # One (HW, kmax*hidden) slab read per dx gathers all kmax vertical taps at once,
    # so conv2 is kmax MXU matmuls with K = kmax*hidden.  Horizontal validity is a
    # single per-dx column mask generated in-kernel (kills row wrap-around); partial
    # sums stay in registers.
    col = lax.broadcasted_iota(jnp.int32, (HW, w2cols), 0) % W      # output column
    acc = jnp.zeros((HW, hidden), jnp.float32)
    for dx in range(kmax):
        r0 = base + dx - pad
        slab = o1y_ref[r0:r0 + HW, :]                               # (HW, kmax*hidden) f32
        if dx < pad:                       # left taps invalid near the left edge
            slab = jnp.where(col >= (pad - dx), slab, 0.0)
        elif dx > pad:                     # right taps invalid near the right edge
            slab = jnp.where(col < (W - (dx - pad)), slab, 0.0)
        acc = acc + jnp.dot(slab.astype(jnp.bfloat16), w2_ref[dx],
                            preferred_element_type=jnp.float32)
    out2 = jnp.maximum(acc + b2_ref[...], 0.0).astype(jnp.bfloat16)

    # ---- conv3: 1x1 conv (BN3 scale folded) + bias + identity residual + ReLU
    out3 = (jnp.dot(out2, w3_ref[...], preferred_element_type=jnp.float32)
            + b3_ref[...] + x.astype(jnp.float32))
    o_ref[...] = jnp.maximum(out3, 0.0).astype(o_ref.dtype)


def py_bottleneck_block_2d(x_nchw, params):
    """Fused forward pass of PyBottleneckBlock2D (stride=1, identity residual)."""
    N, Cin, H, W = x_nchw.shape
    hidden = params["w1"].shape[1]
    Cout = params["w3"].shape[1]
    kmax = int(params["kmax"])
    assert Cout == Cin, "identity residual path only"
    # TODO(synk): DownSample2d path (stride != 1 or in_channels != out_channels) and
    # grouped PyConv levels (groups > 1) are not implemented.

    pad, HW, base, rows = _staging_geometry(H, W, kmax)
    M = N * HW
    taps = kmax * kmax
    w2cols = kmax * hidden

    x_nhwc = jnp.transpose(x_nchw, (0, 2, 3, 1))
    xf = x_nhwc.reshape(M, Cin).astype(jnp.bfloat16)

    # Regroup the merged (tap=dy*kmax+dx, cin, cout) conv2 weight by dx so the kernel
    # can contract all dy taps of one dx in a single K = kmax*hidden matmul:
    # w2g[dx, dy*hidden + ci, co] = w2[dy*kmax + dx, ci, co].  (Layout plumbing only.)
    w2g = (params["w2"].reshape(kmax, kmax, hidden, hidden)
           .transpose(1, 0, 2, 3).reshape(kmax, w2cols, hidden))

    flops = 2 * M * (Cin * hidden + taps * hidden * hidden + hidden * Cout)
    bytes_accessed = int(M * Cin * 2 + M * Cout * 2
                         + taps * hidden * hidden * 2
                         + Cin * hidden * 2 + hidden * Cout * 2
                         + (2 * hidden + Cout) * 4)

    kernel = functools.partial(_fused_bottleneck_kernel, H=H, W=W, kmax=kmax,
                               hidden=hidden)
    out = pl.pallas_call(
        kernel,
        out_shape=jax.ShapeDtypeStruct((M, Cout), jnp.bfloat16),
        grid_spec=pltpu.PrefetchScalarGridSpec(
            num_scalar_prefetch=0,
            grid=(N,),                                              # one image per step
            in_specs=[
                pl.BlockSpec((HW, Cin), lambda b: (b, 0)),          # x / residual
                pl.BlockSpec((Cin, hidden), lambda b: (0, 0)),      # w1 (BN1 folded)
                pl.BlockSpec((1, hidden), lambda b: (0, 0)),        # b1
                pl.BlockSpec((kmax, w2cols, hidden), lambda b: (0, 0, 0)),  # w2 by dx
                pl.BlockSpec((1, hidden), lambda b: (0, 0)),        # b2
                pl.BlockSpec((hidden, Cout), lambda b: (0, 0)),     # w3 (BN3 folded)
                pl.BlockSpec((1, Cout), lambda b: (0, 0)),          # b3
            ],
            out_specs=pl.BlockSpec((HW, Cout), lambda b: (b, 0)),
            scratch_shapes=[
                pltpu.VMEM((rows, w2cols), jnp.float32),            # dy-replicated out1
            ]),
        compiler_params=pltpu.CompilerParams(
            dimension_semantics=("parallel",),        # megacore / v7x 2-TC sharding
            vmem_limit_bytes=48 * 1024 * 1024),       # stays within v7x 64 MiB VMEM
        cost_estimate=pl.CostEstimate(flops=flops, transcendentals=0,
                                      bytes_accessed=bytes_accessed),
    )(xf, params["w1"], params["b1"], w2g, params["b2"],
      params["w3"], params["b3"])

    out = out.astype(jnp.float32)
    return jnp.transpose(out.reshape(N, H, W, Cout), (0, 3, 1, 2))


# --------------------------------------------------------------------------- #
# Parameter prep: BN folding + pyramid-level merging (done once, outside kernel)
# --------------------------------------------------------------------------- #
def fold_bn(gamma, beta, mean, var, eps=1e-5):
    s = gamma / jnp.sqrt(var + eps)
    b = beta - mean * s
    return s, b


def init_params(key, in_channels, hidden_channels, pyramid_level, kernel_sizes,
                expansion=1):
    if pyramid_level == 3:
        pyr_out = [hidden_channels // 4, hidden_channels // 4, hidden_channels // 2]
    else:
        pyr_out = [hidden_channels // pyramid_level] * pyramid_level
    assert sum(pyr_out) == hidden_channels
    out_channels = int(hidden_channels * expansion)
    kmax = max(kernel_sizes)
    taps = kmax * kmax

    keys = jax.random.split(key, 6 + pyramid_level)
    k_w1, k_bn1, k_bn2, k_w3, k_bn3 = keys[:5]
    level_keys = keys[6:]

    def bn_init(k, c):
        k1, k2, k3, k4 = jax.random.split(k, 4)
        gamma = jax.random.uniform(k1, (c,), minval=0.8, maxval=1.2)
        beta = jax.random.uniform(k2, (c,), minval=-0.1, maxval=0.1)
        mean = jax.random.uniform(k3, (c,), minval=-0.1, maxval=0.1)
        var = jax.random.uniform(k4, (c,), minval=0.5, maxval=1.5)
        return fold_bn(gamma, beta, mean, var)

    params = {"kmax": kmax, "out_channels": out_channels}

    # conv1: torch weight (hidden, Cin, 1, 1) -> (Cin, hidden); BN1 scale folded in.
    w1 = jax.random.normal(k_w1, (hidden_channels, in_channels, 1, 1)) * 0.1
    s1, b1 = bn_init(k_bn1, hidden_channels)
    params["w1"] = (jnp.transpose(w1[:, :, 0, 0], (1, 0)) * s1[None, :]).astype(jnp.bfloat16)
    params["b1"] = b1.reshape(1, hidden_channels).astype(jnp.float32)

    # conv2 (PyConv2d, groups=1): merge all pyramid levels into ONE kmax x kmax weight
    # by zero-padding smaller kernels at centered (ky, kx) offsets; layout is
    # (tap=dy*kmax+dx, cin, cout_concat).  BN2 scale folded per output channel.
    s2, b2 = bn_init(k_bn2, hidden_channels)
    blocks = []
    for cl, k, kl in zip(pyr_out, kernel_sizes, level_keys):
        wl = jax.random.normal(kl, (cl, hidden_channels, k, k)) * 0.05   # torch layout
        wl_t = jnp.transpose(wl, (2, 3, 1, 0))                           # (k, k, cin, cl)
        off = (kmax - k) // 2
        blocks.append(jnp.pad(wl_t, ((off, off), (off, off), (0, 0), (0, 0))))
    w2 = jnp.concatenate(blocks, axis=-1).reshape(taps, hidden_channels, hidden_channels)
    params["w2"] = (w2 * s2[None, None, :]).astype(jnp.bfloat16)
    params["b2"] = b2.reshape(1, hidden_channels).astype(jnp.float32)

    # conv3: torch weight (out, hidden, 1, 1) -> (hidden, out); BN3 scale folded in.
    w3 = jax.random.normal(k_w3, (out_channels, hidden_channels, 1, 1)) * 0.1
    s3, b3 = bn_init(k_bn3, out_channels)
    params["w3"] = (jnp.transpose(w3[:, :, 0, 0], (1, 0)) * s3[None, :]).astype(jnp.bfloat16)
    params["b3"] = b3.reshape(1, out_channels).astype(jnp.float32)
    return params


# --------------------------------------------------------------------------- #
# Pure-JAX reference (same math, standard im2col, no Pallas) for a sanity check
# --------------------------------------------------------------------------- #
def im2col(x_nhwc, k):
    N, H, W, C = x_nhwc.shape
    pad = (k - 1) // 2
    xp = jnp.pad(x_nhwc, ((0, 0), (pad, pad), (pad, pad), (0, 0)))
    cols = []
    for dy in range(k):
        for dx in range(k):
            cols.append(xp[:, dy:dy + H, dx:dx + W, :])
    return jnp.concatenate(cols, axis=-1)


def reference_forward(x_nchw, params):
    N, Cin, H, W = x_nchw.shape
    kmax = int(params["kmax"])
    hidden = params["w1"].shape[1]
    x = jnp.transpose(x_nchw, (0, 2, 3, 1))
    xf = x.reshape(N * H * W, Cin).astype(jnp.bfloat16).astype(jnp.float32)
    w1 = params["w1"].astype(jnp.float32)
    w2 = params["w2"].astype(jnp.float32).reshape(kmax * kmax * hidden, hidden)
    w3 = params["w3"].astype(jnp.float32)

    out1 = jnp.maximum(xf @ w1 + params["b1"], 0.0)
    out1 = out1.astype(jnp.bfloat16).astype(jnp.float32)     # mirror kernel's bf16 operand
    patches = im2col(out1.reshape(N, H, W, hidden), kmax).reshape(
        N * H * W, kmax * kmax * hidden)
    out2 = jnp.maximum(patches @ w2 + params["b2"], 0.0)
    out2 = out2.astype(jnp.bfloat16).astype(jnp.float32)
    out3 = jnp.maximum(out2 @ w3 + params["b3"] + xf, 0.0)
    out3 = out3.astype(jnp.bfloat16).astype(jnp.float32)     # mirror kernel's bf16 output
    return jnp.transpose(out3.reshape(N, H, W, -1), (0, 3, 1, 2))


if __name__ == "__main__":
    key = jax.random.PRNGKey(0)
    k_x, k_p = jax.random.split(key)

    # Small shapes consistent with the module: batch=2, C=8, 16x16 spatial,
    # hidden=8, pyramid_level=3 -> per-level out channels [2, 2, 4],
    # kernel sizes [3, 5, 7], stride=1, expansion=1 (identity residual).
    batch, in_channels, H, W = 2, 8, 16, 16
    hidden_channels, pyramid_level = 8, 3
    kernel_sizes = [3, 5, 7]

    x = jax.random.normal(k_x, (batch, in_channels, H, W), dtype=jnp.float32)
    params = init_params(k_p, in_channels, hidden_channels, pyramid_level,
                         kernel_sizes, expansion=1)

    out = jax.block_until_ready(py_bottleneck_block_2d(x, params))
    ref = jax.block_until_ready(reference_forward(x, params))

    assert out.shape == (batch, in_channels, H, W)
    assert jnp.allclose(out, ref, rtol=1e-2, atol=1e-2), \
        float(jnp.max(jnp.abs(out - ref)))

    print("KERNEL_OK")
</pallas_src>

<mosaic_0001>
module attributes {stable_mosaic.version = 11 : i64} {
  func.func @_fused_bottleneck_kernel(%arg0: i32, %arg1: memref<256x8xbf16, #tpu.memory_space<vmem>>, %arg2: memref<8x8xbf16, #tpu.memory_space<vmem>>, %arg3: memref<1x8xf32, #tpu.memory_space<vmem>>, %arg4: memref<7x56x8xbf16, #tpu.memory_space<vmem>>, %arg5: memref<1x8xf32, #tpu.memory_space<vmem>>, %arg6: memref<8x8xbf16, #tpu.memory_space<vmem>>, %arg7: memref<1x8xf32, #tpu.memory_space<vmem>>, %arg8: memref<256x8xbf16, #tpu.memory_space<vmem>>, %arg9: memref<352x56xf32, #tpu.memory_space<vmem>>) attributes {dimension_semantics = [#tpu.dimension_semantics<parallel>], iteration_bounds = array<i64: 2>, scalar_prefetch = 0 : i64, scratch_operands = 1 : i64, tpu.core_type = #tpu.core_type<tc>, window_params = [{transform_indices = @transform_0, window_bounds = array<i64: 256, 8>}, {pipeline_mode = #tpu.pipeline_mode<synchronous>, transform_indices = @transform_1, window_bounds = array<i64: 8, 8>}, {pipeline_mode = #tpu.pipeline_mode<synchronous>, transform_indices = @transform_2, window_bounds = array<i64: 1, 8>}, {pipeline_mode = #tpu.pipeline_mode<synchronous>, transform_indices = @transform_3, window_bounds = array<i64: 7, 56, 8>}, {pipeline_mode = #tpu.pipeline_mode<synchronous>, transform_indices = @transform_4, window_bounds = array<i64: 1, 8>}, {pipeline_mode = #tpu.pipeline_mode<synchronous>, transform_indices = @transform_5, window_bounds = array<i64: 8, 8>}, {pipeline_mode = #tpu.pipeline_mode<synchronous>, transform_indices = @transform_6, window_bounds = array<i64: 1, 8>}, {transform_indices = @transform_7, window_bounds = array<i64: 256, 8>}]} {
    %c0 = arith.constant 0 : index
    %c0_0 = arith.constant 0 : index
    %0 = vector.load %arg1[%c0, %c0_0] : memref<256x8xbf16, #tpu.memory_space<vmem>>, vector<256x8xbf16>
    %c0_1 = arith.constant 0 : index
    %c0_2 = arith.constant 0 : index
    %1 = vector.load %arg2[%c0_1, %c0_2] : memref<8x8xbf16, #tpu.memory_space<vmem>>, vector<8x8xbf16>
    %cst = arith.constant dense<0.000000e+00> : vector<256x8xf32>
    %2 = tpu.matmul %0, %1, %cst {dimension_numbers = #tpu.dot_dimension_numbers<[1], [0], [0], [1], [0, 0, 1, 1], [], []>} : vector<256x8xbf16>, vector<8x8xbf16>, vector<256x8xf32> -> vector<256x8xf32>
    %c0_3 = arith.constant 0 : index
    %c0_4 = arith.constant 0 : index
    %3 = vector.load %arg3[%c0_3, %c0_4] : memref<1x8xf32, #tpu.memory_space<vmem>>, vector<1x8xf32>
    %4 = vector.broadcast %3 : vector<1x8xf32> to vector<256x8xf32>
    %5 = arith.addf %2, %4 : vector<256x8xf32>
    %cst_5 = arith.constant 0.000000e+00 : f32
    %6 = vector.broadcast %cst_5 : f32 to vector<256x8xf32>
    %7 = arith.maximumf %5, %6 : vector<256x8xf32>
    %cst_6 = arith.constant 0.000000e+00 : f32
    %8 = vector.broadcast %cst_6 : f32 to vector<56x56xf32>
    %c40 = arith.constant 40 : index
    %c0_7 = arith.constant 0 : index
    %9 = vector.load %arg9[%c40, %c0_7] : memref<352x56xf32, #tpu.memory_space<vmem>>, vector<56x56xf32>
    tpu.vector_store %arg9[%c40, %c0_7], %8 {strides = array<i32>} : memref<352x56xf32, #tpu.memory_space<vmem>>, vector<56x56xf32>,
    %cst_8 = arith.constant 0.000000e+00 : f32
    %10 = vector.broadcast %cst_8 : f32 to vector<56x56xf32>
    %c256 = arith.constant 256 : index
    %c0_9 = arith.constant 0 : index
    %11 = vector.load %arg9[%c256, %c0_9] : memref<352x56xf32, #tpu.memory_space<vmem>>, vector<56x56xf32>
    tpu.vector_store %arg9[%c256, %c0_9], %10 {strides = array<i32>} : memref<352x56xf32, #tpu.memory_space<vmem>>, vector<56x56xf32>,
    %c96 = arith.constant 96 : index
    %c0_10 = arith.constant 0 : index
    %12 = vector.load %arg9[%c96, %c0_10] : memref<352x56xf32, #tpu.memory_space<vmem>>, vector<256x8xf32>
    tpu.vector_store %arg9[%c96, %c0_10], %7 {strides = array<i32>} : memref<352x56xf32, #tpu.memory_space<vmem>>, vector<256x8xf32>,
    %c80 = arith.constant 80 : index
    %c8 = arith.constant 8 : index
    %13 = vector.load %arg9[%c80, %c8] : memref<352x56xf32, #tpu.memory_space<vmem>>, vector<256x8xf32>
    tpu.vector_store %arg9[%c80, %c8], %7 {strides = array<i32>} : memref<352x56xf32, #tpu.memory_space<vmem>>, vector<256x8xf32>,
    %c64 = arith.constant 64 : index
    %c16 = arith.constant 16 : index
    %14 = vector.load %arg9[%c64, %c16] : memref<352x56xf32, #tpu.memory_space<vmem>>, vector<256x8xf32>
    tpu.vector_store %arg9[%c64, %c16], %7 {strides = array<i32>} : memref<352x56xf32, #tpu.memory_space<vmem>>, vector<256x8xf32>,
    %c48 = arith.constant 48 : index
    %c24 = arith.constant 24 : index
    %15 = vector.load %arg9[%c48, %c24] : memref<352x56xf32, #tpu.memory_space<vmem>>, vector<256x8xf32>
    tpu.vector_store %arg9[%c48, %c24], %7 {strides = array<i32>} : memref<352x56xf32, #tpu.memory_space<vmem>>, vector<256x8xf32>,
    %c32 = arith.constant 32 : index
    %c32_11 = arith.constant 32 : index
    %16 = vector.load %arg9[%c32, %c32_11] : memref<352x56xf32, #tpu.memory_space<vmem>>, vector<256x8xf32>
    tpu.vector_store %arg9[%c32, %c32_11], %7 {strides = array<i32>} : memref<352x56xf32, #tpu.memory_space<vmem>>, vector<256x8xf32>,
    %c16_12 = arith.constant 16 : index
    %c40_13 = arith.constant 40 : index
    %17 = vector.load %arg9[%c16_12, %c40_13] : memref<352x56xf32, #tpu.memory_space<vmem>>, vector<256x8xf32>
    tpu.vector_store %arg9[%c16_12, %c40_13], %7 {strides = array<i32>} : memref<352x56xf32, #tpu.memory_space<vmem>>, vector<256x8xf32>,
    %c0_14 = arith.constant 0 : index
    %c48_15 = arith.constant 48 : index
    %18 = vector.load %arg9[%c0_14, %c48_15] : memref<352x56xf32, #tpu.memory_space<vmem>>, vector<256x8xf32>
    tpu.vector_store %arg9[%c0_14, %c48_15], %7 {strides = array<i32>} : memref<352x56xf32, #tpu.memory_space<vmem>>, vector<256x8xf32>,
    %19 = tpu.iota {dimensions = array<i32: 0>} : vector<256x56xi32>
    %c16_i32 = arith.constant 16 : i32
    %c0_i32 = arith.constant 0 : i32
    %20 = arith.cmpi eq, %c16_i32, %c0_i32 : i32
    %c1_i32 = arith.constant 1 : i32
    %21 = arith.select %20, %c1_i32, %c16_i32 : i32
    %22 = vector.broadcast %21 : i32 to vector<256x56xi32>
    %23 = arith.remsi %19, %22 : vector<256x56xi32>
    %c0_i32_16 = arith.constant 0 : i32
    %24 = vector.broadcast %c0_i32_16 : i32 to vector<256x56xi32>
    %25 = arith.cmpi ne, %23, %24 : vector<256x56xi32>
    %c0_i32_17 = arith.constant 0 : i32
    %26 = vector.broadcast %c0_i32_17 : i32 to vector<256x56xi32>
    %27 = arith.cmpi slt, %23, %26 : vector<256x56xi32>
    %c0_i32_18 = arith.constant 0 : i32
    %28 = arith.cmpi slt, %21, %c0_i32_18 : i32
    %29 = vector.broadcast %28 : i1 to vector<256x56xi1>
    %30 = vector.broadcast %29 : vector<256x56xi1> to vector<256x56xi1>
    %31 = arith.xori %27, %30 : vector<256x56xi1>
    %32 = arith.andi %31, %25 : vector<256x56xi1>
    %33 = vector.broadcast %21 : i32 to vector<256x56xi32>
    %34 = arith.addi %23, %33 : vector<256x56xi32>
    %35 = arith.select %32, %34, %23 : vector<256x56xi1>, vector<256x56xi32>
    %cst_19 = arith.constant 0.000000e+00 : f32
    %36 = vector.broadcast %cst_19 : f32 to vector<256x8xf32>
    %c45 = arith.constant 45 : index
    %c0_20 = arith.constant 0 : index
    %37 = vector.load %arg9[%c45, %c0_20] : memref<352x56xf32, #tpu.memory_space<vmem>>, vector<256x56xf32>
    %c3_i32 = arith.constant 3 : i32
    %38 = vector.broadcast %c3_i32 : i32 to vector<256x56xi32>
    %39 = arith.cmpi sge, %35, %38 : vector<256x56xi32>
    %cst_21 = arith.constant 0.000000e+00 : f32
    %40 = vector.broadcast %cst_21 : f32 to vector<256x56xf32>
    %41 = arith.select %39, %37, %40 : vector<256x56xi1>, vector<256x56xf32>
    %42 = arith.truncf %41 : vector<256x56xf32> to vector<256x56xbf16>
    %c0_22 = arith.constant 0 : index
    %c0_23 = arith.constant 0 : index
    %c0_24 = arith.constant 0 : index
    %43 = vector.load %arg4[%c0_22, %c0_23, %c0_24] : memref<7x56x8xbf16, #tpu.memory_space<vmem>>, vector<1x56x8xbf16>
    %44 = vector.shape_cast %43 : vector<1x56x8xbf16> to vector<56x8xbf16>
    %cst_25 = arith.constant dense<0.000000e+00> : vector<256x8xf32>
    %45 = tpu.matmul %42, %44, %cst_25 {dimension_numbers = #tpu.dot_dimension_numbers<[1], [0], [0], [1], [0, 0, 1, 1], [], []>} : vector<256x56xbf16>, vector<56x8xbf16>, vector<256x8xf32> -> vector<256x8xf32>
    %46 = arith.addf %36, %45 : vector<256x8xf32>
    %c46 = arith.constant 46 : index
    %c0_26 = arith.constant 0 : index
    %47 = vector.load %arg9[%c46, %c0_26] : memref<352x56xf32, #tpu.memory_space<vmem>>, vector<256x56xf32>
    %c2_i32 = arith.constant 2 : i32
    %48 = vector.broadcast %c2_i32 : i32 to vector<256x56xi32>
    %49 = arith.cmpi sge, %35, %48 : vector<256x56xi32>
    %cst_27 = arith.constant 0.000000e+00 : f32
    %50 = vector.broadcast %cst_27 : f32 to vector<256x56xf32>
    %51 = arith.select %49, %47, %50 : vector<256x56xi1>, vector<256x56xf32>
    %52 = arith.truncf %51 : vector<256x56xf32> to vector<256x56xbf16>
    %c1 = arith.constant 1 : index
    %c0_28 = arith.constant 0 : index
    %c0_29 = arith.constant 0 : index
    %53 = vector.load %arg4[%c1, %c0_28, %c0_29] : memref<7x56x8xbf16, #tpu.memory_space<vmem>>, vector<1x56x8xbf16>
    %54 = vector.shape_cast %53 : vector<1x56x8xbf16> to vector<56x8xbf16>
    %cst_30 = arith.constant dense<0.000000e+00> : vector<256x8xf32>
    %55 = tpu.matmul %52, %54, %cst_30 {dimension_numbers = #tpu.dot_dimension_numbers<[1], [0], [0], [1], [0, 0, 1, 1], [], []>} : vector<256x56xbf16>, vector<56x8xbf16>, vector<256x8xf32> -> vector<256x8xf32>
    %56 = arith.addf %46, %55 : vector<256x8xf32>
    %c47 = arith.constant 47 : index
    %c0_31 = arith.constant 0 : index
    %57 = vector.load %arg9[%c47, %c0_31] : memref<352x56xf32, #tpu.memory_space<vmem>>, vector<256x56xf32>
    %c1_i32_32 = arith.constant 1 : i32
    %58 = vector.broadcast %c1_i32_32 : i32 to vector<256x56xi32>
    %59 = arith.cmpi sge, %35, %58 : vector<256x56xi32>
    %cst_33 = arith.constant 0.000000e+00 : f32
    %60 = vector.broadcast %cst_33 : f32 to vector<256x56xf32>
    %61 = arith.select %59, %57, %60 : vector<256x56xi1>, vector<256x56xf32>
    %62 = arith.truncf %61 : vector<256x56xf32> to vector<256x56xbf16>
    %c2 = arith.constant 2 : index
    %c0_34 = arith.constant 0 : index
    %c0_35 = arith.constant 0 : index
    %63 = vector.load %arg4[%c2, %c0_34, %c0_35] : memref<7x56x8xbf16, #tpu.memory_space<vmem>>, vector<1x56x8xbf16>
    %64 = vector.shape_cast %63 : vector<1x56x8xbf16> to vector<56x8xbf16>
    %cst_36 = arith.constant dense<0.000000e+00> : vector<256x8xf32>
    %65 = tpu.matmul %62, %64, %cst_36 {dimension_numbers = #tpu.dot_dimension_numbers<[1], [0], [0], [1], [0, 0, 1, 1], [], []>} : vector<256x56xbf16>, vector<56x8xbf16>, vector<256x8xf32> -> vector<256x8xf32>
    %66 = arith.addf %56, %65 : vector<256x8xf32>
    %c48_37 = arith.constant 48 : index
    %c0_38 = arith.constant 0 : index
    %67 = vector.load %arg9[%c48_37, %c0_38] : memref<352x56xf32, #tpu.memory_space<vmem>>, vector<256x56xf32>
    %68 = arith.truncf %67 : vector<256x56xf32> to vector<256x56xbf16>
    %c3 = arith.constant 3 : index
    %c0_39 = arith.constant 0 : index
    %c0_40 = arith.constant 0 : index
    %69 = vector.load %arg4[%c3, %c0_39, %c0_40] : memref<7x56x8xbf16, #tpu.memory_space<vmem>>, vector<1x56x8xbf16>
    %70 = vector.shape_cast %69 : vector<1x56x8xbf16> to vector<56x8xbf16>
    %cst_41 = arith.constant dense<0.000000e+00> : vector<256x8xf32>
    %71 = tpu.matmul %68, %70, %cst_41 {dimension_numbers = #tpu.dot_dimension_numbers<[1], [0], [0], [1], [0, 0, 1, 1], [], []>} : vector<256x56xbf16>, vector<56x8xbf16>, vector<256x8xf32> -> vector<256x8xf32>
    %72 = arith.addf %66, %71 : vector<256x8xf32>
    %c49 = arith.constant 49 : index
    %c0_42 = arith.constant 0 : index
    %73 = vector.load %arg9[%c49, %c0_42] : memref<352x56xf32, #tpu.memory_space<vmem>>, vector<256x56xf32>
    %c15_i32 = arith.constant 15 : i32
    %74 = vector.broadcast %c15_i32 : i32 to vector<256x56xi32>
    %75 = arith.cmpi slt, %35, %74 : vector<256x56xi32>
    %cst_43 = arith.constant 0.000000e+00 : f32
    %76 = vector.broadcast %cst_43 : f32 to vector<256x56xf32>
    %77 = arith.select %75, %73, %76 : vector<256x56xi1>, vector<256x56xf32>
    %78 = arith.truncf %77 : vector<256x56xf32> to vector<256x56xbf16>
    %c4 = arith.constant 4 : index
    %c0_44 = arith.constant 0 : index
    %c0_45 = arith.constant 0 : index
    %79 = vector.load %arg4[%c4, %c0_44, %c0_45] : memref<7x56x8xbf16, #tpu.memory_space<vmem>>, vector<1x56x8xbf16>
    %80 = vector.shape_cast %79 : vector<1x56x8xbf16> to vector<56x8xbf16>
    %cst_46 = arith.constant dense<0.000000e+00> : vector<256x8xf32>
    %81 = tpu.matmul %78, %80, %cst_46 {dimension_numbers = #tpu.dot_dimension_numbers<[1], [0], [0], [1], [0, 0, 1, 1], [], []>} : vector<256x56xbf16>, vector<56x8xbf16>, vector<256x8xf32> -> vector<256x8xf32>
    %82 = arith.addf %72, %81 : vector<256x8xf32>
    %c50 = arith.constant 50 : index
    %c0_47 = arith.constant 0 : index
    %83 = vector.load %arg9[%c50, %c0_47] : memref<352x56xf32, #tpu.memory_space<vmem>>, vector<256x56xf32>
    %c14_i32 = arith.constant 14 : i32
    %84 = vector.broadcast %c14_i32 : i32 to vector<256x56xi32>
    %85 = arith.cmpi slt, %35, %84 : vector<256x56xi32>
    %cst_48 = arith.constant 0.000000e+00 : f32
    %86 = vector.broadcast %cst_48 : f32 to vector<256x56xf32>
    %87 = arith.select %85, %83, %86 : vector<256x56xi1>, vector<256x56xf32>
    %88 = arith.truncf %87 : vector<256x56xf32> to vector<256x56xbf16>
    %c5 = arith.constant 5 : index
    %c0_49 = arith.constant 0 : index
    %c0_50 = arith.constant 0 : index
    %89 = vector.load %arg4[%c5, %c0_49, %c0_50] : memref<7x56x8xbf16, #tpu.memory_space<vmem>>, vector<1x56x8xbf16>
    %90 = vector.shape_cast %89 : vector<1x56x8xbf16> to vector<56x8xbf16>
    %cst_51 = arith.constant dense<0.000000e+00> : vector<256x8xf32>
    %91 = tpu.matmul %88, %90, %cst_51 {dimension_numbers = #tpu.dot_dimension_numbers<[1], [0], [0], [1], [0, 0, 1, 1], [], []>} : vector<256x56xbf16>, vector<56x8xbf16>, vector<256x8xf32> -> vector<256x8xf32>
    %92 = arith.addf %82, %91 : vector<256x8xf32>
    %c51 = arith.constant 51 : index
    %c0_52 = arith.constant 0 : index
    %93 = vector.load %arg9[%c51, %c0_52] : memref<352x56xf32, #tpu.memory_space<vmem>>, vector<256x56xf32>
    %c13_i32 = arith.constant 13 : i32
    %94 = vector.broadcast %c13_i32 : i32 to vector<256x56xi32>
    %95 = arith.cmpi slt, %35, %94 : vector<256x56xi32>
    %cst_53 = arith.constant 0.000000e+00 : f32
    %96 = vector.broadcast %cst_53 : f32 to vector<256x56xf32>
    %97 = arith.select %95, %93, %96 : vector<256x56xi1>, vector<256x56xf32>
    %98 = arith.truncf %97 : vector<256x56xf32> to vector<256x56xbf16>
    %c6 = arith.constant 6 : index
    %c0_54 = arith.constant 0 : index
    %c0_55 = arith.constant 0 : index
    %99 = vector.load %arg4[%c6, %c0_54, %c0_55] : memref<7x56x8xbf16, #tpu.memory_space<vmem>>, vector<1x56x8xbf16>
    %100 = vector.shape_cast %99 : vector<1x56x8xbf16> to vector<56x8xbf16>
    %cst_56 = arith.constant dense<0.000000e+00> : vector<256x8xf32>
    %101 = tpu.matmul %98, %100, %cst_56 {dimension_numbers = #tpu.dot_dimension_numbers<[1], [0], [0], [1], [0, 0, 1, 1], [], []>} : vector<256x56xbf16>, vector<56x8xbf16>, vector<256x8xf32> -> vector<256x8xf32>
    %102 = arith.addf %92, %101 : vector<256x8xf32>
    %c0_57 = arith.constant 0 : index
    %c0_58 = arith.constant 0 : index
    %103 = vector.load %arg5[%c0_57, %c0_58] : memref<1x8xf32, #tpu.memory_space<vmem>>, vector<1x8xf32>
    %104 = vector.broadcast %103 : vector<1x8xf32> to vector<256x8xf32>
    %105 = arith.addf %102, %104 : vector<256x8xf32>
    %cst_59 = arith.constant 0.000000e+00 : f32
    %106 = vector.broadcast %cst_59 : f32 to vector<256x8xf32>
    %107 = arith.maximumf %105, %106 : vector<256x8xf32>
    %108 = arith.truncf %107 : vector<256x8xf32> to vector<256x8xbf16>
    %c0_60 = arith.constant 0 : index
    %c0_61 = arith.constant 0 : index
    %109 = vector.load %arg6[%c0_60, %c0_61] : memref<8x8xbf16, #tpu.memory_space<vmem>>, vector<8x8xbf16>
    %cst_62 = arith.constant dense<0.000000e+00> : vector<256x8xf32>
    %110 = tpu.matmul %108, %109, %cst_62 {dimension_numbers = #tpu.dot_dimension_numbers<[1], [0], [0], [1], [0, 0, 1, 1], [], []>} : vector<256x8xbf16>, vector<8x8xbf16>, vector<256x8xf32> -> vector<256x8xf32>
    %c0_63 = arith.constant 0 : index
    %c0_64 = arith.constant 0 : index
    %111 = vector.load %arg7[%c0_63, %c0_64] : memref<1x8xf32, #tpu.memory_space<vmem>>, vector<1x8xf32>
    %112 = vector.broadcast %111 : vector<1x8xf32> to vector<256x8xf32>
    %113 = arith.addf %110, %112 : vector<256x8xf32>
    %114 = arith.extf %0 : vector<256x8xbf16> to vector<256x8xf32>
    %115 = arith.addf %113, %114 : vector<256x8xf32>
    %cst_65 = arith.constant 0.000000e+00 : f32
    %116 = vector.broadcast %cst_65 : f32 to vector<256x8xf32>
    %117 = arith.maximumf %115, %116 : vector<256x8xf32>
    %118 = arith.truncf %117 : vector<256x8xf32> to vector<256x8xbf16>
    %c0_66 = arith.constant 0 : index
    %c0_67 = arith.constant 0 : index
    %119 = vector.load %arg8[%c0_66, %c0_67] : memref<256x8xbf16, #tpu.memory_space<vmem>>, vector<256x8xbf16>
    tpu.vector_store %arg8[%c0_66, %c0_67], %118 {strides = array<i32>} : memref<256x8xbf16, #tpu.memory_space<vmem>>, vector<256x8xbf16>,
    return
  }
  func.func @transform_0(%arg0: i32) -> (i32, i32) {
    %c0_i32 = arith.constant 0 : i32
    %c0_i32_0 = arith.constant 0 : i32
    return %arg0, %c0_i32 : i32, i32
  }
  func.func @transform_1(%arg0: i32) -> (i32, i32) {
    %c0_i32 = arith.constant 0 : i32
    %c0_i32_0 = arith.constant 0 : i32
    %c0_i32_1 = arith.constant 0 : i32
    return %c0_i32, %c0_i32_0 : i32, i32
  }
  func.func @transform_2(%arg0: i32) -> (i32, i32) {
    %c0_i32 = arith.constant 0 : i32
    %c0_i32_0 = arith.constant 0 : i32
    %c0_i32_1 = arith.constant 0 : i32
    return %c0_i32, %c0_i32_0 : i32, i32
  }
  func.func @transform_3(%arg0: i32) -> (i32, i32, i32) {
    %c0_i32 = arith.constant 0 : i32
    %c0_i32_0 = arith.constant 0 : i32
    %c0_i32_1 = arith.constant 0 : i32
    %c0_i32_2 = arith.constant 0 : i32
    return %c0_i32, %c0_i32_0, %c0_i32_1 : i32, i32, i32
  }
  func.func @transform_4(%arg0: i32) -> (i32, i32) {
    %c0_i32 = arith.constant 0 : i32
    %c0_i32_0 = arith.constant 0 : i32
    %c0_i32_1 = arith.constant 0 : i32
    return %c0_i32, %c0_i32_0 : i32, i32
  }
  func.func @transform_5(%arg0: i32) -> (i32, i32) {
    %c0_i32 = arith.constant 0 : i32
    %c0_i32_0 = arith.constant 0 : i32
    %c0_i32_1 = arith.constant 0 : i32
    return %c0_i32, %c0_i32_0 : i32, i32
  }
  func.func @transform_6(%arg0: i32) -> (i32, i32) {
    %c0_i32 = arith.constant 0 : i32
    %c0_i32_0 = arith.constant 0 : i32
    %c0_i32_1 = arith.constant 0 : i32
    return %c0_i32, %c0_i32_0 : i32, i32
  }
  func.func @transform_7(%arg0: i32) -> (i32, i32) {
    %c0_i32 = arith.constant 0 : i32
    %c0_i32_0 = arith.constant 0 : i32
    return %arg0, %c0_i32 : i32, i32
  }
}

</mosaic_0001>

<llo_original>
// kernel: tpu_custom_call.1
$region0: #{tpu_custom_call.1}
  #allocation0 [shape = 'u32[]', space=smem, size = 0x4, offset = 0x4, fixed_abs, tag = 'smem constant byte address 0x4 - core index']
  #allocation1 [shape = 'u32[72,128]{1,0:T(1,128)}', space=vmem, size = 0x9000, scoped, tag = 'internal scratch']
  #allocation2 [shape = 'f32[352,56]{1,0:T(8,128)}', space=vmem, size = 0x2c000, scoped, tag = 'scratch operand']
  %s0 = inlined_call_operand.vmem [shape: bf16[512,8], index: 0, kind: input, shape index: {}]
  %s1 = inlined_call_operand.vmem [shape: bf16[8,8], index: 1, kind: input, shape index: {}]
  %s2 = inlined_call_operand.vmem [shape: f32[1,8], index: 2, kind: input, shape index: {}]
  %s3 = inlined_call_operand.vmem [shape: bf16[7,56,8], index: 3, kind: input, shape index: {}]
  %s4 = inlined_call_operand.vmem [shape: f32[1,8], index: 4, kind: input, shape index: {}]
  %s5 = inlined_call_operand.vmem [shape: bf16[8,8], index: 5, kind: input, shape index: {}]
  %s6 = inlined_call_operand.vmem [shape: f32[1,8], index: 6, kind: input, shape index: {}]
  %s7 = inlined_call_operand.vmem [shape: bf16[512,8], index: 7, kind: output, shape index: {}]
  %s8 = sld [smem:[#allocation0]]
  $region61: #{tpu_custom_call.1} parent=0
    _
  %s10 = ssub.s32 1, %s8
  %s11 = scalar_select 0, %s10, %s8
  loop: start=0, step=1, limit=4
  $region2: #{tpu_custom_call.1} parent=0 // loop_pre_header
    _
  $region3: #{tpu_custom_call.1} parent=0 // loop_header
    %s13 = sphi 0, %s17
    %p14 = scmp.ge.s32.totalorder %s13, 4
    %s23 = sphi 0, %s25
    %s26 = sphi 0, %s23
    %s27 = sphi 0, %s26
    %s43 = sphi 0, %s27
    %s47 = sphi 0, %s47
    %s49 = sphi 0, %s47
    %s50 = sphi 0, %s49
    %s64 = sphi 0, %s50
    %s68 = sphi 0, %s68
    %s70 = sphi 0, %s68
    %s71 = sphi 0, %s70
    %s85 = sphi 0, %s71
    %s89 = sphi 0, %s89
    %s91 = sphi 0, %s89
    %s92 = sphi 0, %s91
    %s106 = sphi 0, %s92
    %s110 = sphi 0, %s110
    %s112 = sphi 0, %s110
    %s113 = sphi 0, %s112
    %s127 = sphi 0, %s113
    %s131 = sphi 0, %s131
    %s133 = sphi 0, %s131
    %s134 = sphi 0, %s133
    %s148 = sphi 0, %s134
    %s152 = sphi 0, %s152
    %s154 = sphi 0, %s152
    %s155 = sphi 0, %s154
    %s169 = sphi 0, %s155
    %s175 = sphi 0, %s177
    %s178 = sphi 0, %s175
    %s179 = sphi 0, %s178
    %s195 = sphi 0, %s179
  $region4: #{tpu_custom_call.1} parent=0 // loop_header_branch
    %16 = sbr.rel (%p14) target = $region8
  $region5: #{tpu_custom_call.1} parent=0 // loop_body
    %s18 = ssub.s32 %s13, 1
    %s19 = ssub.s32 %s13, 2
    %s20 = sadd.s32 %s13, 1
    %s21 = ssub.s32 %s13, %s20
    %p22 = scmp.eq.s32.totalorder %s21, 0
    %s24 = sadd.s32 %s23, 1
    %s25 = scalar_select %p22, %s23, %s24
    %p28 = pneg %p22
    %p29 = scmp.eq.s32.totalorder %s13, 1
    %p30 = por %p28, %p29
    %p31 = scmp.ne.s32.totalorder %s23, %s26
    %p32 = scmp.eq.s32.totalorder %s13, 0
    %p33 = por %p31, %p32
    %p34 = scmp.ne.s32.totalorder %s23, %s26
    %p35 = scmp.eq.s32.totalorder %s18, 1
    %p36 = por %p34, %p35
    %p37 = scmp.ne.s32.totalorder %s26, %s27
    %p38 = scmp.eq.s32.totalorder %s18, 0
    %p39 = por %p37, %p38
    %p40 = scmp.ne.s32.totalorder %s26, %s27
    %p41 = scmp.eq.s32.totalorder %s19, 1
    %p42 = por %p40, %p41
    %p44 = scmp.ne.s32.totalorder %s27, %s43
    %p45 = scmp.eq.s32.totalorder %s19, 0
    %p46 = por %p44, %p45
    %s48 = sadd.s32 %s47, 1
    %p51 = scmp.eq.s32.totalorder %s13, 1
    %p52 = scmp.ne.s32.totalorder %s47, %s49
    %p53 = scmp.eq.s32.totalorder %s13, 0
    %p54 = por %p52, %p53
    %p55 = scmp.ne.s32.totalorder %s47, %s49
    %p56 = scmp.eq.s32.totalorder %s18, 1
    %p57 = por %p55, %p56
    %p58 = scmp.ne.s32.totalorder %s49, %s50
    %p59 = scmp.eq.s32.totalorder %s18, 0
    %p60 = por %p58, %p59
    %p61 = scmp.ne.s32.totalorder %s49, %s50
    %p62 = scmp.eq.s32.totalorder %s19, 1
    %p63 = por %p61, %p62
    %p65 = scmp.ne.s32.totalorder %s50, %s64
    %p66 = scmp.eq.s32.totalorder %s19, 0
    %p67 = por %p65, %p66
    %s69 = sadd.s32 %s68, 1
    %p72 = scmp.eq.s32.totalorder %s13, 1
    %p73 = scmp.ne.s32.totalorder %s68, %s70
    %p74 = scmp.eq.s32.totalorder %s13, 0
    %p75 = por %p73, %p74
    %p76 = scmp.ne.s32.totalorder %s68, %s70
    %p77 = scmp.eq.s32.totalorder %s18, 1
    %p78 = por %p76, %p77
    %p79 = scmp.ne.s32.totalorder %s70, %s71
    %p80 = scmp.eq.s32.totalorder %s18, 0
    %p81 = por %p79, %p80
    %p82 = scmp.ne.s32.totalorder %s70, %s71
    %p83 = scmp.eq.s32.totalorder %s19, 1
    %p84 = por %p82, %p83
    %p86 = scmp.ne.s32.totalorder %s71, %s85
    %p87 = scmp.eq.s32.totalorder %s19, 0
    %p88 = por %p86, %p87
    %s90 = sadd.s32 %s89, 1
    %p93 = scmp.eq.s32.totalorder %s13, 1
    %p94 = scmp.ne.s32.totalorder %s89, %s91
    %p95 = scmp.eq.s32.totalorder %s13, 0
    %p96 = por %p94, %p95
    %p97 = scmp.ne.s32.totalorder %s89, %s91
    %p98 = scmp.eq.s32.totalorder %s18, 1
    %p99 = por %p97, %p98
    %p100 = scmp.ne.s32.totalorder %s91, %s92
    %p101 = scmp.eq.s32.totalorder %s18, 0
    %p102 = por %p100, %p101
    %p103 = scmp.ne.s32.totalorder %s91, %s92
    %p104 = scmp.eq.s32.totalorder %s19, 1
    %p105 = por %p103, %p104
    %p107 = scmp.ne.s32.totalorder %s92, %s106
    %p108 = scmp.eq.s32.totalorder %s19, 0
    %p109 = por %p107, %p108
    %s111 = sadd.s32 %s110, 1
    %p114 = scmp.eq.s32.totalorder %s13, 1
    %p115 = scmp.ne.s32.totalorder %s110, %s112
    %p116 = scmp.eq.s32.totalorder %s13, 0
    %p117 = por %p115, %p116
    %p118 = scmp.ne.s32.totalorder %s110, %s112
    %p119 = scmp.eq.s32.totalorder %s18, 1
    %p120 = por %p118, %p119
    %p121 = scmp.ne.s32.totalorder %s112, %s113
    %p122 = scmp.eq.s32.totalorder %s18, 0
    %p123 = por %p121, %p122
    %p124 = scmp.ne.s32.totalorder %s112, %s113
    %p125 = scmp.eq.s32.totalorder %s19, 1
    %p126 = por %p124, %p125
    %p128 = scmp.ne.s32.totalorder %s113, %s127
    %p129 = scmp.eq.s32.totalorder %s19, 0
    %p130 = por %p128, %p129
    %s132 = sadd.s32 %s131, 1
    %p135 = scmp.eq.s32.totalorder %s13, 1
    %p136 = scmp.ne.s32.totalorder %s131, %s133
    %p137 = scmp.eq.s32.totalorder %s13, 0
    %p138 = por %p136, %p137
    %p139 = scmp.ne.s32.totalorder %s131, %s133
    %p140 = scmp.eq.s32.totalorder %s18, 1
    %p141 = por %p139, %p140
    %p142 = scmp.ne.s32.totalorder %s133, %s134
    %p143 = scmp.eq.s32.totalorder %s18, 0
    %p144 = por %p142, %p143
    %p145 = scmp.ne.s32.totalorder %s133, %s134
    %p146 = scmp.eq.s32.totalorder %s19, 1
    %p147 = por %p145, %p146
    %p149 = scmp.ne.s32.totalorder %s134, %s148
    %p150 = scmp.eq.s32.totalorder %s19, 0
    %p151 = por %p149, %p150
    %s153 = sadd.s32 %s152, 1
    %p156 = scmp.eq.s32.totalorder %s13, 1
    %p157 = scmp.ne.s32.totalorder %s152, %s154
    %p158 = scmp.eq.s32.totalorder %s13, 0
    %p159 = por %p157, %p158
    %p160 = scmp.ne.s32.totalorder %s152, %s154
    %p161 = scmp.eq.s32.totalorder %s18, 1
    %p162 = por %p160, %p161
    %p163 = scmp.ne.s32.totalorder %s154, %s155
    %p164 = scmp.eq.s32.totalorder %s18, 0
    %p165 = por %p163, %p164
    %p166 = scmp.ne.s32.totalorder %s154, %s155
    %p167 = scmp.eq.s32.totalorder %s19, 1
    %p168 = por %p166, %p167
    %p170 = scmp.ne.s32.totalorder %s155, %s169
    %p171 = scmp.eq.s32.totalorder %s19, 0
    %p172 = por %p170, %p171
    %s173 = ssub.s32 %s13, %s20
    %p174 = scmp.eq.s32.totalorder %s173, 0
    %s176 = sadd.s32 %s175, 1
    %s177 = scalar_select %p174, %s175, %s176
    %p180 = pneg %p174
    %p181 = scmp.eq.s32.totalorder %s13, 1
    %p182 = por %p180, %p181
    %p183 = scmp.ne.s32.totalorder %s175, %s178
    %p184 = scmp.eq.s32.totalorder %s13, 0
    %p185 = por %p183, %p184
    %p186 = scmp.ne.s32.totalorder %s175, %s178
    %p187 = scmp.eq.s32.totalorder %s18, 1
    %p188 = por %p186, %p187
    %p189 = scmp.ne.s32.totalorder %s178, %s179
    %p190 = scmp.eq.s32.totalorder %s18, 0
    %p191 = por %p189, %p190
    %p192 = scmp.ne.s32.totalorder %s178, %s179
    %p193 = scmp.eq.s32.totalorder %s19, 1
    %p194 = por %p192, %p193
    %p196 = scmp.ne.s32.totalorder %s179, %s195
    %p197 = scmp.eq.s32.totalorder %s19, 0
    %p198 = por %p196, %p197
    %p199 = scmp.le.s32.totalorder 1, %s13
    %p200 = scmp.lt.s32.totalorder %s13, 3
    %p201 = pnand %p199, %p200
    %p202 = pneg %p201
    // Predicated region
    $region9: #{tpu_custom_call.1} parent=5 // pred_check
      _
    $region10: #{tpu_custom_call.1} parent=5 // pred_check_branch
      %204 = sbr.rel (%p201) target = $region12
    $region11: #{tpu_custom_call.1} parent=5 // pred_region
      %s205 = ssub.s32 %s13, 1
      // Predicated region
      $region13: #{tpu_custom_call.1} parent=11 // pred_check
        %p206 = pneg %p60
      $region14: #{tpu_custom_call.1} parent=11 // pred_check_branch
        %208 = sbr.rel (%p206) target = $region16
      $region15: #{tpu_custom_call.1} parent=11 // pred_region
        _
      $region16: #{tpu_custom_call.1} parent=11 // pred_fallthru
        _
      // Predicated region
      $region17: #{tpu_custom_call.1} parent=11 // pred_check
        %p209 = pneg %p81
      $region18: #{tpu_custom_call.1} parent=11 // pred_check_branch
        %211 = sbr.rel (%p209) target = $region20
      $region19: #{tpu_custom_call.1} parent=11 // pred_region
        _
      $region20: #{tpu_custom_call.1} parent=11 // pred_fallthru
        _
      // Predicated region
      $region21: #{tpu_custom_call.1} parent=11 // pred_check
        %p212 = pneg %p102
      $region22: #{tpu_custom_call.1} parent=11 // pred_check_branch
        %214 = sbr.rel (%p212) target = $region24
      $region23: #{tpu_custom_call.1} parent=11 // pred_region
        _
      $region24: #{tpu_custom_call.1} parent=11 // pred_fallthru
        _
      // Predicated region
      $region25: #{tpu_custom_call.1} parent=11 // pred_check
        %p215 = pneg %p123
      $region26: #{tpu_custom_call.1} parent=11 // pred_check_branch
        %217 = sbr.rel (%p215) target = $region28
      $region27: #{tpu_custom_call.1} parent=11 // pred_region
        _
      $region28: #{tpu_custom_call.1} parent=11 // pred_fallthru
        _
      // Predicated region
      $region29: #{tpu_custom_call.1} parent=11 // pred_check
        %p218 = pneg %p144
      $region30: #{tpu_custom_call.1} parent=11 // pred_check_branch
        %220 = sbr.rel (%p218) target = $region32
      $region31: #{tpu_custom_call.1} parent=11 // pred_region
        _
      $region32: #{tpu_custom_call.1} parent=11 // pred_fallthru
        _
      // Predicated region
      $region33: #{tpu_custom_call.1} parent=11 // pred_check
        %p221 = pneg %p165
      $region34: #{tpu_custom_call.1} parent=11 // pred_check_branch
        %223 = sbr.rel (%p221) target = $region36
      $region35: #{tpu_custom_call.1} parent=11 // pred_region
        _
      $region36: #{tpu_custom_call.1} parent=11 // pred_fallthru
        _
    $region12: #{tpu_custom_call.1} parent=5 // pred_fallthru
      _
    %p224 = scmp.lt.s32.totalorder %s13, 2
    // Predicated region
    $region37: #{tpu_custom_call.1} parent=5 // pred_check
      %p225 = pneg %p224
    $region38: #{tpu_custom_call.1} parent=5 // pred_check_branch
      %227 = sbr.rel (%p225) target = $region40
    $region39: #{tpu_custom_call.1} parent=5 // pred_region
      // Predicated region
      $region41: #{tpu_custom_call.1} parent=39 // pred_check
        %p228 = pneg %p33
      $region42: #{tpu_custom_call.1} parent=39 // pred_check_branch
        %230 = sbr.rel (%p228) target = $region44
      $region43: #{tpu_custom_call.1} parent=39 // pred_region
        %s231 = smul.u32 32, %s13
        %p232 = scmp.lt.s32.totalorder %s231, 63
        %s233 = scalar_select %p232, %s231, 63
        %s234 = smul.addr %s233, 4
        %s235 = scalar_lea.vmem %s0, %s234
        %s236 = smul.u32 32, %s13
      $region44: #{tpu_custom_call.1} parent=39 // pred_fallthru
        _
    $region40: #{tpu_custom_call.1} parent=5 // pred_fallthru
      _
    %p237 = scmp.le.s32.totalorder 1, %s13
    %p238 = scmp.lt.s32.totalorder %s13, 3
    %p239 = pnand %p237, %p238
    %p240 = pneg %p239
    // Predicated region
    $region45: #{tpu_custom_call.1} parent=5 // pred_check
      _
    $region46: #{tpu_custom_call.1} parent=5 // pred_check_branch
      %242 = sbr.rel (%p239) target = $region48
    $region47: #{tpu_custom_call.1} parent=5 // pred_region
      %s243 = ssub.s32 %s13, 1
      %s244 = smul.u32 32, %s18
      %p245 = scmp.lt.s32.totalorder %s244, 63
      %s246 = scalar_select %p245, %s244, 63
      %s247 = smul.addr %s246, 4
      %s248 = scalar_lea.vmem %s0, %s247
      %p249 = pneg %p39
      %p250 = pneg %p36
      %p251 = pneg %p60
      %p252 = pneg %p57
      %p253 = pneg %p81
      %p254 = pneg %p78
      %p255 = pneg %p102
      %p256 = pneg %p99
      %p257 = pneg %p123
      %p258 = pneg %p120
      %p259 = pneg %p144
      %p260 = pneg %p141
      %p261 = pneg %p165
      %p262 = pneg %p162
      %p263 = pneg %p191
      %p264 = pneg %p188
      %s265 = smul.u32 32, %s18
      %p266 = scmp.lt.s32.totalorder %s265, 63
      %s267 = scalar_select %p266, %s265, 63
      %s268 = smul.addr %s267, 4
      %s269 = scalar_lea.vmem %s7, %s268
      %s270 = smul.u32 32, %s18
      %p271 = scmp.lt.s32.totalorder %s270, 63
      %s272 = scalar_select %p271, %s270, 63
      %s273 = smul.addr %s272, 4
      %s274 = scalar_lea.vmem %s0, %s273
      %s275 = smul.u32 32, %s18
      %s276 = smul.u32 32, %s18
      %p277 = scmp.lt.s32.totalorder %s276, 63
      %s278 = scalar_select %p277, %s276, 63
      %s279 = smul.addr %s278, 4
      %s280 = scalar_lea.vmem %s7, %s279
      %s281 = smul.u32 32, %s18
      %v283 = vld [vmem:[%s274] sm:$0xf]
      %v284 = vld [vmem:[%s274 + $0x4] sm:$0xf]
      %v285 = vld [vmem:[%s274 + $0x8] sm:$0xf]
      %v286 = vld [vmem:[%s274 + $0xc] sm:$0xf]
      %v287 = vld [vmem:[%s274 + $0x10] sm:$0xf]
      %v288 = vld [vmem:[%s274 + $0x14] sm:$0xf]
      %v289 = vld [vmem:[%s274 + $0x18] sm:$0xf]
      %v290 = vld [vmem:[%s274 + $0x1c] sm:$0xf]
      %v291 = vld [vmem:[%s274 + $0x20] sm:$0xf]
      %v292 = vld [vmem:[%s274 + $0x24] sm:$0xf]
      %v293 = vld [vmem:[%s274 + $0x28] sm:$0xf]
      %v294 = vld [vmem:[%s274 + $0x2c] sm:$0xf]
      %v295 = vld [vmem:[%s274 + $0x30] sm:$0xf]
      %v296 = vld [vmem:[%s274 + $0x34] sm:$0xf]
      %v297 = vld [vmem:[%s274 + $0x38] sm:$0xf]
      %v298 = vld [vmem:[%s274 + $0x3c] sm:$0xf]
      %v299 = vld [vmem:[%s274 + $0x40] sm:$0xf]
      %v300 = vld [vmem:[%s274 + $0x44] sm:$0xf]
      %v301 = vld [vmem:[%s274 + $0x48] sm:$0xf]
      %v302 = vld [vmem:[%s274 + $0x4c] sm:$0xf]
      %v303 = vld [vmem:[%s274 + $0x50] sm:$0xf]
      %v304 = vld [vmem:[%s274 + $0x54] sm:$0xf]
      %v305 = vld [vmem:[%s274 + $0x58] sm:$0xf]
      %v306 = vld [vmem:[%s274 + $0x5c] sm:$0xf]
      %v307 = vld [vmem:[%s274 + $0x60] sm:$0xf]
      %v308 = vld [vmem:[%s274 + $0x64] sm:$0xf]
      %v309 = vld [vmem:[%s274 + $0x68] sm:$0xf]
      %v310 = vld [vmem:[%s274 + $0x6c] sm:$0xf]
      %v311 = vld [vmem:[%s274 + $0x70] sm:$0xf]
      %v312 = vld [vmem:[%s274 + $0x74] sm:$0xf]
      %v313 = vld [vmem:[%s274 + $0x78] sm:$0xf]
      %v314 = vld [vmem:[%s274 + $0x7c] sm:$0xf]
      %v315 = vld [vmem:[%s1] sm:$0xf]
      %v316 = vld [vmem:[%s2] sm:$0x1]
      %v318 = vperm.slane %v316, 0
      %v352 = vunpack.c.l.b16 %v283
      %v353 = vunpack.c.l.b16 %v284
      %v354 = vunpack.c.l.b16 %v285
      %v355 = vunpack.c.l.b16 %v286
      %v356 = vunpack.c.l.b16 %v287
      %v357 = vunpack.c.l.b16 %v288
      %v358 = vunpack.c.l.b16 %v289
      %v359 = vunpack.c.l.b16 %v290
      %v360 = vunpack.c.l.b16 %v291
      %v361 = vunpack.c.l.b16 %v292
      %v362 = vunpack.c.l.b16 %v293
      %v363 = vunpack.c.l.b16 %v294
      %v364 = vunpack.c.l.b16 %v295
      %v365 = vunpack.c.l.b16 %v296
      %v366 = vunpack.c.l.b16 %v297
      %v367 = vunpack.c.l.b16 %v298
      %v368 = vunpack.c.l.b16 %v299
      %v369 = vunpack.c.l.b16 %v300
      %v370 = vunpack.c.l.b16 %v301
      %v371 = vunpack.c.l.b16 %v302
      %v372 = vunpack.c.l.b16 %v303
      %v373 = vunpack.c.l.b16 %v304
      %v374 = vunpack.c.l.b16 %v305
      %v375 = vunpack.c.l.b16 %v306
      %v376 = vunpack.c.l.b16 %v307
      %v377 = vunpack.c.l.b16 %v308
      %v378 = vunpack.c.l.b16 %v309
      %v379 = vunpack.c.l.b16 %v310
      %v380 = vunpack.c.l.b16 %v311
      %v381 = vunpack.c.l.b16 %v312
      %v382 = vunpack.c.l.b16 %v313
      %v383 = vunpack.c.l.b16 %v314
      %v384 = vpack.c.b16 %v353, %v352
      %v385 = vpack.c.b16 %v355, %v354
      %v386 = vpack.c.b16 %v357, %v356
      %v387 = vpack.c.b16 %v359, %v358
      %v388 = vpack.c.b16 %v361, %v360
      %v389 = vpack.c.b16 %v363, %v362
      %v390 = vpack.c.b16 %v365, %v364
      %v391 = vpack.c.b16 %v367, %v366
      %v392 = vpack.c.b16 %v369, %v368
      %v393 = vpack.c.b16 %v371, %v370
      %v394 = vpack.c.b16 %v373, %v372
      %v395 = vpack.c.b16 %v375, %v374
      %v396 = vpack.c.b16 %v377, %v376
      %v397 = vpack.c.b16 %v379, %v378
      %v398 = vpack.c.b16 %v381, %v380
      %v399 = vpack.c.b16 %v383, %v382
      %vm400 = vcmask 64512
      %v402 = vsel %vm400, %v384, 0
      %v405 = vsel %vm400, %v385, 0
      %v408 = vsel %vm400, %v386, 0
      %v411 = vsel %vm400, %v387, 0
      %v414 = vsel %vm400, %v388, 0
      %v417 = vsel %vm400, %v389, 0
      %v420 = vsel %vm400, %v390, 0
      %v423 = vsel %vm400, %v391, 0
      %v426 = vsel %vm400, %v392, 0
      %v429 = vsel %vm400, %v393, 0
      %v432 = vsel %vm400, %v394, 0
      %v435 = vsel %vm400, %v395, 0
      %v438 = vsel %vm400, %v396, 0
      %v441 = vsel %vm400, %v397, 0
      %v444 = vsel %vm400, %v398, 0
      %v447 = vsel %vm400, %v399, 0
      %vm449 = vcmask 1043456
      %v451 = vsel %vm449, %v315, 0
      %453 = vmatpush.bf16.msra.mxu0 0
      %454 = vmatpush.bf16.msra.mxu0 0
      %455 = vmatpush.bf16.msra.mxu0 0
      %456 = vmatpush.bf16.msra.mxu0 0
      %457 = vmatpush.bf16.msra.mxu0 0
      %458 = vmatpush.bf16.msra.mxu0 0
      %459 = vmatpush.bf16.msra.mxu0 0
      %460 = vmatpush.bf16.msra.mxu0 %v451
      %461 = vmatmul.bf16.gmra.mxu0 %v402
      %v462 = vpop.f32.mrf.mxu0
      %v463 = vadd.f32 %v318, %v462
      %v464 = vpop.f32.mrf.mxu0
      %v465 = vadd.f32 %v318, %v464
      %466 = vmatmul.bf16.gmra.mxu0 %v405
      %v467 = vpop.f32.mrf.mxu0
      %v468 = vadd.f32 %v318, %v467
      %v469 = vpop.f32.mrf.mxu0
      %v470 = vadd.f32 %v318, %v469
      %471 = vmatmul.bf16.gmra.mxu0 %v408
      %v472 = vpop.f32.mrf.mxu0
      %v473 = vadd.f32 %v318, %v472
      %v474 = vpop.f32.mrf.mxu0
      %v475 = vadd.f32 %v318, %v474
      %476 = vmatmul.bf16.gmra.mxu0 %v411
      %v477 = vpop.f32.mrf.mxu0
      %v478 = vadd.f32 %v318, %v477
      %v479 = vpop.f32.mrf.mxu0
      %v480 = vadd.f32 %v318, %v479
      %481 = vmatmul.bf16.gmra.mxu0 %v414
      %v482 = vpop.f32.mrf.mxu0
      %v483 = vadd.f32 %v318, %v482
      %v484 = vpop.f32.mrf.mxu0
      %v485 = vadd.f32 %v318, %v484
      %486 = vmatmul.bf16.gmra.mxu0 %v417
      %v487 = vpop.f32.mrf.mxu0
      %v488 = vadd.f32 %v318, %v487
      %v489 = vpop.f32.mrf.mxu0
      %v490 = vadd.f32 %v318, %v489
      %491 = vmatmul.bf16.gmra.mxu0 %v420
      %v492 = vpop.f32.mrf.mxu0
      %v493 = vadd.f32 %v318, %v492
      %v494 = vpop.f32.mrf.mxu0
      %v495 = vadd.f32 %v318, %v494
      %496 = vmatmul.bf16.gmra.mxu0 %v423
      %v497 = vpop.f32.mrf.mxu0
      %v498 = vadd.f32 %v318, %v497
      %v499 = vpop.f32.mrf.mxu0
      %v500 = vadd.f32 %v318, %v499
      %501 = vmatmul.bf16.gmra.mxu0 %v426
      %v502 = vpop.f32.mrf.mxu0
      %v503 = vadd.f32 %v318, %v502
      %v504 = vpop.f32.mrf.mxu0
      %v505 = vadd.f32 %v318, %v504
      %506 = vmatmul.bf16.gmra.mxu0 %v429
      %v507 = vpop.f32.mrf.mxu0
      %v508 = vadd.f32 %v318, %v507
      %v509 = vpop.f32.mrf.mxu0
      %v510 = vadd.f32 %v318, %v509
      %511 = vmatmul.bf16.gmra.mxu0 %v432
      %v512 = vpop.f32.mrf.mxu0
      %v513 = vadd.f32 %v318, %v512
      %v514 = vpop.f32.mrf.mxu0
      %v515 = vadd.f32 %v318, %v514
      %516 = vmatmul.bf16.gmra.mxu0 %v435
      %v517 = vpop.f32.mrf.mxu0
      %v518 = vadd.f32 %v318, %v517
      %v519 = vpop.f32.mrf.mxu0
      %v520 = vadd.f32 %v318, %v519
      %521 = vmatmul.bf16.gmra.mxu0 %v438
      %v522 = vpop.f32.mrf.mxu0
      %v523 = vadd.f32 %v318, %v522
      %v524 = vpop.f32.mrf.mxu0
      %v525 = vadd.f32 %v318, %v524
      %526 = vmatmul.bf16.gmra.mxu0 %v441
      %v527 = vpop.f32.mrf.mxu0
      %v528 = vadd.f32 %v318, %v527
      %v529 = vpop.f32.mrf.mxu0
      %v530 = vadd.f32 %v318, %v529
      %531 = vmatmul.bf16.gmra.mxu0 %v444
      %v532 = vpop.f32.mrf.mxu0
      %v533 = vadd.f32 %v318, %v532
      %v534 = vpop.f32.mrf.mxu0
      %v535 = vadd.f32 %v318, %v534
      %536 = vmatmul.bf16.gmra.mxu0 %v447
      %v537 = vpop.f32.mrf.mxu0
      %v538 = vadd.f32 %v318, %v537
      %v539 = vpop.f32.mrf.mxu0
      %v540 = vadd.f32 %v318, %v539
      %541 = vdwg.mxu0
      %v542 = vmax.f32 %v463, 0.0
      %v543 = vmax.f32 %v465, 0.0
      %v544 = vmax.f32 %v468, 0.0
      %v545 = vmax.f32 %v470, 0.0
      %v546 = vmax.f32 %v473, 0.0
      %v547 = vmax.f32 %v475, 0.0
      %v548 = vmax.f32 %v478, 0.0
      %v549 = vmax.f32 %v480, 0.0
      %v550 = vmax.f32 %v483, 0.0
      %v551 = vmax.f32 %v485, 0.0
      %v552 = vmax.f32 %v488, 0.0
      %v553 = vmax.f32 %v490, 0.0
      %v554 = vmax.f32 %v493, 0.0
      %v555 = vmax.f32 %v495, 0.0
      %v556 = vmax.f32 %v498, 0.0
      %v557 = vmax.f32 %v500, 0.0
      %v558 = vmax.f32 %v503, 0.0
      %v559 = vmax.f32 %v505, 0.0
      %v560 = vmax.f32 %v508, 0.0
      %v561 = vmax.f32 %v510, 0.0
      %v562 = vmax.f32 %v513, 0.0
      %v563 = vmax.f32 %v515, 0.0
      %v564 = vmax.f32 %v518, 0.0
      %v565 = vmax.f32 %v520, 0.0
      %v566 = vmax.f32 %v523, 0.0
      %v567 = vmax.f32 %v525, 0.0
      %v568 = vmax.f32 %v528, 0.0
      %v569 = vmax.f32 %v530, 0.0
      %v570 = vmax.f32 %v533, 0.0
      %v571 = vmax.f32 %v535, 0.0
      %v572 = vmax.f32 %v538, 0.0
      %v573 = vmax.f32 %v540, 0.0
      %vm574 = vcmask 457728
      %575 = vst.msk [vmem:[#allocation2 + $0x28] sm:$0xff] %vm574, 0.0
      %576 = vst.msk [vmem:[#allocation2 + $0x30] sm:$0xff] %vm574, 0.0
      %577 = vst.msk [vmem:[#allocation2 + $0x38] sm:$0xff] %vm574, 0.0
      %578 = vst.msk [vmem:[#allocation2 + $0x40] sm:$0xff] %vm574, 0.0
      %579 = vst.msk [vmem:[#allocation2 + $0x48] sm:$0xff] %vm574, 0.0
      %580 = vst.msk [vmem:[#allocation2 + $0x50] sm:$0xff] %vm574, 0.0
      %581 = vst.msk [vmem:[#allocation2 + $0x58] sm:$0xff] %vm574, 0.0
      %582 = vst.msk [vmem:[#allocation2 + $0x100] sm:$0xff] %vm574, 0.0
      %583 = vst.msk [vmem:[#allocation2 + $0x108] sm:$0xff] %vm574, 0.0
      %584 = vst.msk [vmem:[#allocation2 + $0x110] sm:$0xff] %vm574, 0.0
      %585 = vst.msk [vmem:[#allocation2 + $0x118] sm:$0xff] %vm574, 0.0
      %586 = vst.msk [vmem:[#allocation2 + $0x120] sm:$0xff] %vm574, 0.0
      %587 = vst.msk [vmem:[#allocation2 + $0x128] sm:$0xff] %vm574, 0.0
      %588 = vst.msk [vmem:[#allocation2 + $0x130] sm:$0xff] %vm574, 0.0
      %589 = vst.msk [vmem:[#allocation2 + $0x60] sm:$0xff] %vm400, %v542
      %590 = vst.msk [vmem:[#allocation2 + $0x68] sm:$0xff] %vm400, %v543
      %591 = vst.msk [vmem:[#allocation2 + $0x70] sm:$0xff] %vm400, %v544
      %592 = vst.msk [vmem:[#allocation2 + $0x78] sm:$0xff] %vm400, %v545
      %593 = vst.msk [vmem:[#allocation2 + $0x80] sm:$0xff] %vm400, %v546
      %594 = vst.msk [vmem:[#allocation2 + $0x88] sm:$0xff] %vm400, %v547
      %595 = vst.msk [vmem:[#allocation2 + $0x90] sm:$0xff] %vm400, %v548
      %596 = vst.msk [vmem:[#allocation2 + $0x98] sm:$0xff] %vm400, %v549
      %597 = vst.msk [vmem:[#allocation2 + $0xa0] sm:$0xff] %vm400, %v550
      %598 = vst.msk [vmem:[#allocation2 + $0xa8] sm:$0xff] %vm400, %v551
      %599 = vst.msk [vmem:[#allocation2 + $0xb0] sm:$0xff] %vm400, %v552
      %600 = vst.msk [vmem:[#allocation2 + $0xb8] sm:$0xff] %vm400, %v553
      %601 = vst.msk [vmem:[#allocation2 + $0xc0] sm:$0xff] %vm400, %v554
      %602 = vst.msk [vmem:[#allocation2 + $0xc8] sm:$0xff] %vm400, %v555
      %603 = vst.msk [vmem:[#allocation2 + $0xd0] sm:$0xff] %vm400, %v556
      %604 = vst.msk [vmem:[#allocation2 + $0xd8] sm:$0xff] %vm400, %v557
      %605 = vst.msk [vmem:[#allocation2 + $0xe0] sm:$0xff] %vm400, %v558
      %606 = vst.msk [vmem:[#allocation2 + $0xe8] sm:$0xff] %vm400, %v559
      %607 = vst.msk [vmem:[#allocation2 + $0xf0] sm:$0xff] %vm400, %v560
      %608 = vst.msk [vmem:[#allocation2 + $0xf8] sm:$0xff] %vm400, %v561
      %609 = vst.msk [vmem:[#allocation2 + $0x100] sm:$0xff] %vm400, %v562
      %610 = vst.msk [vmem:[#allocation2 + $0x108] sm:$0xff] %vm400, %v563
      %611 = vst.msk [vmem:[#allocation2 + $0x110] sm:$0xff] %vm400, %v564
      %612 = vst.msk [vmem:[#allocation2 + $0x118] sm:$0xff] %vm400, %v565
      %613 = vst.msk [vmem:[#allocation2 + $0x120] sm:$0xff] %vm400, %v566
      %614 = vst.msk [vmem:[#allocation2 + $0x128] sm:$0xff] %vm400, %v567
      %615 = vst.msk [vmem:[#allocation2 + $0x130] sm:$0xff] %vm400, %v568
      %616 = vst.msk [vmem:[#allocation2 + $0x138] sm:$0xff] %vm400, %v569
      %617 = vst.msk [vmem:[#allocation2 + $0x140] sm:$0xff] %vm400, %v570
      %618 = vst.msk [vmem:[#allocation2 + $0x148] sm:$0xff] %vm400, %v571
      %619 = vst.msk [vmem:[#allocation2 + $0x150] sm:$0xff] %vm400, %v572
      %620 = vst.msk [vmem:[#allocation2 + $0x158] sm:$0xff] %vm400, %v573
      %653 = vrot.lane.b32.xlu0 %v542, 8
      %v654 = vpop.permute.xlu0 %653
      %655 = vrot.lane.b32.xlu0 %v543, 8
      %v656 = vpop.permute.xlu0 %655
      %657 = vrot.lane.b32.xlu0 %v544, 8
      %v658 = vpop.permute.xlu0 %657
      %659 = vrot.lane.b32.xlu0 %v545, 8
      %v660 = vpop.permute.xlu0 %659
      %661 = vrot.lane.b32.xlu0 %v546, 8
      %v662 = vpop.permute.xlu0 %661
      %663 = vrot.lane.b32.xlu0 %v547, 8
      %v664 = vpop.permute.xlu0 %663
      %665 = vrot.lane.b32.xlu0 %v548, 8
      %v666 = vpop.permute.xlu0 %665
      %667 = vrot.lane.b32.xlu0 %v549, 8
      %v668 = vpop.permute.xlu0 %667
      %669 = vrot.lane.b32.xlu0 %v550, 8
      %v670 = vpop.permute.xlu0 %669
      %671 = vrot.lane.b32.xlu0 %v551, 8
      %v672 = vpop.permute.xlu0 %671
      %673 = vrot.lane.b32.xlu0 %v552, 8
      %v674 = vpop.permute.xlu0 %673
      %675 = vrot.lane.b32.xlu0 %v553, 8
      %v676 = vpop.permute.xlu0 %675
      %677 = vrot.lane.b32.xlu0 %v554, 8
      %v678 = vpop.permute.xlu0 %677
      %679 = vrot.lane.b32.xlu0 %v555, 8
      %v680 = vpop.permute.xlu0 %679
      %681 = vrot.lane.b32.xlu0 %v556, 8
      %v682 = vpop.permute.xlu0 %681
      %683 = vrot.lane.b32.xlu0 %v557, 8
      %v684 = vpop.permute.xlu0 %683
      %685 = vrot.lane.b32.xlu0 %v558, 8
      %v686 = vpop.permute.xlu0 %685
      %687 = vrot.lane.b32.xlu0 %v559, 8
      %v688 = vpop.permute.xlu0 %687
      %689 = vrot.lane.b32.xlu0 %v560, 8
      %v690 = vpop.permute.xlu0 %689
      %691 = vrot.lane.b32.xlu0 %v561, 8
      %v692 = vpop.permute.xlu0 %691
      %693 = vrot.lane.b32.xlu0 %v562, 8
      %v694 = vpop.permute.xlu0 %693
      %695 = vrot.lane.b32.xlu0 %v563, 8
      %v696 = vpop.permute.xlu0 %695
      %697 = vrot.lane.b32.xlu0 %v564, 8
      %v698 = vpop.permute.xlu0 %697
      %699 = vrot.lane.b32.xlu0 %v565, 8
      %v700 = vpop.permute.xlu0 %699
      %701 = vrot.lane.b32.xlu0 %v566, 8
      %v702 = vpop.permute.xlu0 %701
      %703 = vrot.lane.b32.xlu0 %v567, 8
      %v704 = vpop.permute.xlu0 %703
      %705 = vrot.lane.b32.xlu0 %v568, 8
      %v706 = vpop.permute.xlu0 %705
      %707 = vrot.lane.b32.xlu0 %v569, 8
      %v708 = vpop.permute.xlu0 %707
      %709 = vrot.lane.b32.xlu0 %v570, 8
      %v710 = vpop.permute.xlu0 %709
      %711 = vrot.lane.b32.xlu0 %v571, 8
      %v712 = vpop.permute.xlu0 %711
      %713 = vrot.lane.b32.xlu0 %v572, 8
      %v714 = vpop.permute.xlu0 %713
      %715 = vrot.lane.b32.xlu0 %v573, 8
      %v716 = vpop.permute.xlu0 %715
      %vm749 = vcmask 130112
      %750 = vst.msk [vmem:[#allocation2 + $0x50] sm:$0xff] %vm749, %v654
      %751 = vst.msk [vmem:[#allocation2 + $0x58] sm:$0xff] %vm749, %v656
      %752 = vst.msk [vmem:[#allocation2 + $0x60] sm:$0xff] %vm749, %v658
      %753 = vst.msk [vmem:[#allocation2 + $0x68] sm:$0xff] %vm749, %v660
      %754 = vst.msk [vmem:[#allocation2 + $0x70] sm:$0xff] %vm749, %v662
      %755 = vst.msk [vmem:[#allocation2 + $0x78] sm:$0xff] %vm749, %v664
      %756 = vst.msk [vmem:[#allocation2 + $0x80] sm:$0xff] %vm749, %v666
      %757 = vst.msk [vmem:[#allocation2 + $0x88] sm:$0xff] %vm749, %v668
      %758 = vst.msk [vmem:[#allocation2 + $0x90] sm:$0xff] %vm749, %v670
      %759 = vst.msk [vmem:[#allocation2 + $0x98] sm:$0xff] %vm749, %v672
      %760 = vst.msk [vmem:[#allocation2 + $0xa0] sm:$0xff] %vm749, %v674
      %761 = vst.msk [vmem:[#allocation2 + $0xa8] sm:$0xff] %vm749, %v676
      %762 = vst.msk [vmem:[#allocation2 + $0xb0] sm:$0xff] %vm749, %v678
      %763 = vst.msk [vmem:[#allocation2 + $0xb8] sm:$0xff] %vm749, %v680
      %764 = vst.msk [vmem:[#allocation2 + $0xc0] sm:$0xff] %vm749, %v682
      %765 = vst.msk [vmem:[#allocation2 + $0xc8] sm:$0xff] %vm749, %v684
      %766 = vst.msk [vmem:[#allocation2 + $0xd0] sm:$0xff] %vm749, %v686
      %767 = vst.msk [vmem:[#allocation2 + $0xd8] sm:$0xff] %vm749, %v688
      %768 = vst.msk [vmem:[#allocation2 + $0xe0] sm:$0xff] %vm749, %v690
      %769 = vst.msk [vmem:[#allocation2 + $0xe8] sm:$0xff] %vm749, %v692
      %770 = vst.msk [vmem:[#allocation2 + $0xf0] sm:$0xff] %vm749, %v694
      %771 = vst.msk [vmem:[#allocation2 + $0xf8] sm:$0xff] %vm749, %v696
      %772 = vst.msk [vmem:[#allocation2 + $0x100] sm:$0xff] %vm749, %v698
      %773 = vst.msk [vmem:[#allocation2 + $0x108] sm:$0xff] %vm749, %v700
      %774 = vst.msk [vmem:[#allocation2 + $0x110] sm:$0xff] %vm749, %v702
      %775 = vst.msk [vmem:[#allocation2 + $0x118] sm:$0xff] %vm749, %v704
      %776 = vst.msk [vmem:[#allocation2 + $0x120] sm:$0xff] %vm749, %v706
      %777 = vst.msk [vmem:[#allocation2 + $0x128] sm:$0xff] %vm749, %v708
      %778 = vst.msk [vmem:[#allocation2 + $0x130] sm:$0xff] %vm749, %v710
      %779 = vst.msk [vmem:[#allocation2 + $0x138] sm:$0xff] %vm749, %v712
      %780 = vst.msk [vmem:[#allocation2 + $0x140] sm:$0xff] %vm749, %v714
      %781 = vst.msk [vmem:[#allocation2 + $0x148] sm:$0xff] %vm749, %v716
      %782 = vrot.lane.b32.xlu0 %v542, 16
      %v783 = vpop.permute.xlu0 %782
      %784 = vrot.lane.b32.xlu0 %v543, 16
      %v785 = vpop.permute.xlu0 %784
      %786 = vrot.lane.b32.xlu0 %v544, 16
      %v787 = vpop.permute.xlu0 %786
      %788 = vrot.lane.b32.xlu0 %v545, 16
      %v789 = vpop.permute.xlu0 %788
      %790 = vrot.lane.b32.xlu0 %v546, 16
      %v791 = vpop.permute.xlu0 %790
      %792 = vrot.lane.b32.xlu0 %v547, 16
      %v793 = vpop.permute.xlu0 %792
      %794 = vrot.lane.b32.xlu0 %v548, 16
      %v795 = vpop.permute.xlu0 %794
      %796 = vrot.lane.b32.xlu0 %v549, 16
      %v797 = vpop.permute.xlu0 %796
      %798 = vrot.lane.b32.xlu0 %v550, 16
      %v799 = vpop.permute.xlu0 %798
      %800 = vrot.lane.b32.xlu0 %v551, 16
      %v801 = vpop.permute.xlu0 %800
      %802 = vrot.lane.b32.xlu0 %v552, 16
      %v803 = vpop.permute.xlu0 %802
      %804 = vrot.lane.b32.xlu0 %v553, 16
      %v805 = vpop.permute.xlu0 %804
      %806 = vrot.lane.b32.xlu0 %v554, 16
      %v807 = vpop.permute.xlu0 %806
      %808 = vrot.lane.b32.xlu0 %v555, 16
      %v809 = vpop.permute.xlu0 %808
      %810 = vrot.lane.b32.xlu0 %v556, 16
      %v811 = vpop.permute.xlu0 %810
      %812 = vrot.lane.b32.xlu0 %v557, 16
      %v813 = vpop.permute.xlu0 %812
      %814 = vrot.lane.b32.xlu0 %v558, 16
      %v815 = vpop.permute.xlu0 %814
      %816 = vrot.lane.b32.xlu0 %v559, 16
      %v817 = vpop.permute.xlu0 %816
      %818 = vrot.lane.b32.xlu0 %v560, 16
      %v819 = vpop.permute.xlu0 %818
      %820 = vrot.lane.b32.xlu0 %v561, 16
      %v821 = vpop.permute.xlu0 %820
      %822 = vrot.lane.b32.xlu0 %v562, 16
      %v823 = vpop.permute.xlu0 %822
      %824 = vrot.lane.b32.xlu0 %v563, 16
      %v825 = vpop.permute.xlu0 %824
      %826 = vrot.lane.b32.xlu0 %v564, 16
      %v827 = vpop.permute.xlu0 %826
      %828 = vrot.lane.b32.xlu0 %v565, 16
      %v829 = vpop.permute.xlu0 %828
      %830 = vrot.lane.b32.xlu0 %v566, 16
      %v831 = vpop.permute.xlu0 %830
      %832 = vrot.lane.b32.xlu0 %v567, 16
      %v833 = vpop.permute.xlu0 %832
      %834 = vrot.lane.b32.xlu0 %v568, 16
      %v835 = vpop.permute.xlu0 %834
      %836 = vrot.lane.b32.xlu0 %v569, 16
      %v837 = vpop.permute.xlu0 %836
      %838 = vrot.lane.b32.xlu0 %v570, 16
      %v839 = vpop.permute.xlu0 %838
      %840 = vrot.lane.b32.xlu0 %v571, 16
      %v841 = vpop.permute.xlu0 %840
      %842 = vrot.lane.b32.xlu0 %v572, 16
      %v843 = vpop.permute.xlu0 %842
      %844 = vrot.lane.b32.xlu0 %v573, 16
      %v845 = vpop.permute.xlu0 %844
      %vm878 = vcmask 195712
      %879 = vst.msk [vmem:[#allocation2 + $0x40] sm:$0xff] %vm878, %v783
      %880 = vst.msk [vmem:[#allocation2 + $0x48] sm:$0xff] %vm878, %v785
      %881 = vst.msk [vmem:[#allocation2 + $0x50] sm:$0xff] %vm878, %v787
      %882 = vst.msk [vmem:[#allocation2 + $0x58] sm:$0xff] %vm878, %v789
      %883 = vst.msk [vmem:[#allocation2 + $0x60] sm:$0xff] %vm878, %v791
      %884 = vst.msk [vmem:[#allocation2 + $0x68] sm:$0xff] %vm878, %v793
      %885 = vst.msk [vmem:[#allocation2 + $0x70] sm:$0xff] %vm878, %v795
      %886 = vst.msk [vmem:[#allocation2 + $0x78] sm:$0xff] %vm878, %v797
      %887 = vst.msk [vmem:[#allocation2 + $0x80] sm:$0xff] %vm878, %v799
      %888 = vst.msk [vmem:[#allocation2 + $0x88] sm:$0xff] %vm878, %v801
      %889 = vst.msk [vmem:[#allocation2 + $0x90] sm:$0xff] %vm878, %v803
      %890 = vst.msk [vmem:[#allocation2 + $0x98] sm:$0xff] %vm878, %v805
      %891 = vst.msk [vmem:[#allocation2 + $0xa0] sm:$0xff] %vm878, %v807
      %892 = vst.msk [vmem:[#allocation2 + $0xa8] sm:$0xff] %vm878, %v809
      %893 = vst.msk [vmem:[#allocation2 + $0xb0] sm:$0xff] %vm878, %v811
      %894 = vst.msk [vmem:[#allocation2 + $0xb8] sm:$0xff] %vm878, %v813
      %895 = vst.msk [vmem:[#allocation2 + $0xc0] sm:$0xff] %vm878, %v815
      %896 = vst.msk [vmem:[#allocation2 + $0xc8] sm:$0xff] %vm878, %v817
      %897 = vst.msk [vmem:[#allocation2 + $0xd0] sm:$0xff] %vm878, %v819
      %898 = vst.msk [vmem:[#allocation2 + $0xd8] sm:$0xff] %vm878, %v821
      %899 = vst.msk [vmem:[#allocation2 + $0xe0] sm:$0xff] %vm878, %v823
      %900 = vst.msk [vmem:[#allocation2 + $0xe8] sm:$0xff] %vm878, %v825
      %901 = vst.msk [vmem:[#allocation2 + $0xf0] sm:$0xff] %vm878, %v827
      %902 = vst.msk [vmem:[#allocation2 + $0xf8] sm:$0xff] %vm878, %v829
      %903 = vst.msk [vmem:[#allocation2 + $0x100] sm:$0xff] %vm878, %v831
      %904 = vst.msk [vmem:[#allocation2 + $0x108] sm:$0xff] %vm878, %v833
      %905 = vst.msk [vmem:[#allocation2 + $0x110] sm:$0xff] %vm878, %v835
      %906 = vst.msk [vmem:[#allocation2 + $0x118] sm:$0xff] %vm878, %v837
      %907 = vst.msk [vmem:[#allocation2 + $0x120] sm:$0xff] %vm878, %v839
      %908 = vst.msk [vmem:[#allocation2 + $0x128] sm:$0xff] %vm878, %v841
      %909 = vst.msk [vmem:[#allocation2 + $0x130] sm:$0xff] %vm878, %v843
      %910 = vst.msk [vmem:[#allocation2 + $0x138] sm:$0xff] %vm878, %v845
      %911 = vrot.lane.b32.xlu0 %v542, 24
      %v912 = vpop.permute.xlu0 %911
      %913 = vrot.lane.b32.xlu0 %v543, 24
      %v914 = vpop.permute.xlu0 %913
      %915 = vrot.lane.b32.xlu0 %v544, 24
      %v916 = vpop.permute.xlu0 %915
      %917 = vrot.lane.b32.xlu0 %v545, 24
      %v918 = vpop.permute.xlu0 %917
      %919 = vrot.lane.b32.xlu0 %v546, 24
      %v920 = vpop.permute.xlu0 %919
      %921 = vrot.lane.b32.xlu0 %v547, 24
      %v922 = vpop.permute.xlu0 %921
      %923 = vrot.lane.b32.xlu0 %v548, 24
      %v924 = vpop.permute.xlu0 %923
      %925 = vrot.lane.b32.xlu0 %v549, 24
      %v926 = vpop.permute.xlu0 %925
      %927 = vrot.lane.b32.xlu0 %v550, 24
      %v928 = vpop.permute.xlu0 %927
      %929 = vrot.lane.b32.xlu0 %v551, 24
      %v930 = vpop.permute.xlu0 %929
      %931 = vrot.lane.b32.xlu0 %v552, 24
      %v932 = vpop.permute.xlu0 %931
      %933 = vrot.lane.b32.xlu0 %v553, 24
      %v934 = vpop.permute.xlu0 %933
      %935 = vrot.lane.b32.xlu0 %v554, 24
      %v936 = vpop.permute.xlu0 %935
      %937 = vrot.lane.b32.xlu0 %v555, 24
      %v938 = vpop.permute.xlu0 %937
      %939 = vrot.lane.b32.xlu0 %v556, 24
      %v940 = vpop.permute.xlu0 %939
      %941 = vrot.lane.b32.xlu0 %v557, 24
      %v942 = vpop.permute.xlu0 %941
      %943 = vrot.lane.b32.xlu0 %v558, 24
      %v944 = vpop.permute.xlu0 %943
      %945 = vrot.lane.b32.xlu0 %v559, 24
      %v946 = vpop.permute.xlu0 %945
      %947 = vrot.lane.b32.xlu0 %v560, 24
      %v948 = vpop.permute.xlu0 %947
      %949 = vrot.lane.b32.xlu0 %v561, 24
      %v950 = vpop.permute.xlu0 %949
      %951 = vrot.lane.b32.xlu0 %v562, 24
      %v952 = vpop.permute.xlu0 %951
      %953 = vrot.lane.b32.xlu0 %v563, 24
      %v954 = vpop.permute.xlu0 %953
      %955 = vrot.lane.b32.xlu0 %v564, 24
      %v956 = vpop.permute.xlu0 %955
      %957 = vrot.lane.b32.xlu0 %v565, 24
      %v958 = vpop.permute.xlu0 %957
      %959 = vrot.lane.b32.xlu0 %v566, 24
      %v960 = vpop.permute.xlu0 %959
      %961 = vrot.lane.b32.xlu0 %v567, 24
      %v962 = vpop.permute.xlu0 %961
      %963 = vrot.lane.b32.xlu0 %v568, 24
      %v964 = vpop.permute.xlu0 %963
      %965 = vrot.lane.b32.xlu0 %v569, 24
      %v966 = vpop.permute.xlu0 %965
      %967 = vrot.lane.b32.xlu0 %v570, 24
      %v968 = vpop.permute.xlu0 %967
      %969 = vrot.lane.b32.xlu0 %v571, 24
      %v970 = vpop.permute.xlu0 %969
      %971 = vrot.lane.b32.xlu0 %v572, 24
      %v972 = vpop.permute.xlu0 %971
      %973 = vrot.lane.b32.xlu0 %v573, 24
      %v974 = vpop.permute.xlu0 %973
      %vm1007 = vcmask 261312
      %1008 = vst.msk [vmem:[#allocation2 + $0x30] sm:$0xff] %vm1007, %v912
      %1009 = vst.msk [vmem:[#allocation2 + $0x38] sm:$0xff] %vm1007, %v914
      %1010 = vst.msk [vmem:[#allocation2 + $0x40] sm:$0xff] %vm1007, %v916
      %1011 = vst.msk [vmem:[#allocation2 + $0x48] sm:$0xff] %vm1007, %v918
      %1012 = vst.msk [vmem:[#allocation2 + $0x50] sm:$0xff] %vm1007, %v920
      %1013 = vst.msk [vmem:[#allocation2 + $0x58] sm:$0xff] %vm1007, %v922
      %1014 = vst.msk [vmem:[#allocation2 + $0x60] sm:$0xff] %vm1007, %v924
      %1015 = vst.msk [vmem:[#allocation2 + $0x68] sm:$0xff] %vm1007, %v926
      %1016 = vst.msk [vmem:[#allocation2 + $0x70] sm:$0xff] %vm1007, %v928
      %1017 = vst.msk [vmem:[#allocation2 + $0x78] sm:$0xff] %vm1007, %v930
      %1018 = vst.msk [vmem:[#allocation2 + $0x80] sm:$0xff] %vm1007, %v932
      %1019 = vst.msk [vmem:[#allocation2 + $0x88] sm:$0xff] %vm1007, %v934
      %1020 = vst.msk [vmem:[#allocation2 + $0x90] sm:$0xff] %vm1007, %v936
      %1021 = vst.msk [vmem:[#allocation2 + $0x98] sm:$0xff] %vm1007, %v938
      %1022 = vst.msk [vmem:[#allocation2 + $0xa0] sm:$0xff] %vm1007, %v940
      %1023 = vst.msk [vmem:[#allocation2 + $0xa8] sm:$0xff] %vm1007, %v942
      %1024 = vst.msk [vmem:[#allocation2 + $0xb0] sm:$0xff] %vm1007, %v944
      %1025 = vst.msk [vmem:[#allocation2 + $0xb8] sm:$0xff] %vm1007, %v946
      %1026 = vst.msk [vmem:[#allocation2 + $0xc0] sm:$0xff] %vm1007, %v948
      %1027 = vst.msk [vmem:[#allocation2 + $0xc8] sm:$0xff] %vm1007, %v950
      %1028 = vst.msk [vmem:[#allocation2 + $0xd0] sm:$0xff] %vm1007, %v952
      %1029 = vst.msk [vmem:[#allocation2 + $0xd8] sm:$0xff] %vm1007, %v954
      %1030 = vst.msk [vmem:[#allocation2 + $0xe0] sm:$0xff] %vm1007, %v956
      %1031 = vst.msk [vmem:[#allocation2 + $0xe8] sm:$0xff] %vm1007, %v958
      %1032 = vst.msk [vmem:[#allocation2 + $0xf0] sm:$0xff] %vm1007, %v960
      %1033 = vst.msk [vmem:[#allocation2 + $0xf8] sm:$0xff] %vm1007, %v962
      %1034 = vst.msk [vmem:[#allocation2 + $0x100] sm:$0xff] %vm1007, %v964
      %1035 = vst.msk [vmem:[#allocation2 + $0x108] sm:$0xff] %vm1007, %v966
      %1036 = vst.msk [vmem:[#allocation2 + $0x110] sm:$0xff] %vm1007, %v968
      %1037 = vst.msk [vmem:[#allocation2 + $0x118] sm:$0xff] %vm1007, %v970
      %1038 = vst.msk [vmem:[#allocation2 + $0x120] sm:$0xff] %vm1007, %v972
      %1039 = vst.msk [vmem:[#allocation2 + $0x128] sm:$0xff] %vm1007, %v974
      %1040 = vrot.lane.b32.xlu0 %v542, 32
      %v1041 = vpop.permute.xlu0 %1040
      %1042 = vrot.lane.b32.xlu0 %v543, 32
      %v1043 = vpop.permute.xlu0 %1042
      %1044 = vrot.lane.b32.xlu0 %v544, 32
      %v1045 = vpop.permute.xlu0 %1044
      %1046 = vrot.lane.b32.xlu0 %v545, 32
      %v1047 = vpop.permute.xlu0 %1046
      %1048 = vrot.lane.b32.xlu0 %v546, 32
      %v1049 = vpop.permute.xlu0 %1048
      %1050 = vrot.lane.b32.xlu0 %v547, 32
      %v1051 = vpop.permute.xlu0 %1050
      %1052 = vrot.lane.b32.xlu0 %v548, 32
      %v1053 = vpop.permute.xlu0 %1052
      %1054 = vrot.lane.b32.xlu0 %v549, 32
      %v1055 = vpop.permute.xlu0 %1054
      %1056 = vrot.lane.b32.xlu0 %v550, 32
      %v1057 = vpop.permute.xlu0 %1056
      %1058 = vrot.lane.b32.xlu0 %v551, 32
      %v1059 = vpop.permute.xlu0 %1058
      %1060 = vrot.lane.b32.xlu0 %v552, 32
      %v1061 = vpop.permute.xlu0 %1060
      %1062 = vrot.lane.b32.xlu0 %v553, 32
      %v1063 = vpop.permute.xlu0 %1062
      %1064 = vrot.lane.b32.xlu0 %v554, 32
      %v1065 = vpop.permute.xlu0 %1064
      %1066 = vrot.lane.b32.xlu0 %v555, 32
      %v1067 = vpop.permute.xlu0 %1066
      %1068 = vrot.lane.b32.xlu0 %v556, 32
      %v1069 = vpop.permute.xlu0 %1068
      %1070 = vrot.lane.b32.xlu0 %v557, 32
      %v1071 = vpop.permute.xlu0 %1070
      %1072 = vrot.lane.b32.xlu0 %v558, 32
      %v1073 = vpop.permute.xlu0 %1072
      %1074 = vrot.lane.b32.xlu0 %v559, 32
      %v1075 = vpop.permute.xlu0 %1074
      %1076 = vrot.lane.b32.xlu0 %v560, 32
      %v1077 = vpop.permute.xlu0 %1076
      %1078 = vrot.lane.b32.xlu0 %v561, 32
      %v1079 = vpop.permute.xlu0 %1078
      %1080 = vrot.lane.b32.xlu0 %v562, 32
      %v1081 = vpop.permute.xlu0 %1080
      %1082 = vrot.lane.b32.xlu0 %v563, 32
      %v1083 = vpop.permute.xlu0 %1082
      %1084 = vrot.lane.b32.xlu0 %v564, 32
      %v1085 = vpop.permute.xlu0 %1084
      %1086 = vrot.lane.b32.xlu0 %v565, 32
      %v1087 = vpop.permute.xlu0 %1086
      %1088 = vrot.lane.b32.xlu0 %v566, 32
      %v1089 = vpop.permute.xlu0 %1088
      %1090 = vrot.lane.b32.xlu0 %v567, 32
      %v1091 = vpop.permute.xlu0 %1090
      %1092 = vrot.lane.b32.xlu0 %v568, 32
      %v1093 = vpop.permute.xlu0 %1092
      %1094 = vrot.lane.b32.xlu0 %v569, 32
      %v1095 = vpop.permute.xlu0 %1094
      %1096 = vrot.lane.b32.xlu0 %v570, 32
      %v1097 = vpop.permute.xlu0 %1096
      %1098 = vrot.lane.b32.xlu0 %v571, 32
      %v1099 = vpop.permute.xlu0 %1098
      %1100 = vrot.lane.b32.xlu0 %v572, 32
      %v1101 = vpop.permute.xlu0 %1100
      %1102 = vrot.lane.b32.xlu0 %v573, 32
      %v1103 = vpop.permute.xlu0 %1102
      %vm1136 = vcmask 326912
      %1137 = vst.msk [vmem:[#allocation2 + $0x20] sm:$0xff] %vm1136, %v1041
      %1138 = vst.msk [vmem:[#allocation2 + $0x28] sm:$0xff] %vm1136, %v1043
      %1139 = vst.msk [vmem:[#allocation2 + $0x30] sm:$0xff] %vm1136, %v1045
      %1140 = vst.msk [vmem:[#allocation2 + $0x38] sm:$0xff] %vm1136, %v1047
      %1141 = vst.msk [vmem:[#allocation2 + $0x40] sm:$0xff] %vm1136, %v1049
      %1142 = vst.msk [vmem:[#allocation2 + $0x48] sm:$0xff] %vm1136, %v1051
      %1143 = vst.msk [vmem:[#allocation2 + $0x50] sm:$0xff] %vm1136, %v1053
      %1144 = vst.msk [vmem:[#allocation2 + $0x58] sm:$0xff] %vm1136, %v1055
      %1145 = vst.msk [vmem:[#allocation2 + $0x60] sm:$0xff] %vm1136, %v1057
      %1146 = vst.msk [vmem:[#allocation2 + $0x68] sm:$0xff] %vm1136, %v1059
      %1147 = vst.msk [vmem:[#allocation2 + $0x70] sm:$0xff] %vm1136, %v1061
      %1148 = vst.msk [vmem:[#allocation2 + $0x78] sm:$0xff] %vm1136, %v1063
      %1149 = vst.msk [vmem:[#allocation2 + $0x80] sm:$0xff] %vm1136, %v1065
      %1150 = vst.msk [vmem:[#allocation2 + $0x88] sm:$0xff] %vm1136, %v1067
      %1151 = vst.msk [vmem:[#allocation2 + $0x90] sm:$0xff] %vm1136, %v1069
      %1152 = vst.msk [vmem:[#allocation2 + $0x98] sm:$0xff] %vm1136, %v1071
      %1153 = vst.msk [vmem:[#allocation2 + $0xa0] sm:$0xff] %vm1136, %v1073
      %1154 = vst.msk [vmem:[#allocation2 + $0xa8] sm:$0xff] %vm1136, %v1075
      %1155 = vst.msk [vmem:[#allocation2 + $0xb0] sm:$0xff] %vm1136, %v1077
      %1156 = vst.msk [vmem:[#allocation2 + $0xb8] sm:$0xff] %vm1136, %v1079
      %1157 = vst.msk [vmem:[#allocation2 + $0xc0] sm:$0xff] %vm1136, %v1081
      %1158 = vst.msk [vmem:[#allocation2 + $0xc8] sm:$0xff] %vm1136, %v1083
      %1159 = vst.msk [vmem:[#allocation2 + $0xd0] sm:$0xff] %vm1136, %v1085
      %1160 = vst.msk [vmem:[#allocation2 + $0xd8] sm:$0xff] %vm1136, %v1087
      %1161 = vst.msk [vmem:[#allocation2 + $0xe0] sm:$0xff] %vm1136, %v1089
      %1162 = vst.msk [vmem:[#allocation2 + $0xe8] sm:$0xff] %vm1136, %v1091
      %1163 = vst.msk [vmem:[#allocation2 + $0xf0] sm:$0xff] %vm1136, %v1093
      %1164 = vst.msk [vmem:[#allocation2 + $0xf8] sm:$0xff] %vm1136, %v1095
      %1165 = vst.msk [vmem:[#allocation2 + $0x100] sm:$0xff] %vm1136, %v1097
      %1166 = vst.msk [vmem:[#allocation2 + $0x108] sm:$0xff] %vm1136, %v1099
      %1167 = vst.msk [vmem:[#allocation2 + $0x110] sm:$0xff] %vm1136, %v1101
      %1168 = vst.msk [vmem:[#allocation2 + $0x118] sm:$0xff] %vm1136, %v1103
      %1169 = vrot.lane.b32.xlu0 %v542, 40
      %v1170 = vpop.permute.xlu0 %1169
      %1171 = vrot.lane.b32.xlu0 %v543, 40
      %v1172 = vpop.permute.xlu0 %1171
      %1173 = vrot.lane.b32.xlu0 %v544, 40
      %v1174 = vpop.permute.xlu0 %1173
      %1175 = vrot.lane.b32.xlu0 %v545, 40
      %v1176 = vpop.permute.xlu0 %1175
      %1177 = vrot.lane.b32.xlu0 %v546, 40
      %v1178 = vpop.permute.xlu0 %1177
      %1179 = vrot.lane.b32.xlu0 %v547, 40
      %v1180 = vpop.permute.xlu0 %1179
      %1181 = vrot.lane.b32.xlu0 %v548, 40
      %v1182 = vpop.permute.xlu0 %1181
      %1183 = vrot.lane.b32.xlu0 %v549, 40
      %v1184 = vpop.permute.xlu0 %1183
      %1185 = vrot.lane.b32.xlu0 %v550, 40
      %v1186 = vpop.permute.xlu0 %1185
      %1187 = vrot.lane.b32.xlu0 %v551, 40
      %v1188 = vpop.permute.xlu0 %1187
      %1189 = vrot.lane.b32.xlu0 %v552, 40
      %v1190 = vpop.permute.xlu0 %1189
      %1191 = vrot.lane.b32.xlu0 %v553, 40
      %v1192 = vpop.permute.xlu0 %1191
      %1193 = vrot.lane.b32.xlu0 %v554, 40
      %v1194 = vpop.permute.xlu0 %1193
      %1195 = vrot.lane.b32.xlu0 %v555, 40
      %v1196 = vpop.permute.xlu0 %1195
      %1197 = vrot.lane.b32.xlu0 %v556, 40
      %v1198 = vpop.permute.xlu0 %1197
      %1199 = vrot.lane.b32.xlu0 %v557, 40
      %v1200 = vpop.permute.xlu0 %1199
      %1201 = vrot.lane.b32.xlu0 %v558, 40
      %v1202 = vpop.permute.xlu0 %1201
      %1203 = vrot.lane.b32.xlu0 %v559, 40
      %v1204 = vpop.permute.xlu0 %1203
      %1205 = vrot.lane.b32.xlu0 %v560, 40
      %v1206 = vpop.permute.xlu0 %1205
      %1207 = vrot.lane.b32.xlu0 %v561, 40
      %v1208 = vpop.permute.xlu0 %1207
      %1209 = vrot.lane.b32.xlu0 %v562, 40
      %v1210 = vpop.permute.xlu0 %1209
      %1211 = vrot.lane.b32.xlu0 %v563, 40
      %v1212 = vpop.permute.xlu0 %1211
      %1213 = vrot.lane.b32.xlu0 %v564, 40
      %v1214 = vpop.permute.xlu0 %1213
      %1215 = vrot.lane.b32.xlu0 %v565, 40
      %v1216 = vpop.permute.xlu0 %1215
      %1217 = vrot.lane.b32.xlu0 %v566, 40
      %v1218 = vpop.permute.xlu0 %1217
      %1219 = vrot.lane.b32.xlu0 %v567, 40
      %v1220 = vpop.permute.xlu0 %1219
      %1221 = vrot.lane.b32.xlu0 %v568, 40
      %v1222 = vpop.permute.xlu0 %1221
      %1223 = vrot.lane.b32.xlu0 %v569, 40
      %v1224 = vpop.permute.xlu0 %1223
      %1225 = vrot.lane.b32.xlu0 %v570, 40
      %v1226 = vpop.permute.xlu0 %1225
      %1227 = vrot.lane.b32.xlu0 %v571, 40
      %v1228 = vpop.permute.xlu0 %1227
      %1229 = vrot.lane.b32.xlu0 %v572, 40
      %v1230 = vpop.permute.xlu0 %1229
      %1231 = vrot.lane.b32.xlu0 %v573, 40
      %v1232 = vpop.permute.xlu0 %1231
      %vm1265 = vcmask 392512
      %1266 = vst.msk [vmem:[#allocation2 + $0x10] sm:$0xff] %vm1265, %v1170
      %1267 = vst.msk [vmem:[#allocation2 + $0x18] sm:$0xff] %vm1265, %v1172
      %1268 = vst.msk [vmem:[#allocation2 + $0x20] sm:$0xff] %vm1265, %v1174
      %1269 = vst.msk [vmem:[#allocation2 + $0x28] sm:$0xff] %vm1265, %v1176
      %1270 = vst.msk [vmem:[#allocation2 + $0x30] sm:$0xff] %vm1265, %v1178
      %1271 = vst.msk [vmem:[#allocation2 + $0x38] sm:$0xff] %vm1265, %v1180
      %1272 = vst.msk [vmem:[#allocation2 + $0x40] sm:$0xff] %vm1265, %v1182
      %1273 = vst.msk [vmem:[#allocation2 + $0x48] sm:$0xff] %vm1265, %v1184
      %1274 = vst.msk [vmem:[#allocation2 + $0x50] sm:$0xff] %vm1265, %v1186
      %1275 = vst.msk [vmem:[#allocation2 + $0x58] sm:$0xff] %vm1265, %v1188
      %1276 = vst.msk [vmem:[#allocation2 + $0x60] sm:$0xff] %vm1265, %v1190
      %1277 = vst.msk [vmem:[#allocation2 + $0x68] sm:$0xff] %vm1265, %v1192
      %1278 = vst.msk [vmem:[#allocation2 + $0x70] sm:$0xff] %vm1265, %v1194
      %1279 = vst.msk [vmem:[#allocation2 + $0x78] sm:$0xff] %vm1265, %v1196
      %1280 = vst.msk [vmem:[#allocation2 + $0x80] sm:$0xff] %vm1265, %v1198
      %1281 = vst.msk [vmem:[#allocation2 + $0x88] sm:$0xff] %vm1265, %v1200
      %1282 = vst.msk [vmem:[#allocation2 + $0x90] sm:$0xff] %vm1265, %v1202
      %1283 = vst.msk [vmem:[#allocation2 + $0x98] sm:$0xff] %vm1265, %v1204
      %1284 = vst.msk [vmem:[#allocation2 + $0xa0] sm:$0xff] %vm1265, %v1206
      %1285 = vst.msk [vmem:[#allocation2 + $0xa8] sm:$0xff] %vm1265, %v1208
      %1286 = vst.msk [vmem:[#allocation2 + $0xb0] sm:$0xff] %vm1265, %v1210
      %1287 = vst.msk [vmem:[#allocation2 + $0xb8] sm:$0xff] %vm1265, %v1212
      %1288 = vst.msk [vmem:[#allocation2 + $0xc0] sm:$0xff] %vm1265, %v1214
      %1289 = vst.msk [vmem:[#allocation2 + $0xc8] sm:$0xff] %vm1265, %v1216
      %1290 = vst.msk [vmem:[#allocation2 + $0xd0] sm:$0xff] %vm1265, %v1218
      %1291 = vst.msk [vmem:[#allocation2 + $0xd8] sm:$0xff] %vm1265, %v1220
      %1292 = vst.msk [vmem:[#allocation2 + $0xe0] sm:$0xff] %vm1265, %v1222
      %1293 = vst.msk [vmem:[#allocation2 + $0xe8] sm:$0xff] %vm1265, %v1224
      %1294 = vst.msk [vmem:[#allocation2 + $0xf0] sm:$0xff] %vm1265, %v1226
      %1295 = vst.msk [vmem:[#allocation2 + $0xf8] sm:$0xff] %vm1265, %v1228
      %1296 = vst.msk [vmem:[#allocation2 + $0x100] sm:$0xff] %vm1265, %v1230
      %1297 = vst.msk [vmem:[#allocation2 + $0x108] sm:$0xff] %vm1265, %v1232
      %1298 = vrot.lane.b32.xlu0 %v542, 48
      %v1299 = vpop.permute.xlu0 %1298
      %1300 = vrot.lane.b32.xlu0 %v543, 48
      %v1301 = vpop.permute.xlu0 %1300
      %1302 = vrot.lane.b32.xlu0 %v544, 48
      %v1303 = vpop.permute.xlu0 %1302
      %1304 = vrot.lane.b32.xlu0 %v545, 48
      %v1305 = vpop.permute.xlu0 %1304
      %1306 = vrot.lane.b32.xlu0 %v546, 48
      %v1307 = vpop.permute.xlu0 %1306
      %1308 = vrot.lane.b32.xlu0 %v547, 48
      %v1309 = vpop.permute.xlu0 %1308
      %1310 = vrot.lane.b32.xlu0 %v548, 48
      %v1311 = vpop.permute.xlu0 %1310
      %1312 = vrot.lane.b32.xlu0 %v549, 48
      %v1313 = vpop.permute.xlu0 %1312
      %1314 = vrot.lane.b32.xlu0 %v550, 48
      %v1315 = vpop.permute.xlu0 %1314
      %1316 = vrot.lane.b32.xlu0 %v551, 48
      %v1317 = vpop.permute.xlu0 %1316
      %1318 = vrot.lane.b32.xlu0 %v552, 48
      %v1319 = vpop.permute.xlu0 %1318
      %1320 = vrot.lane.b32.xlu0 %v553, 48
      %v1321 = vpop.permute.xlu0 %1320
      %1322 = vrot.lane.b32.xlu0 %v554, 48
      %v1323 = vpop.permute.xlu0 %1322
      %1324 = vrot.lane.b32.xlu0 %v555, 48
      %v1325 = vpop.permute.xlu0 %1324
      %1326 = vrot.lane.b32.xlu0 %v556, 48
      %v1327 = vpop.permute.xlu0 %1326
      %1328 = vrot.lane.b32.xlu0 %v557, 48
      %v1329 = vpop.permute.xlu0 %1328
      %1330 = vrot.lane.b32.xlu0 %v558, 48
      %v1331 = vpop.permute.xlu0 %1330
      %1332 = vrot.lane.b32.xlu0 %v559, 48
      %v1333 = vpop.permute.xlu0 %1332
      %1334 = vrot.lane.b32.xlu0 %v560, 48
      %v1335 = vpop.permute.xlu0 %1334
      %1336 = vrot.lane.b32.xlu0 %v561, 48
      %v1337 = vpop.permute.xlu0 %1336
      %1338 = vrot.lane.b32.xlu0 %v562, 48
      %v1339 = vpop.permute.xlu0 %1338
      %1340 = vrot.lane.b32.xlu0 %v563, 48
      %v1341 = vpop.permute.xlu0 %1340
      %1342 = vrot.lane.b32.xlu0 %v564, 48
      %v1343 = vpop.permute.xlu0 %1342
      %1344 = vrot.lane.b32.xlu0 %v565, 48
      %v1345 = vpop.permute.xlu0 %1344
      %1346 = vrot.lane.b32.xlu0 %v566, 48
      %v1347 = vpop.permute.xlu0 %1346
      %1348 = vrot.lane.b32.xlu0 %v567, 48
      %v1349 = vpop.permute.xlu0 %1348
      %1350 = vrot.lane.b32.xlu0 %v568, 48
      %v1351 = vpop.permute.xlu0 %1350
      %1352 = vrot.lane.b32.xlu0 %v569, 48
      %v1353 = vpop.permute.xlu0 %1352
      %1354 = vrot.lane.b32.xlu0 %v570, 48
      %v1355 = vpop.permute.xlu0 %1354
      %1356 = vrot.lane.b32.xlu0 %v571, 48
      %v1357 = vpop.permute.xlu0 %1356
      %1358 = vrot.lane.b32.xlu0 %v572, 48
      %v1359 = vpop.permute.xlu0 %1358
      %1360 = vrot.lane.b32.xlu0 %v573, 48
      %v1361 = vpop.permute.xlu0 %1360
      %vm1394 = vcmask 458112
      %1395 = vst.msk [vmem:[#allocation2] sm:$0xff] %vm1394, %v1299
      %1396 = vst.msk [vmem:[#allocation2 + $0x8] sm:$0xff] %vm1394, %v1301
      %1397 = vst.msk [vmem:[#allocation2 + $0x10] sm:$0xff] %vm1394, %v1303
      %1398 = vst.msk [vmem:[#allocation2 + $0x18] sm:$0xff] %vm1394, %v1305
      %1399 = vst.msk [vmem:[#allocation2 + $0x20] sm:$0xff] %vm1394, %v1307
      %1400 = vst.msk [vmem:[#allocation2 + $0x28] sm:$0xff] %vm1394, %v1309
      %1401 = vst.msk [vmem:[#allocation2 + $0x30] sm:$0xff] %vm1394, %v1311
      %1402 = vst.msk [vmem:[#allocation2 + $0x38] sm:$0xff] %vm1394, %v1313
      %1403 = vst.msk [vmem:[#allocation2 + $0x40] sm:$0xff] %vm1394, %v1315
      %1404 = vst.msk [vmem:[#allocation2 + $0x48] sm:$0xff] %vm1394, %v1317
      %1405 = vst.msk [vmem:[#allocation2 + $0x50] sm:$0xff] %vm1394, %v1319
      %1406 = vst.msk [vmem:[#allocation2 + $0x58] sm:$0xff] %vm1394, %v1321
      %1407 = vst.msk [vmem:[#allocation2 + $0x60] sm:$0xff] %vm1394, %v1323
      %1408 = vst.msk [vmem:[#allocation2 + $0x68] sm:$0xff] %vm1394, %v1325
      %1409 = vst.msk [vmem:[#allocation2 + $0x70] sm:$0xff] %vm1394, %v1327
      %1410 = vst.msk [vmem:[#allocation2 + $0x78] sm:$0xff] %vm1394, %v1329
      %1411 = vst.msk [vmem:[#allocation2 + $0x80] sm:$0xff] %vm1394, %v1331
      %1412 = vst.msk [vmem:[#allocation2 + $0x88] sm:$0xff] %vm1394, %v1333
      %1413 = vst.msk [vmem:[#allocation2 + $0x90] sm:$0xff] %vm1394, %v1335
      %1414 = vst.msk [vmem:[#allocation2 + $0x98] sm:$0xff] %vm1394, %v1337
      %1415 = vst.msk [vmem:[#allocation2 + $0xa0] sm:$0xff] %vm1394, %v1339
      %1416 = vst.msk [vmem:[#allocation2 + $0xa8] sm:$0xff] %vm1394, %v1341
      %1417 = vst.msk [vmem:[#allocation2 + $0xb0] sm:$0xff] %vm1394, %v1343
      %1418 = vst.msk [vmem:[#allocation2 + $0xb8] sm:$0xff] %vm1394, %v1345
      %1419 = vst.msk [vmem:[#allocation2 + $0xc0] sm:$0xff] %vm1394, %v1347
      %1420 = vst.msk [vmem:[#allocation2 + $0xc8] sm:$0xff] %vm1394, %v1349
      %1421 = vst.msk [vmem:[#allocation2 + $0xd0] sm:$0xff] %vm1394, %v1351
      %1422 = vst.msk [vmem:[#allocation2 + $0xd8] sm:$0xff] %vm1394, %v1353
      %1423 = vst.msk [vmem:[#allocation2 + $0xe0] sm:$0xff] %vm1394, %v1355
      %1424 = vst.msk [vmem:[#allocation2 + $0xe8] sm:$0xff] %vm1394, %v1357
      %1425 = vst.msk [vmem:[#allocation2 + $0xf0] sm:$0xff] %vm1394, %v1359
      %1426 = vst.msk [vmem:[#allocation2 + $0xf8] sm:$0xff] %vm1394, %v1361
      %v1427 = vlaneseq
      %v1428 = vshrl.u32 %v1427, 7
      %v1429 = vadd.s32 %v1428, 8
      %v1430 = vadd.s32 %v1428, 16
      %v1431 = vadd.s32 %v1428, 24
      %v1432 = vadd.s32 %v1428, 32
      %v1433 = vadd.s32 %v1428, 40
      %v1434 = vadd.s32 %v1428, 48
      %v1435 = vadd.s32 %v1428, 56
      %v1436 = vadd.s32 %v1428, 64
      %v1437 = vadd.s32 %v1428, 72
      %v1438 = vadd.s32 %v1428, 80
      %v1439 = vadd.s32 %v1428, 88
      %v1440 = vadd.s32 %v1428, 96
      %v1441 = vadd.s32 %v1428, 104
      %v1442 = vadd.s32 %v1428, 112
      %v1443 = vadd.s32 %v1428, 120
      %v1444 = vadd.s32 %v1428, 128
      %v1445 = vadd.s32 %v1428, 136
      %v1446 = vadd.s32 %v1428, 144
      %v1447 = vadd.s32 %v1428, 152
      %v1448 = vadd.s32 %v1428, 160
      %v1449 = vadd.s32 %v1428, 168
      %v1450 = vadd.s32 %v1428, 176
      %v1451 = vadd.s32 %v1428, 184
      %v1452 = vadd.s32 %v1428, 192
      %v1453 = vadd.s32 %v1428, 200
      %v1454 = vadd.s32 %v1428, 208
      %v1455 = vadd.s32 %v1428, 216
      %v1456 = vadd.s32 %v1428, 224
      %v1457 = vadd.s32 %v1428, 232
      %v1458 = vadd.s32 %v1428, 240
      %v1459 = vadd.s32 %v1428, 248
      %vm1460 = vcmp.lt.s32.totalorder %v1428, 0
      %v1461 = vsub.s32 0, %v1428
      %v1462 = vsel %vm1460, %v1461, %v1428
      %v1463 = vshrl.u32 %v1462, 4
      %v1464 = vand.u32 %v1462, 15
      %v1465 = vsub.s32 0, %v1464
      %v1466 = vsel %vm1460, %v1465, %v1464
      %vm1467 = vcmp.lt.s32.totalorder %v1429, 0
      %v1468 = vsub.s32 0, %v1429
      %v1469 = vsel %vm1467, %v1468, %v1429
      %v1470 = vshrl.u32 %v1469, 4
      %v1471 = vand.u32 %v1469, 15
      %v1472 = vsub.s32 0, %v1471
      %v1473 = vsel %vm1467, %v1472, %v1471
      %vm1474 = vcmp.lt.s32.totalorder %v1430, 0
      %v1475 = vsub.s32 0, %v1430
      %v1476 = vsel %vm1474, %v1475, %v1430
      %v1477 = vshrl.u32 %v1476, 4
      %v1478 = vand.u32 %v1476, 15
      %v1479 = vsub.s32 0, %v1478
      %v1480 = vsel %vm1474, %v1479, %v1478
      %vm1481 = vcmp.lt.s32.totalorder %v1431, 0
      %v1482 = vsub.s32 0, %v1431
      %v1483 = vsel %vm1481, %v1482, %v1431
      %v1484 = vshrl.u32 %v1483, 4
      %v1485 = vand.u32 %v1483, 15
      %v1486 = vsub.s32 0, %v1485
      %v1487 = vsel %vm1481, %v1486, %v1485
      %vm1488 = vcmp.lt.s32.totalorder %v1432, 0
      %v1489 = vsub.s32 0, %v1432
      %v1490 = vsel %vm1488, %v1489, %v1432
      %v1491 = vshrl.u32 %v1490, 4
      %v1492 = vand.u32 %v1490, 15
      %v1493 = vsub.s32 0, %v1492
      %v1494 = vsel %vm1488, %v1493, %v1492
      %vm1495 = vcmp.lt.s32.totalorder %v1433, 0
      %v1496 = vsub.s32 0, %v1433
      %v1497 = vsel %vm1495, %v1496, %v1433
      %v1498 = vshrl.u32 %v1497, 4
      %v1499 = vand.u32 %v1497, 15
      %v1500 = vsub.s32 0, %v1499
      %v1501 = vsel %vm1495, %v1500, %v1499
      %vm1502 = vcmp.lt.s32.totalorder %v1434, 0
      %v1503 = vsub.s32 0, %v1434
      %v1504 = vsel %vm1502, %v1503, %v1434
      %v1505 = vshrl.u32 %v1504, 4
      %v1506 = vand.u32 %v1504, 15
      %v1507 = vsub.s32 0, %v1506
      %v1508 = vsel %vm1502, %v1507, %v1506
      %vm1509 = vcmp.lt.s32.totalorder %v1435, 0
      %v1510 = vsub.s32 0, %v1435
      %v1511 = vsel %vm1509, %v1510, %v1435
      %v1512 = vshrl.u32 %v1511, 4
      %v1513 = vand.u32 %v1511, 15
      %v1514 = vsub.s32 0, %v1513
      %v1515 = vsel %vm1509, %v1514, %v1513
      %vm1516 = vcmp.lt.s32.totalorder %v1436, 0
      %v1517 = vsub.s32 0, %v1436
      %v1518 = vsel %vm1516, %v1517, %v1436
      %v1519 = vshrl.u32 %v1518, 4
      %v1520 = vand.u32 %v1518, 15
      %v1521 = vsub.s32 0, %v1520
      %v1522 = vsel %vm1516, %v1521, %v1520
      %vm1523 = vcmp.lt.s32.totalorder %v1437, 0
      %v1524 = vsub.s32 0, %v1437
      %v1525 = vsel %vm1523, %v1524, %v1437
      %v1526 = vshrl.u32 %v1525, 4
      %v1527 = vand.u32 %v1525, 15
      %v1528 = vsub.s32 0, %v1527
      %v1529 = vsel %vm1523, %v1528, %v1527
      %vm1530 = vcmp.lt.s32.totalorder %v1438, 0
      %v1531 = vsub.s32 0, %v1438
      %v1532 = vsel %vm1530, %v1531, %v1438
      %v1533 = vshrl.u32 %v1532, 4
      %v1534 = vand.u32 %v1532, 15
      %v1535 = vsub.s32 0, %v1534
      %v1536 = vsel %vm1530, %v1535, %v1534
      %vm1537 = vcmp.lt.s32.totalorder %v1439, 0
      %v1538 = vsub.s32 0, %v1439
      %v1539 = vsel %vm1537, %v1538, %v1439
      %v1540 = vshrl.u32 %v1539, 4
      %v1541 = vand.u32 %v1539, 15
      %v1542 = vsub.s32 0, %v1541
      %v1543 = vsel %vm1537, %v1542, %v1541
      %vm1544 = vcmp.lt.s32.totalorder %v1440, 0
      %v1545 = vsub.s32 0, %v1440
      %v1546 = vsel %vm1544, %v1545, %v1440
      %v1547 = vshrl.u32 %v1546, 4
      %v1548 = vand.u32 %v1546, 15
      %v1549 = vsub.s32 0, %v1548
      %v1550 = vsel %vm1544, %v1549, %v1548
      %vm1551 = vcmp.lt.s32.totalorder %v1441, 0
      %v1552 = vsub.s32 0, %v1441
      %v1553 = vsel %vm1551, %v1552, %v1441
      %v1554 = vshrl.u32 %v1553, 4
      %v1555 = vand.u32 %v1553, 15
      %v1556 = vsub.s32 0, %v1555
      %v1557 = vsel %vm1551, %v1556, %v1555
      %vm1558 = vcmp.lt.s32.totalorder %v1442, 0
      %v1559 = vsub.s32 0, %v1442
      %v1560 = vsel %vm1558, %v1559, %v1442
      %v1561 = vshrl.u32 %v1560, 4
      %v1562 = vand.u32 %v1560, 15
      %v1563 = vsub.s32 0, %v1562
      %v1564 = vsel %vm1558, %v1563, %v1562
      %vm1565 = vcmp.lt.s32.totalorder %v1443, 0
      %v1566 = vsub.s32 0, %v1443
      %v1567 = vsel %vm1565, %v1566, %v1443
      %v1568 = vshrl.u32 %v1567, 4
      %v1569 = vand.u32 %v1567, 15
      %v1570 = vsub.s32 0, %v1569
      %v1571 = vsel %vm1565, %v1570, %v1569
      %vm1572 = vcmp.lt.s32.totalorder %v1444, 0
      %v1573 = vsub.s32 0, %v1444
      %v1574 = vsel %vm1572, %v1573, %v1444
      %v1575 = vshrl.u32 %v1574, 4
      %v1576 = vand.u32 %v1574, 15
      %v1577 = vsub.s32 0, %v1576
      %v1578 = vsel %vm1572, %v1577, %v1576
      %vm1579 = vcmp.lt.s32.totalorder %v1445, 0
      %v1580 = vsub.s32 0, %v1445
      %v1581 = vsel %vm1579, %v1580, %v1445
      %v1582 = vshrl.u32 %v1581, 4
      %v1583 = vand.u32 %v1581, 15
      %v1584 = vsub.s32 0, %v1583
      %v1585 = vsel %vm1579, %v1584, %v1583
      %vm1586 = vcmp.lt.s32.totalorder %v1446, 0
      %v1587 = vsub.s32 0, %v1446
      %v1588 = vsel %vm1586, %v1587, %v1446
      %v1589 = vshrl.u32 %v1588, 4
      %v1590 = vand.u32 %v1588, 15
      %v1591 = vsub.s32 0, %v1590
      %v1592 = vsel %vm1586, %v1591, %v1590
      %vm1593 = vcmp.lt.s32.totalorder %v1447, 0
      %v1594 = vsub.s32 0, %v1447
      %v1595 = vsel %vm1593, %v1594, %v1447
      %v1596 = vshrl.u32 %v1595, 4
      %v1597 = vand.u32 %v1595, 15
      %v1598 = vsub.s32 0, %v1597
      %v1599 = vsel %vm1593, %v1598, %v1597
      %vm1600 = vcmp.lt.s32.totalorder %v1448, 0
      %v1601 = vsub.s32 0, %v1448
      %v1602 = vsel %vm1600, %v1601, %v1448
      %v1603 = vshrl.u32 %v1602, 4
      %v1604 = vand.u32 %v1602, 15
      %v1605 = vsub.s32 0, %v1604
      %v1606 = vsel %vm1600, %v1605, %v1604
      %vm1607 = vcmp.lt.s32.totalorder %v1449, 0
      %v1608 = vsub.s32 0, %v1449
      %v1609 = vsel %vm1607, %v1608, %v1449
      %v1610 = vshrl.u32 %v1609, 4
      %v1611 = vand.u32 %v1609, 15
      %v1612 = vsub.s32 0, %v1611
      %v1613 = vsel %vm1607, %v1612, %v1611
      %vm1614 = vcmp.lt.s32.totalorder %v1450, 0
      %v1615 = vsub.s32 0, %v1450
      %v1616 = vsel %vm1614, %v1615, %v1450
      %v1617 = vshrl.u32 %v1616, 4
      %v1618 = vand.u32 %v1616, 15
      %v1619 = vsub.s32 0, %v1618
      %v1620 = vsel %vm1614, %v1619, %v1618
      %vm1621 = vcmp.lt.s32.totalorder %v1451, 0
      %v1622 = vsub.s32 0, %v1451
      %v1623 = vsel %vm1621, %v1622, %v1451
      %v1624 = vshrl.u32 %v1623, 4
      %v1625 = vand.u32 %v1623, 15
      %v1626 = vsub.s32 0, %v1625
      %v1627 = vsel %vm1621, %v1626, %v1625
      %vm1628 = vcmp.lt.s32.totalorder %v1452, 0
      %v1629 = vsub.s32 0, %v1452
      %v1630 = vsel %vm1628, %v1629, %v1452
      %v1631 = vshrl.u32 %v1630, 4
      %v1632 = vand.u32 %v1630, 15
      %v1633 = vsub.s32 0, %v1632
      %v1634 = vsel %vm1628, %v1633, %v1632
      %vm1635 = vcmp.lt.s32.totalorder %v1453, 0
      %v1636 = vsub.s32 0, %v1453
      %v1637 = vsel %vm1635, %v1636, %v1453
      %v1638 = vshrl.u32 %v1637, 4
      %v1639 = vand.u32 %v1637, 15
      %v1640 = vsub.s32 0, %v1639
      %v1641 = vsel %vm1635, %v1640, %v1639
      %vm1642 = vcmp.lt.s32.totalorder %v1454, 0
      %v1643 = vsub.s32 0, %v1454
      %v1644 = vsel %vm1642, %v1643, %v1454
      %v1645 = vshrl.u32 %v1644, 4
      %v1646 = vand.u32 %v1644, 15
      %v1647 = vsub.s32 0, %v1646
      %v1648 = vsel %vm1642, %v1647, %v1646
      %vm1649 = vcmp.lt.s32.totalorder %v1455, 0
      %v1650 = vsub.s32 0, %v1455
      %v1651 = vsel %vm1649, %v1650, %v1455
      %v1652 = vshrl.u32 %v1651, 4
      %v1653 = vand.u32 %v1651, 15
      %v1654 = vsub.s32 0, %v1653
      %v1655 = vsel %vm1649, %v1654, %v1653
      %vm1656 = vcmp.lt.s32.totalorder %v1456, 0
      %v1657 = vsub.s32 0, %v1456
      %v1658 = vsel %vm1656, %v1657, %v1456
      %v1659 = vshrl.u32 %v1658, 4
      %v1660 = vand.u32 %v1658, 15
      %v1661 = vsub.s32 0, %v1660
      %v1662 = vsel %vm1656, %v1661, %v1660
      %vm1663 = vcmp.lt.s32.totalorder %v1457, 0
      %v1664 = vsub.s32 0, %v1457
      %v1665 = vsel %vm1663, %v1664, %v1457
      %v1666 = vshrl.u32 %v1665, 4
      %v1667 = vand.u32 %v1665, 15
      %v1668 = vsub.s32 0, %v1667
      %v1669 = vsel %vm1663, %v1668, %v1667
      %vm1670 = vcmp.lt.s32.totalorder %v1458, 0
      %v1671 = vsub.s32 0, %v1458
      %v1672 = vsel %vm1670, %v1671, %v1458
      %v1673 = vshrl.u32 %v1672, 4
      %v1674 = vand.u32 %v1672, 15
      %v1675 = vsub.s32 0, %v1674
      %v1676 = vsel %vm1670, %v1675, %v1674
      %vm1677 = vcmp.lt.s32.totalorder %v1459, 0
      %v1678 = vsub.s32 0, %v1459
      %v1679 = vsel %vm1677, %v1678, %v1459
      %v1680 = vshrl.u32 %v1679, 4
      %v1681 = vand.u32 %v1679, 15
      %v1682 = vsub.s32 0, %v1681
      %v1683 = vsel %vm1677, %v1682, %v1681
      %vm1684 = vcmp.ne.s32.totalorder %v1466, 0
      %vm1685 = vcmp.ne.s32.totalorder %v1473, 0
      %vm1686 = vcmp.ne.s32.totalorder %v1480, 0
      %vm1687 = vcmp.ne.s32.totalorder %v1487, 0
      %vm1688 = vcmp.ne.s32.totalorder %v1494, 0
      %vm1689 = vcmp.ne.s32.totalorder %v1501, 0
      %vm1690 = vcmp.ne.s32.totalorder %v1508, 0
      %vm1691 = vcmp.ne.s32.totalorder %v1515, 0
      %vm1692 = vcmp.ne.s32.totalorder %v1522, 0
      %vm1693 = vcmp.ne.s32.totalorder %v1529, 0
      %vm1694 = vcmp.ne.s32.totalorder %v1536, 0
      %vm1695 = vcmp.ne.s32.totalorder %v1543, 0
      %vm1696 = vcmp.ne.s32.totalorder %v1550, 0
      %vm1697 = vcmp.ne.s32.totalorder %v1557, 0
      %vm1698 = vcmp.ne.s32.totalorder %v1564, 0
      %vm1699 = vcmp.ne.s32.totalorder %v1571, 0
      %vm1700 = vcmp.ne.s32.totalorder %v1578, 0
      %vm1701 = vcmp.ne.s32.totalorder %v1585, 0
      %vm1702 = vcmp.ne.s32.totalorder %v1592, 0
      %vm1703 = vcmp.ne.s32.totalorder %v1599, 0
      %vm1704 = vcmp.ne.s32.totalorder %v1606, 0
      %vm1705 = vcmp.ne.s32.totalorder %v1613, 0
      %vm1706 = vcmp.ne.s32.totalorder %v1620, 0
      %vm1707 = vcmp.ne.s32.totalorder %v1627, 0
      %vm1708 = vcmp.ne.s32.totalorder %v1634, 0
      %vm1709 = vcmp.ne.s32.totalorder %v1641, 0
      %vm1710 = vcmp.ne.s32.totalorder %v1648, 0
      %vm1711 = vcmp.ne.s32.totalorder %v1655, 0
      %vm1712 = vcmp.ne.s32.totalorder %v1662, 0
      %vm1713 = vcmp.ne.s32.totalorder %v1669, 0
      %vm1714 = vcmp.ne.s32.totalorder %v1676, 0
      %vm1715 = vcmp.ne.s32.totalorder %v1683, 0
      %vm1716 = vcmp.lt.s32.totalorder %v1466, 0
      %vm1717 = vcmp.lt.s32.totalorder %v1473, 0
      %vm1718 = vcmp.lt.s32.totalorder %v1480, 0
      %vm1719 = vcmp.lt.s32.totalorder %v1487, 0
      %vm1720 = vcmp.lt.s32.totalorder %v1494, 0
      %vm1721 = vcmp.lt.s32.totalorder %v1501, 0
      %vm1722 = vcmp.lt.s32.totalorder %v1508, 0
      %vm1723 = vcmp.lt.s32.totalorder %v1515, 0
      %vm1724 = vcmp.lt.s32.totalorder %v1522, 0
      %vm1725 = vcmp.lt.s32.totalorder %v1529, 0
      %vm1726 = vcmp.lt.s32.totalorder %v1536, 0
      %vm1727 = vcmp.lt.s32.totalorder %v1543, 0
      %vm1728 = vcmp.lt.s32.totalorder %v1550, 0
      %vm1729 = vcmp.lt.s32.totalorder %v1557, 0
      %vm1730 = vcmp.lt.s32.totalorder %v1564, 0
      %vm1731 = vcmp.lt.s32.totalorder %v1571, 0
      %vm1732 = vcmp.lt.s32.totalorder %v1578, 0
      %vm1733 = vcmp.lt.s32.totalorder %v1585, 0
      %vm1734 = vcmp.lt.s32.totalorder %v1592, 0
      %vm1735 = vcmp.lt.s32.totalorder %v1599, 0
      %vm1736 = vcmp.lt.s32.totalorder %v1606, 0
      %vm1737 = vcmp.lt.s32.totalorder %v1613, 0
      %vm1738 = vcmp.lt.s32.totalorder %v1620, 0
      %vm1739 = vcmp.lt.s32.totalorder %v1627, 0
      %vm1740 = vcmp.lt.s32.totalorder %v1634, 0
      %vm1741 = vcmp.lt.s32.totalorder %v1641, 0
      %vm1742 = vcmp.lt.s32.totalorder %v1648, 0
      %vm1743 = vcmp.lt.s32.totalorder %v1655, 0
      %vm1744 = vcmp.lt.s32.totalorder %v1662, 0
      %vm1745 = vcmp.lt.s32.totalorder %v1669, 0
      %vm1746 = vcmp.lt.s32.totalorder %v1676, 0
      %vm1747 = vcmp.lt.s32.totalorder %v1683, 0
      %vm1748 = vmand %vm1716, %vm1684
      %vm1749 = vmand %vm1717, %vm1685
      %vm1750 = vmand %vm1718, %vm1686
      %vm1751 = vmand %vm1719, %vm1687
      %vm1752 = vmand %vm1720, %vm1688
      %vm1753 = vmand %vm1721, %vm1689
      %vm1754 = vmand %vm1722, %vm1690
      %vm1755 = vmand %vm1723, %vm1691
      %vm1756 = vmand %vm1724, %vm1692
      %vm1757 = vmand %vm1725, %vm1693
      %vm1758 = vmand %vm1726, %vm1694
      %vm1759 = vmand %vm1727, %vm1695
      %vm1760 = vmand %vm1728, %vm1696
      %vm1761 = vmand %vm1729, %vm1697
      %vm1762 = vmand %vm1730, %vm1698
      %vm1763 = vmand %vm1731, %vm1699
      %vm1764 = vmand %vm1732, %vm1700
      %vm1765 = vmand %vm1733, %vm1701
      %vm1766 = vmand %vm1734, %vm1702
      %vm1767 = vmand %vm1735, %vm1703
      %vm1768 = vmand %vm1736, %vm1704
      %vm1769 = vmand %vm1737, %vm1705
      %vm1770 = vmand %vm1738, %vm1706
      %vm1771 = vmand %vm1739, %vm1707
      %vm1772 = vmand %vm1740, %vm1708
      %vm1773 = vmand %vm1741, %vm1709
      %vm1774 = vmand %vm1742, %vm1710
      %vm1775 = vmand %vm1743, %vm1711
      %vm1776 = vmand %vm1744, %vm1712
      %vm1777 = vmand %vm1745, %vm1713
      %vm1778 = vmand %vm1746, %vm1714
      %vm1779 = vmand %vm1747, %vm1715
      %v1780 = vadd.s32 %v1466, 16
      %v1781 = vadd.s32 %v1473, 16
      %v1782 = vadd.s32 %v1480, 16
      %v1783 = vadd.s32 %v1487, 16
      %v1784 = vadd.s32 %v1494, 16
      %v1785 = vadd.s32 %v1501, 16
      %v1786 = vadd.s32 %v1508, 16
      %v1787 = vadd.s32 %v1515, 16
      %v1788 = vadd.s32 %v1522, 16
      %v1789 = vadd.s32 %v1529, 16
      %v1790 = vadd.s32 %v1536, 16
      %v1791 = vadd.s32 %v1543, 16
      %v1792 = vadd.s32 %v1550, 16
      %v1793 = vadd.s32 %v1557, 16
      %v1794 = vadd.s32 %v1564, 16
      %v1795 = vadd.s32 %v1571, 16
      %v1796 = vadd.s32 %v1578, 16
      %v1797 = vadd.s32 %v1585, 16
      %v1798 = vadd.s32 %v1592, 16
      %v1799 = vadd.s32 %v1599, 16
      %v1800 = vadd.s32 %v1606, 16
      %v1801 = vadd.s32 %v1613, 16
      %v1802 = vadd.s32 %v1620, 16
      %v1803 = vadd.s32 %v1627, 16
      %v1804 = vadd.s32 %v1634, 16
      %v1805 = vadd.s32 %v1641, 16
      %v1806 = vadd.s32 %v1648, 16
      %v1807 = vadd.s32 %v1655, 16
      %v1808 = vadd.s32 %v1662, 16
      %v1809 = vadd.s32 %v1669, 16
      %v1810 = vadd.s32 %v1676, 16
      %v1811 = vadd.s32 %v1683, 16
      %v1812 = vsel %vm1748, %v1780, %v1466
      %v1813 = vsel %vm1749, %v1781, %v1473
      %v1814 = vsel %vm1750, %v1782, %v1480
      %v1815 = vsel %vm1751, %v1783, %v1487
      %v1816 = vsel %vm1752, %v1784, %v1494
      %v1817 = vsel %vm1753, %v1785, %v1501
      %v1818 = vsel %vm1754, %v1786, %v1508
      %v1819 = vsel %vm1755, %v1787, %v1515
      %v1820 = vsel %vm1756, %v1788, %v1522
      %v1821 = vsel %vm1757, %v1789, %v1529
      %v1822 = vsel %vm1758, %v1790, %v1536
      %v1823 = vsel %vm1759, %v1791, %v1543
      %v1824 = vsel %vm1760, %v1792, %v1550
      %v1825 = vsel %vm1761, %v1793, %v1557
      %v1826 = vsel %vm1762, %v1794, %v1564
      %v1827 = vsel %vm1763, %v1795, %v1571
      %v1828 = vsel %vm1764, %v1796, %v1578
      %v1829 = vsel %vm1765, %v1797, %v1585
      %v1830 = vsel %vm1766, %v1798, %v1592
      %v1831 = vsel %vm1767, %v1799, %v1599
      %v1832 = vsel %vm1768, %v1800, %v1606
      %v1833 = vsel %vm1769, %v1801, %v1613
      %v1834 = vsel %vm1770, %v1802, %v1620
      %v1835 = vsel %vm1771, %v1803, %v1627
      %v1836 = vsel %vm1772, %v1804, %v1634
      %v1837 = vsel %vm1773, %v1805, %v1641
      %v1838 = vsel %vm1774, %v1806, %v1648
      %v1839 = vsel %vm1775, %v1807, %v1655
      %v1840 = vsel %vm1776, %v1808, %v1662
      %v1841 = vsel %vm1777, %v1809, %v1669
      %v1842 = vsel %vm1778, %v1810, %v1676
      %v1843 = vsel %vm1779, %v1811, %v1683
      %v1844 = vld [vmem:[#allocation2 + $0x2d] sm:$0xff]
      %v1845 = vld [vmem:[#allocation2 + $0x35] sm:$0xff]
      %v1846 = vld [vmem:[#allocation2 + $0x3d] sm:$0xff]
      %v1847 = vld [vmem:[#allocation2 + $0x45] sm:$0xff]
      %v1848 = vld [vmem:[#allocation2 + $0x4d] sm:$0xff]
      %v1849 = vld [vmem:[#allocation2 + $0x55] sm:$0xff]
      %v1850 = vld [vmem:[#allocation2 + $0x5d] sm:$0xff]
      %v1851 = vld [vmem:[#allocation2 + $0x65] sm:$0xff]
      %v1852 = vld [vmem:[#allocation2 + $0x6d] sm:$0xff]
      %v1853 = vld [vmem:[#allocation2 + $0x75] sm:$0xff]
      %v1854 = vld [vmem:[#allocation2 + $0x7d] sm:$0xff]
      %v1855 = vld [vmem:[#allocation2 + $0x85] sm:$0xff]
      %v1856 = vld [vmem:[#allocation2 + $0x8d] sm:$0xff]
      %v1857 = vld [vmem:[#allocation2 + $0x95] sm:$0xff]
      %v1858 = vld [vmem:[#allocation2 + $0x9d] sm:$0xff]
      %v1859 = vld [vmem:[#allocation2 + $0xa5] sm:$0xff]
      %v1860 = vld [vmem:[#allocation2 + $0xad] sm:$0xff]
      %v1861 = vld [vmem:[#allocation2 + $0xb5] sm:$0xff]
      %v1862 = vld [vmem:[#allocation2 + $0xbd] sm:$0xff]
      %v1863 = vld [vmem:[#allocation2 + $0xc5] sm:$0xff]
      %v1864 = vld [vmem:[#allocation2 + $0xcd] sm:$0xff]
      %v1865 = vld [vmem:[#allocation2 + $0xd5] sm:$0xff]
      %v1866 = vld [vmem:[#allocation2 + $0xdd] sm:$0xff]
      %v1867 = vld [vmem:[#allocation2 + $0xe5] sm:$0xff]
      %v1868 = vld [vmem:[#allocation2 + $0xed] sm:$0xff]
      %v1869 = vld [vmem:[#allocation2 + $0xf5] sm:$0xff]
      %v1870 = vld [vmem:[#allocation2 + $0xfd] sm:$0xff]
      %v1871 = vld [vmem:[#allocation2 + $0x105] sm:$0xff]
      %v1872 = vld [vmem:[#allocation2 + $0x10d] sm:$0xff]
      %v1873 = vld [vmem:[#allocation2 + $0x115] sm:$0xff]
      %v1874 = vld [vmem:[#allocation2 + $0x11d] sm:$0xff]
      %v1875 = vld [vmem:[#allocation2 + $0x125] sm:$0xff]
      %vm1876 = vcmp.ge.s32.totalorder %v1812, 3
      %vm1877 = vcmp.ge.s32.totalorder %v1813, 3
      %vm1878 = vcmp.ge.s32.totalorder %v1814, 3
      %vm1879 = vcmp.ge.s32.totalorder %v1815, 3
      %vm1880 = vcmp.ge.s32.totalorder %v1816, 3
      %vm1881 = vcmp.ge.s32.totalorder %v1817, 3
      %vm1882 = vcmp.ge.s32.totalorder %v1818, 3
      %vm1883 = vcmp.ge.s32.totalorder %v1819, 3
      %vm1884 = vcmp.ge.s32.totalorder %v1820, 3
      %vm1885 = vcmp.ge.s32.totalorder %v1821, 3
      %vm1886 = vcmp.ge.s32.totalorder %v1822, 3
      %vm1887 = vcmp.ge.s32.totalorder %v1823, 3
      %vm1888 = vcmp.ge.s32.totalorder %v1824, 3
      %vm1889 = vcmp.ge.s32.totalorder %v1825, 3
      %vm1890 = vcmp.ge.s32.totalorder %v1826, 3
      %vm1891 = vcmp.ge.s32.totalorder %v1827, 3
      %vm1892 = vcmp.ge.s32.totalorder %v1828, 3
      %vm1893 = vcmp.ge.s32.totalorder %v1829, 3
      %vm1894 = vcmp.ge.s32.totalorder %v1830, 3
      %vm1895 = vcmp.ge.s32.totalorder %v1831, 3
      %vm1896 = vcmp.ge.s32.totalorder %v1832, 3
      %vm1897 = vcmp.ge.s32.totalorder %v1833, 3
      %vm1898 = vcmp.ge.s32.totalorder %v1834, 3
      %vm1899 = vcmp.ge.s32.totalorder %v1835, 3
      %vm1900 = vcmp.ge.s32.totalorder %v1836, 3
      %vm1901 = vcmp.ge.s32.totalorder %v1837, 3
      %vm1902 = vcmp.ge.s32.totalorder %v1838, 3
      %vm1903 = vcmp.ge.s32.totalorder %v1839, 3
      %vm1904 = vcmp.ge.s32.totalorder %v1840, 3
      %vm1905 = vcmp.ge.s32.totalorder %v1841, 3
      %vm1906 = vcmp.ge.s32.totalorder %v1842, 3
      %vm1907 = vcmp.ge.s32.totalorder %v1843, 3
      %v1908 = vsel %vm1876, %v1844, 0.0
      %v1909 = vsel %vm1877, %v1845, 0.0
      %v1910 = vsel %vm1878, %v1846, 0.0
      %v1911 = vsel %vm1879, %v1847, 0.0
      %v1912 = vsel %vm1880, %v1848, 0.0
      %v1913 = vsel %vm1881, %v1849, 0.0
      %v1914 = vsel %vm1882, %v1850, 0.0
      %v1915 = vsel %vm1883, %v1851, 0.0
      %v1916 = vsel %vm1884, %v1852, 0.0
      %v1917 = vsel %vm1885, %v1853, 0.0
      %v1918 = vsel %vm1886, %v1854, 0.0
      %v1919 = vsel %vm1887, %v1855, 0.0
      %v1920 = vsel %vm1888, %v1856, 0.0
      %v1921 = vsel %vm1889, %v1857, 0.0
      %v1922 = vsel %vm1890, %v1858, 0.0
      %v1923 = vsel %vm1891, %v1859, 0.0
      %v1924 = vsel %vm1892, %v1860, 0.0
      %v1925 = vsel %vm1893, %v1861, 0.0
      %v1926 = vsel %vm1894, %v1862, 0.0
      %v1927 = vsel %vm1895, %v1863, 0.0
      %v1928 = vsel %vm1896, %v1864, 0.0
      %v1929 = vsel %vm1897, %v1865, 0.0
      %v1930 = vsel %vm1898, %v1866, 0.0
      %v1931 = vsel %vm1899, %v1867, 0.0
      %v1932 = vsel %vm1900, %v1868, 0.0
      %v1933 = vsel %vm1901, %v1869, 0.0
      %v1934 = vsel %vm1902, %v1870, 0.0
      %v1935 = vsel %vm1903, %v1871, 0.0
      %v1936 = vsel %vm1904, %v1872, 0.0
      %v1937 = vsel %vm1905, %v1873, 0.0
      %v1938 = vsel %vm1906, %v1874, 0.0
      %v1939 = vsel %vm1907, %v1875, 0.0
      %v1940 = vpack.c.bf16 %v1909, %v1908
      %v1941 = vpack.c.bf16 %v1911, %v1910
      %v1942 = vpack.c.bf16 %v1913, %v1912
      %v1943 = vpack.c.bf16 %v1915, %v1914
      %v1944 = vpack.c.bf16 %v1917, %v1916
      %v1945 = vpack.c.bf16 %v1919, %v1918
      %v1946 = vpack.c.bf16 %v1921, %v1920
      %v1947 = vpack.c.bf16 %v1923, %v1922
      %v1948 = vpack.c.bf16 %v1925, %v1924
      %v1949 = vpack.c.bf16 %v1927, %v1926
      %v1950 = vpack.c.bf16 %v1929, %v1928
      %v1951 = vpack.c.bf16 %v1931, %v1930
      %v1952 = vpack.c.bf16 %v1933, %v1932
      %v1953 = vpack.c.bf16 %v1935, %v1934
      %v1954 = vpack.c.bf16 %v1937, %v1936
      %v1955 = vpack.c.bf16 %v1939, %v1938
      %v1956 = vld [vmem:[%s3] sm:$0xf]
      %v1957 = vld [vmem:[%s3 + $0x4] sm:$0xf]
      %v1958 = vld [vmem:[%s3 + $0x8] sm:$0xf]
      %v1959 = vld [vmem:[%s3 + $0xc] sm:$0xf]
      %v1960 = vld [vmem:[%s3 + $0x10] sm:$0xf]
      %v1961 = vld [vmem:[%s3 + $0x14] sm:$0xf]
      %v1962 = vld [vmem:[%s3 + $0x18] sm:$0xf]
      %v1963 = vld [vmem:[#allocation2 + $0x2e] sm:$0xff]
      %v1964 = vld [vmem:[#allocation2 + $0x36] sm:$0xff]
      %v1965 = vld [vmem:[#allocation2 + $0x3e] sm:$0xff]
      %v1966 = vld [vmem:[#allocation2 + $0x46] sm:$0xff]
      %v1967 = vld [vmem:[#allocation2 + $0x4e] sm:$0xff]
      %v1968 = vld [vmem:[#allocation2 + $0x56] sm:$0xff]
      %v1969 = vld [vmem:[#allocation2 + $0x5e] sm:$0xff]
      %v1970 = vld [vmem:[#allocation2 + $0x66] sm:$0xff]
      %v1971 = vld [vmem:[#allocation2 + $0x6e] sm:$0xff]
      %v1972 = vld [vmem:[#allocation2 + $0x76] sm:$0xff]
      %v1973 = vld [vmem:[#allocation2 + $0x7e] sm:$0xff]
      %v1974 = vld [vmem:[#allocation2 + $0x86] sm:$0xff]
      %v1975 = vld [vmem:[#allocation2 + $0x8e] sm:$0xff]
      %v1976 = vld [vmem:[#allocation2 + $0x96] sm:$0xff]
      %v1977 = vld [vmem:[#allocation2 + $0x9e] sm:$0xff]
      %v1978 = vld [vmem:[#allocation2 + $0xa6] sm:$0xff]
      %v1979 = vld [vmem:[#allocation2 + $0xae] sm:$0xff]
      %v1980 = vld [vmem:[#allocation2 + $0xb6] sm:$0xff]
      %v1981 = vld [vmem:[#allocation2 + $0xbe] sm:$0xff]
      %v1982 = vld [vmem:[#allocation2 + $0xc6] sm:$0xff]
      %v1983 = vld [vmem:[#allocation2 + $0xce] sm:$0xff]
      %v1984 = vld [vmem:[#allocation2 + $0xd6] sm:$0xff]
      %v1985 = vld [vmem:[#allocation2 + $0xde] sm:$0xff]
      %v1986 = vld [vmem:[#allocation2 + $0xe6] sm:$0xff]
      %v1987 = vld [vmem:[#allocation2 + $0xee] sm:$0xff]
      %v1988 = vld [vmem:[#allocation2 + $0xf6] sm:$0xff]
      %v1989 = vld [vmem:[#allocation2 + $0xfe] sm:$0xff]
      %v1990 = vld [vmem:[#allocation2 + $0x106] sm:$0xff]
      %v1991 = vld [vmem:[#allocation2 + $0x10e] sm:$0xff]
      %v1992 = vld [vmem:[#allocation2 + $0x116] sm:$0xff]
      %v1993 = vld [vmem:[#allocation2 + $0x11e] sm:$0xff]
      %v1994 = vld [vmem:[#allocation2 + $0x126] sm:$0xff]
      %vm1995 = vcmp.ge.s32.totalorder %v1812, 2
      %vm1996 = vcmp.ge.s32.totalorder %v1813, 2
      %vm1997 = vcmp.ge.s32.totalorder %v1814, 2
      %vm1998 = vcmp.ge.s32.totalorder %v1815, 2
      %vm1999 = vcmp.ge.s32.totalorder %v1816, 2
      %vm2000 = vcmp.ge.s32.totalorder %v1817, 2
      %vm2001 = vcmp.ge.s32.totalorder %v1818, 2
      %vm2002 = vcmp.ge.s32.totalorder %v1819, 2
      %vm2003 = vcmp.ge.s32.totalorder %v1820, 2
      %vm2004 = vcmp.ge.s32.totalorder %v1821, 2
      %vm2005 = vcmp.ge.s32.totalorder %v1822, 2
      %vm2006 = vcmp.ge.s32.totalorder %v1823, 2
      %vm2007 = vcmp.ge.s32.totalorder %v1824, 2
      %vm2008 = vcmp.ge.s32.totalorder %v1825, 2
      %vm2009 = vcmp.ge.s32.totalorder %v1826, 2
      %vm2010 = vcmp.ge.s32.totalorder %v1827, 2
      %vm2011 = vcmp.ge.s32.totalorder %v1828, 2
      %vm2012 = vcmp.ge.s32.totalorder %v1829, 2
      %vm2013 = vcmp.ge.s32.totalorder %v1830, 2
      %vm2014 = vcmp.ge.s32.totalorder %v1831, 2
      %vm2015 = vcmp.ge.s32.totalorder %v1832, 2
      %vm2016 = vcmp.ge.s32.totalorder %v1833, 2
      %vm2017 = vcmp.ge.s32.totalorder %v1834, 2
      %vm2018 = vcmp.ge.s32.totalorder %v1835, 2
      %vm2019 = vcmp.ge.s32.totalorder %v1836, 2
      %vm2020 = vcmp.ge.s32.totalorder %v1837, 2
      %vm2021 = vcmp.ge.s32.totalorder %v1838, 2
      %vm2022 = vcmp.ge.s32.totalorder %v1839, 2
      %vm2023 = vcmp.ge.s32.totalorder %v1840, 2
      %vm2024 = vcmp.ge.s32.totalorder %v1841, 2
      %vm2025 = vcmp.ge.s32.totalorder %v1842, 2
      %vm2026 = vcmp.ge.s32.totalorder %v1843, 2
      %v2027 = vsel %vm1995, %v1963, 0.0
      %v2028 = vsel %vm1996, %v1964, 0.0
      %v2029 = vsel %vm1997, %v1965, 0.0
      %v2030 = vsel %vm1998, %v1966, 0.0
      %v2031 = vsel %vm1999, %v1967, 0.0
      %v2032 = vsel %vm2000, %v1968, 0.0
      %v2033 = vsel %vm2001, %v1969, 0.0
      %v2034 = vsel %vm2002, %v1970, 0.0
      %v2035 = vsel %vm2003, %v1971, 0.0
      %v2036 = vsel %vm2004, %v1972, 0.0
      %v2037 = vsel %vm2005, %v1973, 0.0
      %v2038 = vsel %vm2006, %v1974, 0.0
      %v2039 = vsel %vm2007, %v1975, 0.0
      %v2040 = vsel %vm2008, %v1976, 0.0
      %v2041 = vsel %vm2009, %v1977, 0.0
      %v2042 = vsel %vm2010, %v1978, 0.0
      %v2043 = vsel %vm2011, %v1979, 0.0
      %v2044 = vsel %vm2012, %v1980, 0.0
      %v2045 = vsel %vm2013, %v1981, 0.0
      %v2046 = vsel %vm2014, %v1982, 0.0
      %v2047 = vsel %vm2015, %v1983, 0.0
      %v2048 = vsel %vm2016, %v1984, 0.0
      %v2049 = vsel %vm2017, %v1985, 0.0
      %v2050 = vsel %vm2018, %v1986, 0.0
      %v2051 = vsel %vm2019, %v1987, 0.0
      %v2052 = vsel %vm2020, %v1988, 0.0
      %v2053 = vsel %vm2021, %v1989, 0.0
      %v2054 = vsel %vm2022, %v1990, 0.0
      %v2055 = vsel %vm2023, %v1991, 0.0
      %v2056 = vsel %vm2024, %v1992, 0.0
      %v2057 = vsel %vm2025, %v1993, 0.0
      %v2058 = vsel %vm2026, %v1994, 0.0
      %v2059 = vpack.c.bf16 %v2028, %v2027
      %v2060 = vpack.c.bf16 %v2030, %v2029
      %v2061 = vpack.c.bf16 %v2032, %v2031
      %v2062 = vpack.c.bf16 %v2034, %v2033
      %v2063 = vpack.c.bf16 %v2036, %v2035
      %v2064 = vpack.c.bf16 %v2038, %v2037
      %v2065 = vpack.c.bf16 %v2040, %v2039
      %v2066 = vpack.c.bf16 %v2042, %v2041
      %v2067 = vpack.c.bf16 %v2044, %v2043
      %v2068 = vpack.c.bf16 %v2046, %v2045
      %v2069 = vpack.c.bf16 %v2048, %v2047
      %v2070 = vpack.c.bf16 %v2050, %v2049
      %v2071 = vpack.c.bf16 %v2052, %v2051
      %v2072 = vpack.c.bf16 %v2054, %v2053
      %v2073 = vpack.c.bf16 %v2056, %v2055
      %v2074 = vpack.c.bf16 %v2058, %v2057
      %s2075 = scalar_lea.vmem %s3, 28
      %v2076 = vld [vmem:[%s2075] sm:$0xf]
      %v2077 = vld [vmem:[%s2075 + $0x4] sm:$0xf]
      %v2078 = vld [vmem:[%s2075 + $0x8] sm:$0xf]
      %v2079 = vld [vmem:[%s2075 + $0xc] sm:$0xf]
      %v2080 = vld [vmem:[%s2075 + $0x10] sm:$0xf]
      %v2081 = vld [vmem:[%s2075 + $0x14] sm:$0xf]
      %v2082 = vld [vmem:[%s2075 + $0x18] sm:$0xf]
      %v2090 = vunpack.c.l.b16 %v2076
      %v2091 = vunpack.c.l.b16 %v2077
      %v2092 = vunpack.c.l.b16 %v2078
      %v2093 = vunpack.c.l.b16 %v2079
      %v2094 = vunpack.c.l.b16 %v2080
      %v2095 = vunpack.c.l.b16 %v2081
      %v2096 = vunpack.c.l.b16 %v2082
      %v2097 = vpack.c.b16 %v2091, %v2090
      %v2098 = vpack.c.b16 %v2093, %v2092
      %v2099 = vpack.c.b16 %v2095, %v2094
      %v2100 = vpack.c.b16 %v2096, %v2096
      %v2105 = vsel %vm574, %v2059, 0
      %v2108 = vsel %vm574, %v2060, 0
      %v2111 = vsel %vm574, %v2061, 0
      %v2114 = vsel %vm574, %v2062, 0
      %v2117 = vsel %vm574, %v2063, 0
      %v2120 = vsel %vm574, %v2064, 0
      %v2123 = vsel %vm574, %v2065, 0
      %v2126 = vsel %vm574, %v2066, 0
      %v2129 = vsel %vm574, %v2067, 0
      %v2132 = vsel %vm574, %v2068, 0
      %v2135 = vsel %vm574, %v2069, 0
      %v2138 = vsel %vm574, %v2070, 0
      %v2141 = vsel %vm574, %v2071, 0
      %v2144 = vsel %vm574, %v2072, 0
      %v2147 = vsel %vm574, %v2073, 0
      %v2150 = vsel %vm574, %v2074, 0
      %v2153 = vsel %vm449, %v2100, 0
      %2155 = vmatpush.bf16.msra.mxu0 0
      %2156 = vmatpush.bf16.msra.mxu0 0
      %2157 = vmatpush.bf16.msra.mxu0 0
      %2158 = vmatpush.bf16.msra.mxu0 0
      %2159 = vmatpush.bf16.msra.mxu0 %v2153
      %2160 = vmatpush.bf16.msra.mxu0 %v2099
      %2161 = vmatpush.bf16.msra.mxu0 %v2098
      %2162 = vmatpush.bf16.msra.mxu0 %v2097
      %2163 = vmatmul.bf16.gmra.mxu0 %v2105
      %v2164 = vpop.f32.mrf.mxu0
      %v2165 = vadd.f32 0.0, %v2164
      %v2166 = vpop.f32.mrf.mxu0
      %v2167 = vadd.f32 0.0, %v2166
      %2168 = vmatmul.bf16.gmra.mxu0 %v2108
      %v2169 = vpop.f32.mrf.mxu0
      %v2170 = vadd.f32 0.0, %v2169
      %v2171 = vpop.f32.mrf.mxu0
      %v2172 = vadd.f32 0.0, %v2171
      %2173 = vmatmul.bf16.gmra.mxu0 %v2111
      %v2174 = vpop.f32.mrf.mxu0
      %v2175 = vadd.f32 0.0, %v2174
      %v2176 = vpop.f32.mrf.mxu0
      %v2177 = vadd.f32 0.0, %v2176
      %2178 = vmatmul.bf16.gmra.mxu0 %v2114
      %v2179 = vpop.f32.mrf.mxu0
      %v2180 = vadd.f32 0.0, %v2179
      %v2181 = vpop.f32.mrf.mxu0
      %v2182 = vadd.f32 0.0, %v2181
      %2183 = vmatmul.bf16.gmra.mxu0 %v2117
      %v2184 = vpop.f32.mrf.mxu0
      %v2185 = vadd.f32 0.0, %v2184
      %v2186 = vpop.f32.mrf.mxu0
      %v2187 = vadd.f32 0.0, %v2186
      %2188 = vmatmul.bf16.gmra.mxu0 %v2120
      %v2189 = vpop.f32.mrf.mxu0
      %v2190 = vadd.f32 0.0, %v2189
      %v2191 = vpop.f32.mrf.mxu0
      %v2192 = vadd.f32 0.0, %v2191
      %2193 = vmatmul.bf16.gmra.mxu0 %v2123
      %v2194 = vpop.f32.mrf.mxu0
      %v2195 = vadd.f32 0.0, %v2194
      %v2196 = vpop.f32.mrf.mxu0
      %v2197 = vadd.f32 0.0, %v2196
      %2198 = vmatmul.bf16.gmra.mxu0 %v2126
      %v2199 = vpop.f32.mrf.mxu0
      %v2200 = vadd.f32 0.0, %v2199
      %v2201 = vpop.f32.mrf.mxu0
      %v2202 = vadd.f32 0.0, %v2201
      %2203 = vmatmul.bf16.gmra.mxu0 %v2129
      %v2204 = vpop.f32.mrf.mxu0
      %v2205 = vadd.f32 0.0, %v2204
      %v2206 = vpop.f32.mrf.mxu0
      %v2207 = vadd.f32 0.0, %v2206
      %2208 = vmatmul.bf16.gmra.mxu0 %v2132
      %v2209 = vpop.f32.mrf.mxu0
      %v2210 = vadd.f32 0.0, %v2209
      %v2211 = vpop.f32.mrf.mxu0
      %v2212 = vadd.f32 0.0, %v2211
      %2213 = vmatmul.bf16.gmra.mxu0 %v2135
      %v2214 = vpop.f32.mrf.mxu0
      %v2215 = vadd.f32 0.0, %v2214
      %v2216 = vpop.f32.mrf.mxu0
      %v2217 = vadd.f32 0.0, %v2216
      %2218 = vmatmul.bf16.gmra.mxu0 %v2138
      %v2219 = vpop.f32.mrf.mxu0
      %v2220 = vadd.f32 0.0, %v2219
      %v2221 = vpop.f32.mrf.mxu0
      %v2222 = vadd.f32 0.0, %v2221
      %2223 = vmatmul.bf16.gmra.mxu0 %v2141
      %v2224 = vpop.f32.mrf.mxu0
      %v2225 = vadd.f32 0.0, %v2224
      %v2226 = vpop.f32.mrf.mxu0
      %v2227 = vadd.f32 0.0, %v2226
      %2228 = vmatmul.bf16.gmra.mxu0 %v2144
      %v2229 = vpop.f32.mrf.mxu0
      %v2230 = vadd.f32 0.0, %v2229
      %v2231 = vpop.f32.mrf.mxu0
      %v2232 = vadd.f32 0.0, %v2231
      %2233 = vmatmul.bf16.gmra.mxu0 %v2147
      %v2234 = vpop.f32.mrf.mxu0
      %v2235 = vadd.f32 0.0, %v2234
      %v2236 = vpop.f32.mrf.mxu0
      %v2237 = vadd.f32 0.0, %v2236
      %2238 = vmatmul.bf16.gmra.mxu0 %v2150
      %v2239 = vpop.f32.mrf.mxu0
      %v2240 = vadd.f32 0.0, %v2239
      %v2241 = vpop.f32.mrf.mxu0
      %v2242 = vadd.f32 0.0, %v2241
      %2243 = vdwg.mxu0
      %v2251 = vunpack.c.l.b16 %v1956
      %v2252 = vunpack.c.l.b16 %v1957
      %v2253 = vunpack.c.l.b16 %v1958
      %v2254 = vunpack.c.l.b16 %v1959
      %v2255 = vunpack.c.l.b16 %v1960
      %v2256 = vunpack.c.l.b16 %v1961
      %v2257 = vunpack.c.l.b16 %v1962
      %v2258 = vpack.c.b16 %v2252, %v2251
      %v2259 = vpack.c.b16 %v2254, %v2253
      %v2260 = vpack.c.b16 %v2256, %v2255
      %v2261 = vpack.c.b16 %v2257, %v2257
      %v2266 = vsel %vm574, %v1940, 0
      %v2269 = vsel %vm574, %v1941, 0
      %v2272 = vsel %vm574, %v1942, 0
      %v2275 = vsel %vm574, %v1943, 0
      %v2278 = vsel %vm574, %v1944, 0
      %v2281 = vsel %vm574, %v1945, 0
      %v2284 = vsel %vm574, %v1946, 0
      %v2287 = vsel %vm574, %v1947, 0
      %v2290 = vsel %vm574, %v1948, 0
      %v2293 = vsel %vm574, %v1949, 0
      %v2296 = vsel %vm574, %v1950, 0
      %v2299 = vsel %vm574, %v1951, 0
      %v2302 = vsel %vm574, %v1952, 0
      %v2305 = vsel %vm574, %v1953, 0
      %v2308 = vsel %vm574, %v1954, 0
      %v2311 = vsel %vm574, %v1955, 0
      %v2314 = vsel %vm449, %v2261, 0
      %2316 = vmatpush.bf16.msra.mxu0 0
      %2317 = vmatpush.bf16.msra.mxu0 0
      %2318 = vmatpush.bf16.msra.mxu0 0
      %2319 = vmatpush.bf16.msra.mxu0 0
      %2320 = vmatpush.bf16.msra.mxu0 %v2314
      %2321 = vmatpush.bf16.msra.mxu0 %v2260
      %2322 = vmatpush.bf16.msra.mxu0 %v2259
      %2323 = vmatpush.bf16.msra.mxu0 %v2258
      %2324 = vmatmul.bf16.gmra.mxu0 %v2266
      %v2325 = vpop.f32.mrf.mxu0
      %v2326 = vadd.f32 %v2165, %v2325
      %v2327 = vpop.f32.mrf.mxu0
      %v2328 = vadd.f32 %v2167, %v2327
      %2329 = vmatmul.bf16.gmra.mxu0 %v2269
      %v2330 = vpop.f32.mrf.mxu0
      %v2331 = vadd.f32 %v2170, %v2330
      %v2332 = vpop.f32.mrf.mxu0
      %v2333 = vadd.f32 %v2172, %v2332
      %2334 = vmatmul.bf16.gmra.mxu0 %v2272
      %v2335 = vpop.f32.mrf.mxu0
      %v2336 = vadd.f32 %v2175, %v2335
      %v2337 = vpop.f32.mrf.mxu0
      %v2338 = vadd.f32 %v2177, %v2337
      %2339 = vmatmul.bf16.gmra.mxu0 %v2275
      %v2340 = vpop.f32.mrf.mxu0
      %v2341 = vadd.f32 %v2180, %v2340
      %v2342 = vpop.f32.mrf.mxu0
      %v2343 = vadd.f32 %v2182, %v2342
      %2344 = vmatmul.bf16.gmra.mxu0 %v2278
      %v2345 = vpop.f32.mrf.mxu0
      %v2346 = vadd.f32 %v2185, %v2345
      %v2347 = vpop.f32.mrf.mxu0
      %v2348 = vadd.f32 %v2187, %v2347
      %2349 = vmatmul.bf16.gmra.mxu0 %v2281
      %v2350 = vpop.f32.mrf.mxu0
      %v2351 = vadd.f32 %v2190, %v2350
      %v2352 = vpop.f32.mrf.mxu0
      %v2353 = vadd.f32 %v2192, %v2352
      %2354 = vmatmul.bf16.gmra.mxu0 %v2284
      %v2355 = vpop.f32.mrf.mxu0
      %v2356 = vadd.f32 %v2195, %v2355
      %v2357 = vpop.f32.mrf.mxu0
      %v2358 = vadd.f32 %v2197, %v2357
      %2359 = vmatmul.bf16.gmra.mxu0 %v2287
      %v2360 = vpop.f32.mrf.mxu0
      %v2361 = vadd.f32 %v2200, %v2360
      %v2362 = vpop.f32.mrf.mxu0
      %v2363 = vadd.f32 %v2202, %v2362
      %2364 = vmatmul.bf16.gmra.mxu0 %v2290
      %v2365 = vpop.f32.mrf.mxu0
      %v2366 = vadd.f32 %v2205, %v2365
      %v2367 = vpop.f32.mrf.mxu0
      %v2368 = vadd.f32 %v2207, %v2367
      %2369 = vmatmul.bf16.gmra.mxu0 %v2293
      %v2370 = vpop.f32.mrf.mxu0
      %v2371 = vadd.f32 %v2210, %v2370
      %v2372 = vpop.f32.mrf.mxu0
      %v2373 = vadd.f32 %v2212, %v2372
      %2374 = vmatmul.bf16.gmra.mxu0 %v2296
      %v2375 = vpop.f32.mrf.mxu0
      %v2376 = vadd.f32 %v2215, %v2375
      %v2377 = vpop.f32.mrf.mxu0
      %v2378 = vadd.f32 %v2217, %v2377
      %2379 = vmatmul.bf16.gmra.mxu0 %v2299
      %v2380 = vpop.f32.mrf.mxu0
      %v2381 = vadd.f32 %v2220, %v2380
      %v2382 = vpop.f32.mrf.mxu0
      %v2383 = vadd.f32 %v2222, %v2382
      %2384 = vmatmul.bf16.gmra.mxu0 %v2302
      %v2385 = vpop.f32.mrf.mxu0
      %v2386 = vadd.f32 %v2225, %v2385
      %v2387 = vpop.f32.mrf.mxu0
      %v2388 = vadd.f32 %v2227, %v2387
      %2389 = vmatmul.bf16.gmra.mxu0 %v2305
      %v2390 = vpop.f32.mrf.mxu0
      %v2391 = vadd.f32 %v2230, %v2390
      %v2392 = vpop.f32.mrf.mxu0
      %v2393 = vadd.f32 %v2232, %v2392
      %2394 = vmatmul.bf16.gmra.mxu0 %v2308
      %v2395 = vpop.f32.mrf.mxu0
      %v2396 = vadd.f32 %v2235, %v2395
      %v2397 = vpop.f32.mrf.mxu0
      %v2398 = vadd.f32 %v2237, %v2397
      %2399 = vmatmul.bf16.gmra.mxu0 %v2311
      %v2400 = vpop.f32.mrf.mxu0
      %v2401 = vadd.f32 %v2240, %v2400
      %v2402 = vpop.f32.mrf.mxu0
      %v2403 = vadd.f32 %v2242, %v2402
      %2404 = vdwg.mxu0
      %v2405 = vld [vmem:[#allocation2 + $0x2f] sm:$0xff]
      %v2406 = vld [vmem:[#allocation2 + $0x37] sm:$0xff]
      %v2407 = vld [vmem:[#allocation2 + $0x3f] sm:$0xff]
      %v2408 = vld [vmem:[#allocation2 + $0x47] sm:$0xff]
      %v2409 = vld [vmem:[#allocation2 + $0x4f] sm:$0xff]
      %v2410 = vld [vmem:[#allocation2 + $0x57] sm:$0xff]
      %v2411 = vld [vmem:[#allocation2 + $0x5f] sm:$0xff]
      %v2412 = vld [vmem:[#allocation2 + $0x67] sm:$0xff]
      %v2413 = vld [vmem:[#allocation2 + $0x6f] sm:$0xff]
      %v2414 = vld [vmem:[#allocation2 + $0x77] sm:$0xff]
      %v2415 = vld [vmem:[#allocation2 + $0x7f] sm:$0xff]
      %v2416 = vld [vmem:[#allocation2 + $0x87] sm:$0xff]
      %v2417 = vld [vmem:[#allocation2 + $0x8f] sm:$0xff]
      %v2418 = vld [vmem:[#allocation2 + $0x97] sm:$0xff]
      %v2419 = vld [vmem:[#allocation2 + $0x9f] sm:$0xff]
      %v2420 = vld [vmem:[#allocation2 + $0xa7] sm:$0xff]
      %v2421 = vld [vmem:[#allocation2 + $0xaf] sm:$0xff]
      %v2422 = vld [vmem:[#allocation2 + $0xb7] sm:$0xff]
      %v2423 = vld [vmem:[#allocation2 + $0xbf] sm:$0xff]
      %v2424 = vld [vmem:[#allocation2 + $0xc7] sm:$0xff]
      %v2425 = vld [vmem:[#allocation2 + $0xcf] sm:$0xff]
      %v2426 = vld [vmem:[#allocation2 + $0xd7] sm:$0xff]
      %v2427 = vld [vmem:[#allocation2 + $0xdf] sm:$0xff]
      %v2428 = vld [vmem:[#allocation2 + $0xe7] sm:$0xff]
      %v2429 = vld [vmem:[#allocation2 + $0xef] sm:$0xff]
      %v2430 = vld [vmem:[#allocation2 + $0xf7] sm:$0xff]
      %v2431 = vld [vmem:[#allocation2 + $0xff] sm:$0xff]
      %v2432 = vld [vmem:[#allocation2 + $0x107] sm:$0xff]
      %v2433 = vld [vmem:[#allocation2 + $0x10f] sm:$0xff]
      %v2434 = vld [vmem:[#allocation2 + $0x117] sm:$0xff]
      %v2435 = vld [vmem:[#allocation2 + $0x11f] sm:$0xff]
      %v2436 = vld [vmem:[#allocation2 + $0x127] sm:$0xff]
      %vm2437 = vcmp.ge.s32.totalorder %v1812, 1
      %vm2438 = vcmp.ge.s32.totalorder %v1813, 1
      %vm2439 = vcmp.ge.s32.totalorder %v1814, 1
      %vm2440 = vcmp.ge.s32.totalorder %v1815, 1
      %vm2441 = vcmp.ge.s32.totalorder %v1816, 1
      %vm2442 = vcmp.ge.s32.totalorder %v1817, 1
      %vm2443 = vcmp.ge.s32.totalorder %v1818, 1
      %vm2444 = vcmp.ge.s32.totalorder %v1819, 1
      %vm2445 = vcmp.ge.s32.totalorder %v1820, 1
      %vm2446 = vcmp.ge.s32.totalorder %v1821, 1
      %vm2447 = vcmp.ge.s32.totalorder %v1822, 1
      %vm2448 = vcmp.ge.s32.totalorder %v1823, 1
      %vm2449 = vcmp.ge.s32.totalorder %v1824, 1
      %vm2450 = vcmp.ge.s32.totalorder %v1825, 1
      %vm2451 = vcmp.ge.s32.totalorder %v1826, 1
      %vm2452 = vcmp.ge.s32.totalorder %v1827, 1
      %vm2453 = vcmp.ge.s32.totalorder %v1828, 1
      %vm2454 = vcmp.ge.s32.totalorder %v1829, 1
      %vm2455 = vcmp.ge.s32.totalorder %v1830, 1
      %vm2456 = vcmp.ge.s32.totalorder %v1831, 1
      %vm2457 = vcmp.ge.s32.totalorder %v1832, 1
      %vm2458 = vcmp.ge.s32.totalorder %v1833, 1
      %vm2459 = vcmp.ge.s32.totalorder %v1834, 1
      %vm2460 = vcmp.ge.s32.totalorder %v1835, 1
      %vm2461 = vcmp.ge.s32.totalorder %v1836, 1
      %vm2462 = vcmp.ge.s32.totalorder %v1837, 1
      %vm2463 = vcmp.ge.s32.totalorder %v1838, 1
      %vm2464 = vcmp.ge.s32.totalorder %v1839, 1
      %vm2465 = vcmp.ge.s32.totalorder %v1840, 1
      %vm2466 = vcmp.ge.s32.totalorder %v1841, 1
      %vm2467 = vcmp.ge.s32.totalorder %v1842, 1
      %vm2468 = vcmp.ge.s32.totalorder %v1843, 1
      %v2469 = vsel %vm2437, %v2405, 0.0
      %v2470 = vsel %vm2438, %v2406, 0.0
      %v2471 = vsel %vm2439, %v2407, 0.0
      %v2472 = vsel %vm2440, %v2408, 0.0
      %v2473 = vsel %vm2441, %v2409, 0.0
      %v2474 = vsel %vm2442, %v2410, 0.0
      %v2475 = vsel %vm2443, %v2411, 0.0
      %v2476 = vsel %vm2444, %v2412, 0.0
      %v2477 = vsel %vm2445, %v2413, 0.0
      %v2478 = vsel %vm2446, %v2414, 0.0
      %v2479 = vsel %vm2447, %v2415, 0.0
      %v2480 = vsel %vm2448, %v2416, 0.0
      %v2481 = vsel %vm2449, %v2417, 0.0
      %v2482 = vsel %vm2450, %v2418, 0.0
      %v2483 = vsel %vm2451, %v2419, 0.0
      %v2484 = vsel %vm2452, %v2420, 0.0
      %v2485 = vsel %vm2453, %v2421, 0.0
      %v2486 = vsel %vm2454, %v2422, 0.0
      %v2487 = vsel %vm2455, %v2423, 0.0
      %v2488 = vsel %vm2456, %v2424, 0.0
      %v2489 = vsel %vm2457, %v2425, 0.0
      %v2490 = vsel %vm2458, %v2426, 0.0
      %v2491 = vsel %vm2459, %v2427, 0.0
      %v2492 = vsel %vm2460, %v2428, 0.0
      %v2493 = vsel %vm2461, %v2429, 0.0
      %v2494 = vsel %vm2462, %v2430, 0.0
      %v2495 = vsel %vm2463, %v2431, 0.0
      %v2496 = vsel %vm2464, %v2432, 0.0
      %v2497 = vsel %vm2465, %v2433, 0.0
      %v2498 = vsel %vm2466, %v2434, 0.0
      %v2499 = vsel %vm2467, %v2435, 0.0
      %v2500 = vsel %vm2468, %v2436, 0.0
      %v2501 = vpack.c.bf16 %v2470, %v2469
      %v2502 = vpack.c.bf16 %v2472, %v2471
      %v2503 = vpack.c.bf16 %v2474, %v2473
      %v2504 = vpack.c.bf16 %v2476, %v2475
      %v2505 = vpack.c.bf16 %v2478, %v2477
      %v2506 = vpack.c.bf16 %v2480, %v2479
      %v2507 = vpack.c.bf16 %v2482, %v2481
      %v2508 = vpack.c.bf16 %v2484, %v2483
      %v2509 = vpack.c.bf16 %v2486, %v2485
      %v2510 = vpack.c.bf16 %v2488, %v2487
      %v2511 = vpack.c.bf16 %v2490, %v2489
      %v2512 = vpack.c.bf16 %v2492, %v2491
      %v2513 = vpack.c.bf16 %v2494, %v2493
      %v2514 = vpack.c.bf16 %v2496, %v2495
      %v2515 = vpack.c.bf16 %v2498, %v2497
      %v2516 = vpack.c.bf16 %v2500, %v2499
      %s2517 = scalar_lea.vmem %s3, 56
      %v2518 = vld [vmem:[%s2517] sm:$0xf]
      %v2519 = vld [vmem:[%s2517 + $0x4] sm:$0xf]
      %v2520 = vld [vmem:[%s2517 + $0x8] sm:$0xf]
      %v2521 = vld [vmem:[%s2517 + $0xc] sm:$0xf]
      %v2522 = vld [vmem:[%s2517 + $0x10] sm:$0xf]
      %v2523 = vld [vmem:[%s2517 + $0x14] sm:$0xf]
      %v2524 = vld [vmem:[%s2517 + $0x18] sm:$0xf]
      %v2532 = vunpack.c.l.b16 %v2518
      %v2533 = vunpack.c.l.b16 %v2519
      %v2534 = vunpack.c.l.b16 %v2520
      %v2535 = vunpack.c.l.b16 %v2521
      %v2536 = vunpack.c.l.b16 %v2522
      %v2537 = vunpack.c.l.b16 %v2523
      %v2538 = vunpack.c.l.b16 %v2524
      %v2539 = vpack.c.b16 %v2533, %v2532
      %v2540 = vpack.c.b16 %v2535, %v2534
      %v2541 = vpack.c.b16 %v2537, %v2536
      %v2542 = vpack.c.b16 %v2538, %v2538
      %v2547 = vsel %vm574, %v2501, 0
      %v2550 = vsel %vm574, %v2502, 0
      %v2553 = vsel %vm574, %v2503, 0
      %v2556 = vsel %vm574, %v2504, 0
      %v2559 = vsel %vm574, %v2505, 0
      %v2562 = vsel %vm574, %v2506, 0
      %v2565 = vsel %vm574, %v2507, 0
      %v2568 = vsel %vm574, %v2508, 0
      %v2571 = vsel %vm574, %v2509, 0
      %v2574 = vsel %vm574, %v2510, 0
      %v2577 = vsel %vm574, %v2511, 0
      %v2580 = vsel %vm574, %v2512, 0
      %v2583 = vsel %vm574, %v2513, 0
      %v2586 = vsel %vm574, %v2514, 0
      %v2589 = vsel %vm574, %v2515, 0
      %v2592 = vsel %vm574, %v2516, 0
      %v2595 = vsel %vm449, %v2542, 0
      %2597 = vmatpush.bf16.msra.mxu0 0
      %2598 = vmatpush.bf16.msra.mxu0 0
      %2599 = vmatpush.bf16.msra.mxu0 0
      %2600 = vmatpush.bf16.msra.mxu0 0
      %2601 = vmatpush.bf16.msra.mxu0 %v2595
      %2602 = vmatpush.bf16.msra.mxu0 %v2541
      %2603 = vmatpush.bf16.msra.mxu0 %v2540
      %2604 = vmatpush.bf16.msra.mxu0 %v2539
      %2605 = vmatmul.bf16.gmra.mxu0 %v2547
      %v2606 = vpop.f32.mrf.mxu0
      %v2607 = vadd.f32 0.0, %v2606
      %v2608 = vpop.f32.mrf.mxu0
      %v2609 = vadd.f32 0.0, %v2608
      %2610 = vmatmul.bf16.gmra.mxu0 %v2550
      %v2611 = vpop.f32.mrf.mxu0
      %v2612 = vadd.f32 0.0, %v2611
      %v2613 = vpop.f32.mrf.mxu0
      %v2614 = vadd.f32 0.0, %v2613
      %2615 = vmatmul.bf16.gmra.mxu0 %v2553
      %v2616 = vpop.f32.mrf.mxu0
      %v2617 = vadd.f32 0.0, %v2616
      %v2618 = vpop.f32.mrf.mxu0
      %v2619 = vadd.f32 0.0, %v2618
      %2620 = vmatmul.bf16.gmra.mxu0 %v2556
      %v2621 = vpop.f32.mrf.mxu0
      %v2622 = vadd.f32 0.0, %v2621
      %v2623 = vpop.f32.mrf.mxu0
      %v2624 = vadd.f32 0.0, %v2623
      %2625 = vmatmul.bf16.gmra.mxu0 %v2559
      %v2626 = vpop.f32.mrf.mxu0
      %v2627 = vadd.f32 0.0, %v2626
      %v2628 = vpop.f32.mrf.mxu0
      %v2629 = vadd.f32 0.0, %v2628
      %2630 = vmatmul.bf16.gmra.mxu0 %v2562
      %v2631 = vpop.f32.mrf.mxu0
      %v2632 = vadd.f32 0.0, %v2631
      %v2633 = vpop.f32.mrf.mxu0
      %v2634 = vadd.f32 0.0, %v2633
      %2635 = vmatmul.bf16.gmra.mxu0 %v2565
      %v2636 = vpop.f32.mrf.mxu0
      %v2637 = vadd.f32 0.0, %v2636
      %v2638 = vpop.f32.mrf.mxu0
      %v2639 = vadd.f32 0.0, %v2638
      %2640 = vmatmul.bf16.gmra.mxu0 %v2568
      %v2641 = vpop.f32.mrf.mxu0
      %v2642 = vadd.f32 0.0, %v2641
      %v2643 = vpop.f32.mrf.mxu0
      %v2644 = vadd.f32 0.0, %v2643
      %2645 = vmatmul.bf16.gmra.mxu0 %v2571
      %v2646 = vpop.f32.mrf.mxu0
      %v2647 = vadd.f32 0.0, %v2646
      %v2648 = vpop.f32.mrf.mxu0
      %v2649 = vadd.f32 0.0, %v2648
      %2650 = vmatmul.bf16.gmra.mxu0 %v2574
      %v2651 = vpop.f32.mrf.mxu0
      %v2652 = vadd.f32 0.0, %v2651
      %v2653 = vpop.f32.mrf.mxu0
      %v2654 = vadd.f32 0.0, %v2653
      %2655 = vmatmul.bf16.gmra.mxu0 %v2577
      %v2656 = vpop.f32.mrf.mxu0
      %v2657 = vadd.f32 0.0, %v2656
      %v2658 = vpop.f32.mrf.mxu0
      %v2659 = vadd.f32 0.0, %v2658
      %2660 = vmatmul.bf16.gmra.mxu0 %v2580
      %v2661 = vpop.f32.mrf.mxu0
      %v2662 = vadd.f32 0.0, %v2661
      %v2663 = vpop.f32.mrf.mxu0
      %v2664 = vadd.f32 0.0, %v2663
      %2665 = vmatmul.bf16.gmra.mxu0 %v2583
      %v2666 = vpop.f32.mrf.mxu0
      %v2667 = vadd.f32 0.0, %v2666
      %v2668 = vpop.f32.mrf.mxu0
      %v2669 = vadd.f32 0.0, %v2668
      %2670 = vmatmul.bf16.gmra.mxu0 %v2586
      %v2671 = vpop.f32.mrf.mxu0
      %v2672 = vadd.f32 0.0, %v2671
      %v2673 = vpop.f32.mrf.mxu0
      %v2674 = vadd.f32 0.0, %v2673
      %2675 = vmatmul.bf16.gmra.mxu0 %v2589
      %v2676 = vpop.f32.mrf.mxu0
      %v2677 = vadd.f32 0.0, %v2676
      %v2678 = vpop.f32.mrf.mxu0
      %v2679 = vadd.f32 0.0, %v2678
      %2680 = vmatmul.bf16.gmra.mxu0 %v2592
      %v2681 = vpop.f32.mrf.mxu0
      %v2682 = vadd.f32 0.0, %v2681
      %v2683 = vpop.f32.mrf.mxu0
      %v2684 = vadd.f32 0.0, %v2683
      %2685 = vdwg.mxu0
      %v2686 = vadd.f32 %v2326, %v2607
      %v2687 = vadd.f32 %v2328, %v2609
      %v2688 = vadd.f32 %v2331, %v2612
      %v2689 = vadd.f32 %v2333, %v2614
      %v2690 = vadd.f32 %v2336, %v2617
      %v2691 = vadd.f32 %v2338, %v2619
      %v2692 = vadd.f32 %v2341, %v2622
      %v2693 = vadd.f32 %v2343, %v2624
      %v2694 = vadd.f32 %v2346, %v2627
      %v2695 = vadd.f32 %v2348, %v2629
      %v2696 = vadd.f32 %v2351, %v2632
      %v2697 = vadd.f32 %v2353, %v2634
      %v2698 = vadd.f32 %v2356, %v2637
      %v2699 = vadd.f32 %v2358, %v2639
      %v2700 = vadd.f32 %v2361, %v2642
      %v2701 = vadd.f32 %v2363, %v2644
      %v2702 = vadd.f32 %v2366, %v2647
      %v2703 = vadd.f32 %v2368, %v2649
      %v2704 = vadd.f32 %v2371, %v2652
      %v2705 = vadd.f32 %v2373, %v2654
      %v2706 = vadd.f32 %v2376, %v2657
      %v2707 = vadd.f32 %v2378, %v2659
      %v2708 = vadd.f32 %v2381, %v2662
      %v2709 = vadd.f32 %v2383, %v2664
      %v2710 = vadd.f32 %v2386, %v2667
      %v2711 = vadd.f32 %v2388, %v2669
      %v2712 = vadd.f32 %v2391, %v2672
      %v2713 = vadd.f32 %v2393, %v2674
      %v2714 = vadd.f32 %v2396, %v2677
      %v2715 = vadd.f32 %v2398, %v2679
      %v2716 = vadd.f32 %v2401, %v2682
      %v2717 = vadd.f32 %v2403, %v2684
      %v2718 = vld [vmem:[#allocation2 + $0x30] sm:$0xff]
      %v2719 = vld [vmem:[#allocation2 + $0x38] sm:$0xff]
      %v2720 = vld [vmem:[#allocation2 + $0x40] sm:$0xff]
      %v2721 = vld [vmem:[#allocation2 + $0x48] sm:$0xff]
      %v2722 = vld [vmem:[#allocation2 + $0x50] sm:$0xff]
      %v2723 = vld [vmem:[#allocation2 + $0x58] sm:$0xff]
      %v2724 = vld [vmem:[#allocation2 + $0x60] sm:$0xff]
      %v2725 = vld [vmem:[#allocation2 + $0x68] sm:$0xff]
      %v2726 = vld [vmem:[#allocation2 + $0x70] sm:$0xff]
      %v2727 = vld [vmem:[#allocation2 + $0x78] sm:$0xff]
      %v2728 = vld [vmem:[#allocation2 + $0x80] sm:$0xff]
      %v2729 = vld [vmem:[#allocation2 + $0x88] sm:$0xff]
      %v2730 = vld [vmem:[#allocation2 + $0x90] sm:$0xff]
      %v2731 = vld [vmem:[#allocation2 + $0x98] sm:$0xff]
      %v2732 = vld [vmem:[#allocation2 + $0xa0] sm:$0xff]
      %v2733 = vld [vmem:[#allocation2 + $0xa8] sm:$0xff]
      %v2734 = vld [vmem:[#allocation2 + $0xb0] sm:$0xff]
      %v2735 = vld [vmem:[#allocation2 + $0xb8] sm:$0xff]
      %v2736 = vld [vmem:[#allocation2 + $0xc0] sm:$0xff]
      %v2737 = vld [vmem:[#allocation2 + $0xc8] sm:$0xff]
      %v2738 = vld [vmem:[#allocation2 + $0xd0] sm:$0xff]
      %v2739 = vld [vmem:[#allocation2 + $0xd8] sm:$0xff]
      %v2740 = vld [vmem:[#allocation2 + $0xe0] sm:$0xff]
      %v2741 = vld [vmem:[#allocation2 + $0xe8] sm:$0xff]
      %v2742 = vld [vmem:[#allocation2 + $0xf0] sm:$0xff]
      %v2743 = vld [vmem:[#allocation2 + $0xf8] sm:$0xff]
      %v2744 = vld [vmem:[#allocation2 + $0x100] sm:$0xff]
      %v2745 = vld [vmem:[#allocation2 + $0x108] sm:$0xff]
      %v2746 = vld [vmem:[#allocation2 + $0x110] sm:$0xff]
      %v2747 = vld [vmem:[#allocation2 + $0x118] sm:$0xff]
      %v2748 = vld [vmem:[#allocation2 + $0x120] sm:$0xff]
      %v2749 = vld [vmem:[#allocation2 + $0x128] sm:$0xff]
      %v2750 = vpack.c.bf16 %v2719, %v2718
      %v2751 = vpack.c.bf16 %v2721, %v2720
      %v2752 = vpack.c.bf16 %v2723, %v2722
      %v2753 = vpack.c.bf16 %v2725, %v2724
      %v2754 = vpack.c.bf16 %v2727, %v2726
      %v2755 = vpack.c.bf16 %v2729, %v2728
      %v2756 = vpack.c.bf16 %v2731, %v2730
      %v2757 = vpack.c.bf16 %v2733, %v2732
      %v2758 = vpack.c.bf16 %v2735, %v2734
      %v2759 = vpack.c.bf16 %v2737, %v2736
      %v2760 = vpack.c.bf16 %v2739, %v2738
      %v2761 = vpack.c.bf16 %v2741, %v2740
      %v2762 = vpack.c.bf16 %v2743, %v2742
      %v2763 = vpack.c.bf16 %v2745, %v2744
      %v2764 = vpack.c.bf16 %v2747, %v2746
      %v2765 = vpack.c.bf16 %v2749, %v2748
      %s2766 = scalar_lea.vmem %s3, 84
      %v2767 = vld [vmem:[%s2766] sm:$0xf]
      %v2768 = vld [vmem:[%s2766 + $0x4] sm:$0xf]
      %v2769 = vld [vmem:[%s2766 + $0x8] sm:$0xf]
      %v2770 = vld [vmem:[%s2766 + $0xc] sm:$0xf]
      %v2771 = vld [vmem:[%s2766 + $0x10] sm:$0xf]
      %v2772 = vld [vmem:[%s2766 + $0x14] sm:$0xf]
      %v2773 = vld [vmem:[%s2766 + $0x18] sm:$0xf]
      %v2781 = vunpack.c.l.b16 %v2767
      %v2782 = vunpack.c.l.b16 %v2768
      %v2783 = vunpack.c.l.b16 %v2769
      %v2784 = vunpack.c.l.b16 %v2770
      %v2785 = vunpack.c.l.b16 %v2771
      %v2786 = vunpack.c.l.b16 %v2772
      %v2787 = vunpack.c.l.b16 %v2773
      %v2788 = vpack.c.b16 %v2782, %v2781
      %v2789 = vpack.c.b16 %v2784, %v2783
      %v2790 = vpack.c.b16 %v2786, %v2785
      %v2791 = vpack.c.b16 %v2787, %v2787
      %v2796 = vsel %vm574, %v2750, 0
      %v2799 = vsel %vm574, %v2751, 0
      %v2802 = vsel %vm574, %v2752, 0
      %v2805 = vsel %vm574, %v2753, 0
      %v2808 = vsel %vm574, %v2754, 0
      %v2811 = vsel %vm574, %v2755, 0
      %v2814 = vsel %vm574, %v2756, 0
      %v2817 = vsel %vm574, %v2757, 0
      %v2820 = vsel %vm574, %v2758, 0
      %v2823 = vsel %vm574, %v2759, 0
      %v2826 = vsel %vm574, %v2760, 0
      %v2829 = vsel %vm574, %v2761, 0
      %v2832 = vsel %vm574, %v2762, 0
      %v2835 = vsel %vm574, %v2763, 0
      %v2838 = vsel %vm574, %v2764, 0
      %v2841 = vsel %vm574, %v2765, 0
      %v2844 = vsel %vm449, %v2791, 0
      %2846 = vmatpush.bf16.msra.mxu0 0
      %2847 = vmatpush.bf16.msra.mxu0 0
      %2848 = vmatpush.bf16.msra.mxu0 0
      %2849 = vmatpush.bf16.msra.mxu0 0
      %2850 = vmatpush.bf16.msra.mxu0 %v2844
      %2851 = vmatpush.bf16.msra.mxu0 %v2790
      %2852 = vmatpush.bf16.msra.mxu0 %v2789
      %2853 = vmatpush.bf16.msra.mxu0 %v2788
      %2854 = vmatmul.bf16.gmra.mxu0 %v2796
      %v2855 = vpop.f32.mrf.mxu0
      %v2856 = vadd.f32 0.0, %v2855
      %v2857 = vpop.f32.mrf.mxu0
      %v2858 = vadd.f32 0.0, %v2857
      %2859 = vmatmul.bf16.gmra.mxu0 %v2799
      %v2860 = vpop.f32.mrf.mxu0
      %v2861 = vadd.f32 0.0, %v2860
      %v2862 = vpop.f32.mrf.mxu0
      %v2863 = vadd.f32 0.0, %v2862
      %2864 = vmatmul.bf16.gmra.mxu0 %v2802
      %v2865 = vpop.f32.mrf.mxu0
      %v2866 = vadd.f32 0.0, %v2865
      %v2867 = vpop.f32.mrf.mxu0
      %v2868 = vadd.f32 0.0, %v2867
      %2869 = vmatmul.bf16.gmra.mxu0 %v2805
      %v2870 = vpop.f32.mrf.mxu0
      %v2871 = vadd.f32 0.0, %v2870
      %v2872 = vpop.f32.mrf.mxu0
      %v2873 = vadd.f32 0.0, %v2872
      %2874 = vmatmul.bf16.gmra.mxu0 %v2808
      %v2875 = vpop.f32.mrf.mxu0
      %v2876 = vadd.f32 0.0, %v2875
      %v2877 = vpop.f32.mrf.mxu0
      %v2878 = vadd.f32 0.0, %v2877
      %2879 = vmatmul.bf16.gmra.mxu0 %v2811
      %v2880 = vpop.f32.mrf.mxu0
      %v2881 = vadd.f32 0.0, %v2880
      %v2882 = vpop.f32.mrf.mxu0
      %v2883 = vadd.f32 0.0, %v2882
      %2884 = vmatmul.bf16.gmra.mxu0 %v2814
      %v2885 = vpop.f32.mrf.mxu0
      %v2886 = vadd.f32 0.0, %v2885
      %v2887 = vpop.f32.mrf.mxu0
      %v2888 = vadd.f32 0.0, %v2887
      %2889 = vmatmul.bf16.gmra.mxu0 %v2817
      %v2890 = vpop.f32.mrf.mxu0
      %v2891 = vadd.f32 0.0, %v2890
      %v2892 = vpop.f32.mrf.mxu0
      %v2893 = vadd.f32 0.0, %v2892
      %2894 = vmatmul.bf16.gmra.mxu0 %v2820
      %v2895 = vpop.f32.mrf.mxu0
      %v2896 = vadd.f32 0.0, %v2895
      %v2897 = vpop.f32.mrf.mxu0
      %v2898 = vadd.f32 0.0, %v2897
      %2899 = vmatmul.bf16.gmra.mxu0 %v2823
      %v2900 = vpop.f32.mrf.mxu0
      %v2901 = vadd.f32 0.0, %v2900
      %v2902 = vpop.f32.mrf.mxu0
      %v2903 = vadd.f32 0.0, %v2902
      %2904 = vmatmul.bf16.gmra.mxu0 %v2826
      %v2905 = vpop.f32.mrf.mxu0
      %v2906 = vadd.f32 0.0, %v2905
      %v2907 = vpop.f32.mrf.mxu0
      %v2908 = vadd.f32 0.0, %v2907
      %2909 = vmatmul.bf16.gmra.mxu0 %v2829
      %v2910 = vpop.f32.mrf.mxu0
      %v2911 = vadd.f32 0.0, %v2910
      %v2912 = vpop.f32.mrf.mxu0
      %v2913 = vadd.f32 0.0, %v2912
      %2914 = vmatmul.bf16.gmra.mxu0 %v2832
      %v2915 = vpop.f32.mrf.mxu0
      %v2916 = vadd.f32 0.0, %v2915
      %v2917 = vpop.f32.mrf.mxu0
      %v2918 = vadd.f32 0.0, %v2917
      %2919 = vmatmul.bf16.gmra.mxu0 %v2835
      %v2920 = vpop.f32.mrf.mxu0
      %v2921 = vadd.f32 0.0, %v2920
      %v2922 = vpop.f32.mrf.mxu0
      %v2923 = vadd.f32 0.0, %v2922
      %2924 = vmatmul.bf16.gmra.mxu0 %v2838
      %v2925 = vpop.f32.mrf.mxu0
      %v2926 = vadd.f32 0.0, %v2925
      %v2927 = vpop.f32.mrf.mxu0
      %v2928 = vadd.f32 0.0, %v2927
      %2929 = vmatmul.bf16.gmra.mxu0 %v2841
      %v2930 = vpop.f32.mrf.mxu0
      %v2931 = vadd.f32 0.0, %v2930
      %v2932 = vpop.f32.mrf.mxu0
      %v2933 = vadd.f32 0.0, %v2932
      %2934 = vdwg.mxu0
      %v2935 = vadd.f32 %v2686, %v2856
      %v2936 = vadd.f32 %v2687, %v2858
      %v2937 = vadd.f32 %v2688, %v2861
      %v2938 = vadd.f32 %v2689, %v2863
      %v2939 = vadd.f32 %v2690, %v2866
      %v2940 = vadd.f32 %v2691, %v2868
      %v2941 = vadd.f32 %v2692, %v2871
      %v2942 = vadd.f32 %v2693, %v2873
      %v2943 = vadd.f32 %v2694, %v2876
      %v2944 = vadd.f32 %v2695, %v2878
      %v2945 = vadd.f32 %v2696, %v2881
      %v2946 = vadd.f32 %v2697, %v2883
      %v2947 = vadd.f32 %v2698, %v2886
      %v2948 = vadd.f32 %v2699, %v2888
      %v2949 = vadd.f32 %v2700, %v2891
      %v2950 = vadd.f32 %v2701, %v2893
      %v2951 = vadd.f32 %v2702, %v2896
      %v2952 = vadd.f32 %v2703, %v2898
      %v2953 = vadd.f32 %v2704, %v2901
      %v2954 = vadd.f32 %v2705, %v2903
      %v2955 = vadd.f32 %v2706, %v2906
      %v2956 = vadd.f32 %v2707, %v2908
      %v2957 = vadd.f32 %v2708, %v2911
      %v2958 = vadd.f32 %v2709, %v2913
      %v2959 = vadd.f32 %v2710, %v2916
      %v2960 = vadd.f32 %v2711, %v2918
      %v2961 = vadd.f32 %v2712, %v2921
      %v2962 = vadd.f32 %v2713, %v2923
      %v2963 = vadd.f32 %v2714, %v2926
      %v2964 = vadd.f32 %v2715, %v2928
      %v2965 = vadd.f32 %v2716, %v2931
      %v2966 = vadd.f32 %v2717, %v2933
      %v2967 = vld [vmem:[#allocation2 + $0x31] sm:$0xff]
      %v2968 = vld [vmem:[#allocation2 + $0x39] sm:$0xff]
      %v2969 = vld [vmem:[#allocation2 + $0x41] sm:$0xff]
      %v2970 = vld [vmem:[#allocation2 + $0x49] sm:$0xff]
      %v2971 = vld [vmem:[#allocation2 + $0x51] sm:$0xff]
      %v2972 = vld [vmem:[#allocation2 + $0x59] sm:$0xff]
      %v2973 = vld [vmem:[#allocation2 + $0x61] sm:$0xff]
      %v2974 = vld [vmem:[#allocation2 + $0x69] sm:$0xff]
      %v2975 = vld [vmem:[#allocation2 + $0x71] sm:$0xff]
      %v2976 = vld [vmem:[#allocation2 + $0x79] sm:$0xff]
      %v2977 = vld [vmem:[#allocation2 + $0x81] sm:$0xff]
      %v2978 = vld [vmem:[#allocation2 + $0x89] sm:$0xff]
      %v2979 = vld [vmem:[#allocation2 + $0x91] sm:$0xff]
      %v2980 = vld [vmem:[#allocation2 + $0x99] sm:$0xff]
      %v2981 = vld [vmem:[#allocation2 + $0xa1] sm:$0xff]
      %v2982 = vld [vmem:[#allocation2 + $0xa9] sm:$0xff]
      %v2983 = vld [vmem:[#allocation2 + $0xb1] sm:$0xff]
      %v2984 = vld [vmem:[#allocation2 + $0xb9] sm:$0xff]
      %v2985 = vld [vmem:[#allocation2 + $0xc1] sm:$0xff]
      %v2986 = vld [vmem:[#allocation2 + $0xc9] sm:$0xff]
      %v2987 = vld [vmem:[#allocation2 + $0xd1] sm:$0xff]
      %v2988 = vld [vmem:[#allocation2 + $0xd9] sm:$0xff]
      %v2989 = vld [vmem:[#allocation2 + $0xe1] sm:$0xff]
      %v2990 = vld [vmem:[#allocation2 + $0xe9] sm:$0xff]
      %v2991 = vld [vmem:[#allocation2 + $0xf1] sm:$0xff]
      %v2992 = vld [vmem:[#allocation2 + $0xf9] sm:$0xff]
      %v2993 = vld [vmem:[#allocation2 + $0x101] sm:$0xff]
      %v2994 = vld [vmem:[#allocation2 + $0x109] sm:$0xff]
      %v2995 = vld [vmem:[#allocation2 + $0x111] sm:$0xff]
      %v2996 = vld [vmem:[#allocation2 + $0x119] sm:$0xff]
      %v2997 = vld [vmem:[#allocation2 + $0x121] sm:$0xff]
      %v2998 = vld [vmem:[#allocation2 + $0x129] sm:$0xff]
      %vm2999 = vcmp.lt.s32.totalorder %v1812, 15
      %vm3000 = vcmp.lt.s32.totalorder %v1813, 15
      %vm3001 = vcmp.lt.s32.totalorder %v1814, 15
      %vm3002 = vcmp.lt.s32.totalorder %v1815, 15
      %vm3003 = vcmp.lt.s32.totalorder %v1816, 15
      %vm3004 = vcmp.lt.s32.totalorder %v1817, 15
      %vm3005 = vcmp.lt.s32.totalorder %v1818, 15
      %vm3006 = vcmp.lt.s32.totalorder %v1819, 15
      %vm3007 = vcmp.lt.s32.totalorder %v1820, 15
      %vm3008 = vcmp.lt.s32.totalorder %v1821, 15
      %vm3009 = vcmp.lt.s32.totalorder %v1822, 15
      %vm3010 = vcmp.lt.s32.totalorder %v1823, 15
      %vm3011 = vcmp.lt.s32.totalorder %v1824, 15
      %vm3012 = vcmp.lt.s32.totalorder %v1825, 15
      %vm3013 = vcmp.lt.s32.totalorder %v1826, 15
      %vm3014 = vcmp.lt.s32.totalorder %v1827, 15
      %vm3015 = vcmp.lt.s32.totalorder %v1828, 15
      %vm3016 = vcmp.lt.s32.totalorder %v1829, 15
      %vm3017 = vcmp.lt.s32.totalorder %v1830, 15
      %vm3018 = vcmp.lt.s32.totalorder %v1831, 15
      %vm3019 = vcmp.lt.s32.totalorder %v1832, 15
      %vm3020 = vcmp.lt.s32.totalorder %v1833, 15
      %vm3021 = vcmp.lt.s32.totalorder %v1834, 15
      %vm3022 = vcmp.lt.s32.totalorder %v1835, 15
      %vm3023 = vcmp.lt.s32.totalorder %v1836, 15
      %vm3024 = vcmp.lt.s32.totalorder %v1837, 15
      %vm3025 = vcmp.lt.s32.totalorder %v1838, 15
      %vm3026 = vcmp.lt.s32.totalorder %v1839, 15
      %vm3027 = vcmp.lt.s32.totalorder %v1840, 15
      %vm3028 = vcmp.lt.s32.totalorder %v1841, 15
      %vm3029 = vcmp.lt.s32.totalorder %v1842, 15
      %vm3030 = vcmp.lt.s32.totalorder %v1843, 15
      %v3031 = vsel %vm2999, %v2967, 0.0
      %v3032 = vsel %vm3000, %v2968, 0.0
      %v3033 = vsel %vm3001, %v2969, 0.0
      %v3034 = vsel %vm3002, %v2970, 0.0
      %v3035 = vsel %vm3003, %v2971, 0.0
      %v3036 = vsel %vm3004, %v2972, 0.0
      %v3037 = vsel %vm3005, %v2973, 0.0
      %v3038 = vsel %vm3006, %v2974, 0.0
      %v3039 = vsel %vm3007, %v2975, 0.0
      %v3040 = vsel %vm3008, %v2976, 0.0
      %v3041 = vsel %vm3009, %v2977, 0.0
      %v3042 = vsel %vm3010, %v2978, 0.0
      %v3043 = vsel %vm3011, %v2979, 0.0
      %v3044 = vsel %vm3012, %v2980, 0.0
      %v3045 = vsel %vm3013, %v2981, 0.0
      %v3046 = vsel %vm3014, %v2982, 0.0
      %v3047 = vsel %vm3015, %v2983, 0.0
      %v3048 = vsel %vm3016, %v2984, 0.0
      %v3049 = vsel %vm3017, %v2985, 0.0
      %v3050 = vsel %vm3018, %v2986, 0.0
      %v3051 = vsel %vm3019, %v2987, 0.0
      %v3052 = vsel %vm3020, %v2988, 0.0
      %v3053 = vsel %vm3021, %v2989, 0.0
      %v3054 = vsel %vm3022, %v2990, 0.0
      %v3055 = vsel %vm3023, %v2991, 0.0
      %v3056 = vsel %vm3024, %v2992, 0.0
      %v3057 = vsel %vm3025, %v2993, 0.0
      %v3058 = vsel %vm3026, %v2994, 0.0
      %v3059 = vsel %vm3027, %v2995, 0.0
      %v3060 = vsel %vm3028, %v2996, 0.0
      %v3061 = vsel %vm3029, %v2997, 0.0
      %v3062 = vsel %vm3030, %v2998, 0.0
      %v3063 = vpack.c.bf16 %v3032, %v3031
      %v3064 = vpack.c.bf16 %v3034, %v3033
      %v3065 = vpack.c.bf16 %v3036, %v3035
      %v3066 = vpack.c.bf16 %v3038, %v3037
      %v3067 = vpack.c.bf16 %v3040, %v3039
      %v3068 = vpack.c.bf16 %v3042, %v3041
      %v3069 = vpack.c.bf16 %v3044, %v3043
      %v3070 = vpack.c.bf16 %v3046, %v3045
      %v3071 = vpack.c.bf16 %v3048, %v3047
      %v3072 = vpack.c.bf16 %v3050, %v3049
      %v3073 = vpack.c.bf16 %v3052, %v3051
      %v3074 = vpack.c.bf16 %v3054, %v3053
      %v3075 = vpack.c.bf16 %v3056, %v3055
      %v3076 = vpack.c.bf16 %v3058, %v3057
      %v3077 = vpack.c.bf16 %v3060, %v3059
      %v3078 = vpack.c.bf16 %v3062, %v3061
      %s3079 = scalar_lea.vmem %s3, 112
      %v3080 = vld [vmem:[%s3079] sm:$0xf]
      %v3081 = vld [vmem:[%s3079 + $0x4] sm:$0xf]
      %v3082 = vld [vmem:[%s3079 + $0x8] sm:$0xf]
      %v3083 = vld [vmem:[%s3079 + $0xc] sm:$0xf]
      %v3084 = vld [vmem:[%s3079 + $0x10] sm:$0xf]
      %v3085 = vld [vmem:[%s3079 + $0x14] sm:$0xf]
      %v3086 = vld [vmem:[%s3079 + $0x18] sm:$0xf]
      %v3094 = vunpack.c.l.b16 %v3080
      %v3095 = vunpack.c.l.b16 %v3081
      %v3096 = vunpack.c.l.b16 %v3082
      %v3097 = vunpack.c.l.b16 %v3083
      %v3098 = vunpack.c.l.b16 %v3084
      %v3099 = vunpack.c.l.b16 %v3085
      %v3100 = vunpack.c.l.b16 %v3086
      %v3101 = vpack.c.b16 %v3095, %v3094
      %v3102 = vpack.c.b16 %v3097, %v3096
      %v3103 = vpack.c.b16 %v3099, %v3098
      %v3104 = vpack.c.b16 %v3100, %v3100
      %v3109 = vsel %vm574, %v3063, 0
      %v3112 = vsel %vm574, %v3064, 0
      %v3115 = vsel %vm574, %v3065, 0
      %v3118 = vsel %vm574, %v3066, 0
      %v3121 = vsel %vm574, %v3067, 0
      %v3124 = vsel %vm574, %v3068, 0
      %v3127 = vsel %vm574, %v3069, 0
      %v3130 = vsel %vm574, %v3070, 0
      %v3133 = vsel %vm574, %v3071, 0
      %v3136 = vsel %vm574, %v3072, 0
      %v3139 = vsel %vm574, %v3073, 0
      %v3142 = vsel %vm574, %v3074, 0
      %v3145 = vsel %vm574, %v3075, 0
      %v3148 = vsel %vm574, %v3076, 0
      %v3151 = vsel %vm574, %v3077, 0
      %v3154 = vsel %vm574, %v3078, 0
      %v3157 = vsel %vm449, %v3104, 0
      %3159 = vmatpush.bf16.msra.mxu0 0
      %3160 = vmatpush.bf16.msra.mxu0 0
      %3161 = vmatpush.bf16.msra.mxu0 0
      %3162 = vmatpush.bf16.msra.mxu0 0
      %3163 = vmatpush.bf16.msra.mxu0 %v3157
      %3164 = vmatpush.bf16.msra.mxu0 %v3103
      %3165 = vmatpush.bf16.msra.mxu0 %v3102
      %3166 = vmatpush.bf16.msra.mxu0 %v3101
      %3167 = vmatmul.bf16.gmra.mxu0 %v3109
      %v3168 = vpop.f32.mrf.mxu0
      %v3169 = vadd.f32 0.0, %v3168
      %v3170 = vpop.f32.mrf.mxu0
      %v3171 = vadd.f32 0.0, %v3170
      %3172 = vmatmul.bf16.gmra.mxu0 %v3112
      %v3173 = vpop.f32.mrf.mxu0
      %v3174 = vadd.f32 0.0, %v3173
      %v3175 = vpop.f32.mrf.mxu0
      %v3176 = vadd.f32 0.0, %v3175
      %3177 = vmatmul.bf16.gmra.mxu0 %v3115
      %v3178 = vpop.f32.mrf.mxu0
      %v3179 = vadd.f32 0.0, %v3178
      %v3180 = vpop.f32.mrf.mxu0
      %v3181 = vadd.f32 0.0, %v3180
      %3182 = vmatmul.bf16.gmra.mxu0 %v3118
      %v3183 = vpop.f32.mrf.mxu0
      %v3184 = vadd.f32 0.0, %v3183
      %v3185 = vpop.f32.mrf.mxu0
      %v3186 = vadd.f32 0.0, %v3185
      %3187 = vmatmul.bf16.gmra.mxu0 %v3121
      %v3188 = vpop.f32.mrf.mxu0
      %v3189 = vadd.f32 0.0, %v3188
      %v3190 = vpop.f32.mrf.mxu0
      %v3191 = vadd.f32 0.0, %v3190
      %3192 = vmatmul.bf16.gmra.mxu0 %v3124
      %v3193 = vpop.f32.mrf.mxu0
      %v3194 = vadd.f32 0.0, %v3193
      %v3195 = vpop.f32.mrf.mxu0
      %v3196 = vadd.f32 0.0, %v3195
      %3197 = vmatmul.bf16.gmra.mxu0 %v3127
      %v3198 = vpop.f32.mrf.mxu0
      %v3199 = vadd.f32 0.0, %v3198
      %v3200 = vpop.f32.mrf.mxu0
      %v3201 = vadd.f32 0.0, %v3200
      %3202 = vmatmul.bf16.gmra.mxu0 %v3130
      %v3203 = vpop.f32.mrf.mxu0
      %v3204 = vadd.f32 0.0, %v3203
      %v3205 = vpop.f32.mrf.mxu0
      %v3206 = vadd.f32 0.0, %v3205
      %3207 = vmatmul.bf16.gmra.mxu0 %v3133
      %v3208 = vpop.f32.mrf.mxu0
      %v3209 = vadd.f32 0.0, %v3208
      %v3210 = vpop.f32.mrf.mxu0
      %v3211 = vadd.f32 0.0, %v3210
      %3212 = vmatmul.bf16.gmra.mxu0 %v3136
      %v3213 = vpop.f32.mrf.mxu0
      %v3214 = vadd.f32 0.0, %v3213
      %v3215 = vpop.f32.mrf.mxu0
      %v3216 = vadd.f32 0.0, %v3215
      %3217 = vmatmul.bf16.gmra.mxu0 %v3139
      %v3218 = vpop.f32.mrf.mxu0
      %v3219 = vadd.f32 0.0, %v3218
      %v3220 = vpop.f32.mrf.mxu0
      %v3221 = vadd.f32 0.0, %v3220
      %3222 = vmatmul.bf16.gmra.mxu0 %v3142
      %v3223 = vpop.f32.mrf.mxu0
      %v3224 = vadd.f32 0.0, %v3223
      %v3225 = vpop.f32.mrf.mxu0
      %v3226 = vadd.f32 0.0, %v3225
      %3227 = vmatmul.bf16.gmra.mxu0 %v3145
      %v3228 = vpop.f32.mrf.mxu0
      %v3229 = vadd.f32 0.0, %v3228
      %v3230 = vpop.f32.mrf.mxu0
      %v3231 = vadd.f32 0.0, %v3230
      %3232 = vmatmul.bf16.gmra.mxu0 %v3148
      %v3233 = vpop.f32.mrf.mxu0
      %v3234 = vadd.f32 0.0, %v3233
      %v3235 = vpop.f32.mrf.mxu0
      %v3236 = vadd.f32 0.0, %v3235
      %3237 = vmatmul.bf16.gmra.mxu0 %v3151
      %v3238 = vpop.f32.mrf.mxu0
      %v3239 = vadd.f32 0.0, %v3238
      %v3240 = vpop.f32.mrf.mxu0
      %v3241 = vadd.f32 0.0, %v3240
      %3242 = vmatmul.bf16.gmra.mxu0 %v3154
      %v3243 = vpop.f32.mrf.mxu0
      %v3244 = vadd.f32 0.0, %v3243
      %v3245 = vpop.f32.mrf.mxu0
      %v3246 = vadd.f32 0.0, %v3245
      %3247 = vdwg.mxu0
      %v3248 = vadd.f32 %v2935, %v3169
      %v3249 = vadd.f32 %v2936, %v3171
      %v3250 = vadd.f32 %v2937, %v3174
      %v3251 = vadd.f32 %v2938, %v3176
      %v3252 = vadd.f32 %v2939, %v3179
      %v3253 = vadd.f32 %v2940, %v3181
      %v3254 = vadd.f32 %v2941, %v3184
      %v3255 = vadd.f32 %v2942, %v3186
      %v3256 = vadd.f32 %v2943, %v3189
      %v3257 = vadd.f32 %v2944, %v3191
      %v3258 = vadd.f32 %v2945, %v3194
      %v3259 = vadd.f32 %v2946, %v3196
      %v3260 = vadd.f32 %v2947, %v3199
      %v3261 = vadd.f32 %v2948, %v3201
      %v3262 = vadd.f32 %v2949, %v3204
      %v3263 = vadd.f32 %v2950, %v3206
      %v3264 = vadd.f32 %v2951, %v3209
      %v3265 = vadd.f32 %v2952, %v3211
      %v3266 = vadd.f32 %v2953, %v3214
      %v3267 = vadd.f32 %v2954, %v3216
      %v3268 = vadd.f32 %v2955, %v3219
      %v3269 = vadd.f32 %v2956, %v3221
      %v3270 = vadd.f32 %v2957, %v3224
      %v3271 = vadd.f32 %v2958, %v3226
      %v3272 = vadd.f32 %v2959, %v3229
      %v3273 = vadd.f32 %v2960, %v3231
      %v3274 = vadd.f32 %v2961, %v3234
      %v3275 = vadd.f32 %v2962, %v3236
      %v3276 = vadd.f32 %v2963, %v3239
      %v3277 = vadd.f32 %v2964, %v3241
      %v3278 = vadd.f32 %v2965, %v3244
      %v3279 = vadd.f32 %v2966, %v3246
      %v3280 = vld [vmem:[#allocation2 + $0x32] sm:$0xff]
      %v3281 = vld [vmem:[#allocation2 + $0x3a] sm:$0xff]
      %v3282 = vld [vmem:[#allocation2 + $0x42] sm:$0xff]
      %v3283 = vld [vmem:[#allocation2 + $0x4a] sm:$0xff]
      %v3284 = vld [vmem:[#allocation2 + $0x52] sm:$0xff]
      %v3285 = vld [vmem:[#allocation2 + $0x5a] sm:$0xff]
      %v3286 = vld [vmem:[#allocation2 + $0x62] sm:$0xff]
      %v3287 = vld [vmem:[#allocation2 + $0x6a] sm:$0xff]
      %v3288 = vld [vmem:[#allocation2 + $0x72] sm:$0xff]
      %v3289 = vld [vmem:[#allocation2 + $0x7a] sm:$0xff]
      %v3290 = vld [vmem:[#allocation2 + $0x82] sm:$0xff]
      %v3291 = vld [vmem:[#allocation2 + $0x8a] sm:$0xff]
      %v3292 = vld [vmem:[#allocation2 + $0x92] sm:$0xff]
      %v3293 = vld [vmem:[#allocation2 + $0x9a] sm:$0xff]
      %v3294 = vld [vmem:[#allocation2 + $0xa2] sm:$0xff]
      %v3295 = vld [vmem:[#allocation2 + $0xaa] sm:$0xff]
      %v3296 = vld [vmem:[#allocation2 + $0xb2] sm:$0xff]
      %v3297 = vld [vmem:[#allocation2 + $0xba] sm:$0xff]
      %v3298 = vld [vmem:[#allocation2 + $0xc2] sm:$0xff]
      %v3299 = vld [vmem:[#allocation2 + $0xca] sm:$0xff]
      %v3300 = vld [vmem:[#allocation2 + $0xd2] sm:$0xff]
      %v3301 = vld [vmem:[#allocation2 + $0xda] sm:$0xff]
      %v3302 = vld [vmem:[#allocation2 + $0xe2] sm:$0xff]
      %v3303 = vld [vmem:[#allocation2 + $0xea] sm:$0xff]
      %v3304 = vld [vmem:[#allocation2 + $0xf2] sm:$0xff]
      %v3305 = vld [vmem:[#allocation2 + $0xfa] sm:$0xff]
      %v3306 = vld [vmem:[#allocation2 + $0x102] sm:$0xff]
      %v3307 = vld [vmem:[#allocation2 + $0x10a] sm:$0xff]
      %v3308 = vld [vmem:[#allocation2 + $0x112] sm:$0xff]
      %v3309 = vld [vmem:[#allocation2 + $0x11a] sm:$0xff]
      %v3310 = vld [vmem:[#allocation2 + $0x122] sm:$0xff]
      %v3311 = vld [vmem:[#allocation2 + $0x12a] sm:$0xff]
      %vm3312 = vcmp.lt.s32.totalorder %v1812, 14
      %vm3313 = vcmp.lt.s32.totalorder %v1813, 14
      %vm3314 = vcmp.lt.s32.totalorder %v1814, 14
      %vm3315 = vcmp.lt.s32.totalorder %v1815, 14
      %vm3316 = vcmp.lt.s32.totalorder %v1816, 14
      %vm3317 = vcmp.lt.s32.totalorder %v1817, 14
      %vm3318 = vcmp.lt.s32.totalorder %v1818, 14
      %vm3319 = vcmp.lt.s32.totalorder %v1819, 14
      %vm3320 = vcmp.lt.s32.totalorder %v1820, 14
      %vm3321 = vcmp.lt.s32.totalorder %v1821, 14
      %vm3322 = vcmp.lt.s32.totalorder %v1822, 14
      %vm3323 = vcmp.lt.s32.totalorder %v1823, 14
      %vm3324 = vcmp.lt.s32.totalorder %v1824, 14
      %vm3325 = vcmp.lt.s32.totalorder %v1825, 14
      %vm3326 = vcmp.lt.s32.totalorder %v1826, 14
      %vm3327 = vcmp.lt.s32.totalorder %v1827, 14
      %vm3328 = vcmp.lt.s32.totalorder %v1828, 14
      %vm3329 = vcmp.lt.s32.totalorder %v1829, 14
      %vm3330 = vcmp.lt.s32.totalorder %v1830, 14
      %vm3331 = vcmp.lt.s32.totalorder %v1831, 14
      %vm3332 = vcmp.lt.s32.totalorder %v1832, 14
      %vm3333 = vcmp.lt.s32.totalorder %v1833, 14
      %vm3334 = vcmp.lt.s32.totalorder %v1834, 14
      %vm3335 = vcmp.lt.s32.totalorder %v1835, 14
      %vm3336 = vcmp.lt.s32.totalorder %v1836, 14
      %vm3337 = vcmp.lt.s32.totalorder %v1837, 14
      %vm3338 = vcmp.lt.s32.totalorder %v1838, 14
      %vm3339 = vcmp.lt.s32.totalorder %v1839, 14
      %vm3340 = vcmp.lt.s32.totalorder %v1840, 14
      %vm3341 = vcmp.lt.s32.totalorder %v1841, 14
      %vm3342 = vcmp.lt.s32.totalorder %v1842, 14
      %vm3343 = vcmp.lt.s32.totalorder %v1843, 14
      %v3344 = vsel %vm3312, %v3280, 0.0
      %v3345 = vsel %vm3313, %v3281, 0.0
      %v3346 = vsel %vm3314, %v3282, 0.0
      %v3347 = vsel %vm3315, %v3283, 0.0
      %v3348 = vsel %vm3316, %v3284, 0.0
      %v3349 = vsel %vm3317, %v3285, 0.0
      %v3350 = vsel %vm3318, %v3286, 0.0
      %v3351 = vsel %vm3319, %v3287, 0.0
      %v3352 = vsel %vm3320, %v3288, 0.0
      %v3353 = vsel %vm3321, %v3289, 0.0
      %v3354 = vsel %vm3322, %v3290, 0.0
      %v3355 = vsel %vm3323, %v3291, 0.0
      %v3356 = vsel %vm3324, %v3292, 0.0
      %v3357 = vsel %vm3325, %v3293, 0.0
      %v3358 = vsel %vm3326, %v3294, 0.0
      %v3359 = vsel %vm3327, %v3295, 0.0
      %v3360 = vsel %vm3328, %v3296, 0.0
      %v3361 = vsel %vm3329, %v3297, 0.0
      %v3362 = vsel %vm3330, %v3298, 0.0
      %v3363 = vsel %vm3331, %v3299, 0.0
      %v3364 = vsel %vm3332, %v3300, 0.0
      %v3365 = vsel %vm3333, %v3301, 0.0
      %v3366 = vsel %vm3334, %v3302, 0.0
      %v3367 = vsel %vm3335, %v3303, 0.0
      %v3368 = vsel %vm3336, %v3304, 0.0
      %v3369 = vsel %vm3337, %v3305, 0.0
      %v3370 = vsel %vm3338, %v3306, 0.0
      %v3371 = vsel %vm3339, %v3307, 0.0
      %v3372 = vsel %vm3340, %v3308, 0.0
      %v3373 = vsel %vm3341, %v3309, 0.0
      %v3374 = vsel %vm3342, %v3310, 0.0
      %v3375 = vsel %vm3343, %v3311, 0.0
      %v3376 = vpack.c.bf16 %v3345, %v3344
      %v3377 = vpack.c.bf16 %v3347, %v3346
      %v3378 = vpack.c.bf16 %v3349, %v3348
      %v3379 = vpack.c.bf16 %v3351, %v3350
      %v3380 = vpack.c.bf16 %v3353, %v3352
      %v3381 = vpack.c.bf16 %v3355, %v3354
      %v3382 = vpack.c.bf16 %v3357, %v3356
      %v3383 = vpack.c.bf16 %v3359, %v3358
      %v3384 = vpack.c.bf16 %v3361, %v3360
      %v3385 = vpack.c.bf16 %v3363, %v3362
      %v3386 = vpack.c.bf16 %v3365, %v3364
      %v3387 = vpack.c.bf16 %v3367, %v3366
      %v3388 = vpack.c.bf16 %v3369, %v3368
      %v3389 = vpack.c.bf16 %v3371, %v3370
      %v3390 = vpack.c.bf16 %v3373, %v3372
      %v3391 = vpack.c.bf16 %v3375, %v3374
      %s3392 = scalar_lea.vmem %s3, 140
      %v3393 = vld [vmem:[%s3392] sm:$0xf]
      %v3394 = vld [vmem:[%s3392 + $0x4] sm:$0xf]
      %v3395 = vld [vmem:[%s3392 + $0x8] sm:$0xf]
      %v3396 = vld [vmem:[%s3392 + $0xc] sm:$0xf]
      %v3397 = vld [vmem:[%s3392 + $0x10] sm:$0xf]
      %v3398 = vld [vmem:[%s3392 + $0x14] sm:$0xf]
      %v3399 = vld [vmem:[%s3392 + $0x18] sm:$0xf]
      %v3407 = vunpack.c.l.b16 %v3393
      %v3408 = vunpack.c.l.b16 %v3394
      %v3409 = vunpack.c.l.b16 %v3395
      %v3410 = vunpack.c.l.b16 %v3396
      %v3411 = vunpack.c.l.b16 %v3397
      %v3412 = vunpack.c.l.b16 %v3398
      %v3413 = vunpack.c.l.b16 %v3399
      %v3414 = vpack.c.b16 %v3408, %v3407
      %v3415 = vpack.c.b16 %v3410, %v3409
      %v3416 = vpack.c.b16 %v3412, %v3411
      %v3417 = vpack.c.b16 %v3413, %v3413
      %v3422 = vsel %vm574, %v3376, 0
      %v3425 = vsel %vm574, %v3377, 0
      %v3428 = vsel %vm574, %v3378, 0
      %v3431 = vsel %vm574, %v3379, 0
      %v3434 = vsel %vm574, %v3380, 0
      %v3437 = vsel %vm574, %v3381, 0
      %v3440 = vsel %vm574, %v3382, 0
      %v3443 = vsel %vm574, %v3383, 0
      %v3446 = vsel %vm574, %v3384, 0
      %v3449 = vsel %vm574, %v3385, 0
      %v3452 = vsel %vm574, %v3386, 0
      %v3455 = vsel %vm574, %v3387, 0
      %v3458 = vsel %vm574, %v3388, 0
      %v3461 = vsel %vm574, %v3389, 0
      %v3464 = vsel %vm574, %v3390, 0
      %v3467 = vsel %vm574, %v3391, 0
      %v3470 = vsel %vm449, %v3417, 0
      %3472 = vmatpush.bf16.msra.mxu0 0
      %3473 = vmatpush.bf16.msra.mxu0 0
      %3474 = vmatpush.bf16.msra.mxu0 0
      %3475 = vmatpush.bf16.msra.mxu0 0
      %3476 = vmatpush.bf16.msra.mxu0 %v3470
      %3477 = vmatpush.bf16.msra.mxu0 %v3416
      %3478 = vmatpush.bf16.msra.mxu0 %v3415
      %3479 = vmatpush.bf16.msra.mxu0 %v3414
      %3480 = vmatmul.bf16.gmra.mxu0 %v3422
      %v3481 = vpop.f32.mrf.mxu0
      %v3482 = vadd.f32 0.0, %v3481
      %v3483 = vpop.f32.mrf.mxu0
      %v3484 = vadd.f32 0.0, %v3483
      %3485 = vmatmul.bf16.gmra.mxu0 %v3425
      %v3486 = vpop.f32.mrf.mxu0
      %v3487 = vadd.f32 0.0, %v3486
      %v3488 = vpop.f32.mrf.mxu0
      %v3489 = vadd.f32 0.0, %v3488
      %3490 = vmatmul.bf16.gmra.mxu0 %v3428
      %v3491 = vpop.f32.mrf.mxu0
      %v3492 = vadd.f32 0.0, %v3491
      %v3493 = vpop.f32.mrf.mxu0
      %v3494 = vadd.f32 0.0, %v3493
      %3495 = vmatmul.bf16.gmra.mxu0 %v3431
      %v3496 = vpop.f32.mrf.mxu0
      %v3497 = vadd.f32 0.0, %v3496
      %v3498 = vpop.f32.mrf.mxu0
      %v3499 = vadd.f32 0.0, %v3498
      %3500 = vmatmul.bf16.gmra.mxu0 %v3434
      %v3501 = vpop.f32.mrf.mxu0
      %v3502 = vadd.f32 0.0, %v3501
      %v3503 = vpop.f32.mrf.mxu0
      %v3504 = vadd.f32 0.0, %v3503
      %3505 = vmatmul.bf16.gmra.mxu0 %v3437
      %v3506 = vpop.f32.mrf.mxu0
      %v3507 = vadd.f32 0.0, %v3506
      %v3508 = vpop.f32.mrf.mxu0
      %v3509 = vadd.f32 0.0, %v3508
      %3510 = vmatmul.bf16.gmra.mxu0 %v3440
      %v3511 = vpop.f32.mrf.mxu0
      %v3512 = vadd.f32 0.0, %v3511
      %v3513 = vpop.f32.mrf.mxu0
      %v3514 = vadd.f32 0.0, %v3513
      %3515 = vmatmul.bf16.gmra.mxu0 %v3443
      %v3516 = vpop.f32.mrf.mxu0
      %v3517 = vadd.f32 0.0, %v3516
      %v3518 = vpop.f32.mrf.mxu0
      %v3519 = vadd.f32 0.0, %v3518
      %3520 = vmatmul.bf16.gmra.mxu0 %v3446
      %v3521 = vpop.f32.mrf.mxu0
      %v3522 = vadd.f32 0.0, %v3521
      %v3523 = vpop.f32.mrf.mxu0
      %v3524 = vadd.f32 0.0, %v3523
      %3525 = vmatmul.bf16.gmra.mxu0 %v3449
      %v3526 = vpop.f32.mrf.mxu0
      %v3527 = vadd.f32 0.0, %v3526
      %v3528 = vpop.f32.mrf.mxu0
      %v3529 = vadd.f32 0.0, %v3528
      %3530 = vmatmul.bf16.gmra.mxu0 %v3452
      %v3531 = vpop.f32.mrf.mxu0
      %v3532 = vadd.f32 0.0, %v3531
      %v3533 = vpop.f32.mrf.mxu0
      %v3534 = vadd.f32 0.0, %v3533
      %3535 = vmatmul.bf16.gmra.mxu0 %v3455
      %v3536 = vpop.f32.mrf.mxu0
      %v3537 = vadd.f32 0.0, %v3536
      %v3538 = vpop.f32.mrf.mxu0
      %v3539 = vadd.f32 0.0, %v3538
      %3540 = vmatmul.bf16.gmra.mxu0 %v3458
      %v3541 = vpop.f32.mrf.mxu0
      %v3542 = vadd.f32 0.0, %v3541
      %v3543 = vpop.f32.mrf.mxu0
      %v3544 = vadd.f32 0.0, %v3543
      %3545 = vmatmul.bf16.gmra.mxu0 %v3461
      %v3546 = vpop.f32.mrf.mxu0
      %v3547 = vadd.f32 0.0, %v3546
      %v3548 = vpop.f32.mrf.mxu0
      %v3549 = vadd.f32 0.0, %v3548
      %3550 = vmatmul.bf16.gmra.mxu0 %v3464
      %v3551 = vpop.f32.mrf.mxu0
      %v3552 = vadd.f32 0.0, %v3551
      %v3553 = vpop.f32.mrf.mxu0
      %v3554 = vadd.f32 0.0, %v3553
      %3555 = vmatmul.bf16.gmra.mxu0 %v3467
      %v3556 = vpop.f32.mrf.mxu0
      %v3557 = vadd.f32 0.0, %v3556
      %v3558 = vpop.f32.mrf.mxu0
      %v3559 = vadd.f32 0.0, %v3558
      %3560 = vdwg.mxu0
      %v3561 = vadd.f32 %v3248, %v3482
      %v3562 = vadd.f32 %v3249, %v3484
      %v3563 = vadd.f32 %v3250, %v3487
      %v3564 = vadd.f32 %v3251, %v3489
      %v3565 = vadd.f32 %v3252, %v3492
      %v3566 = vadd.f32 %v3253, %v3494
      %v3567 = vadd.f32 %v3254, %v3497
      %v3568 = vadd.f32 %v3255, %v3499
      %v3569 = vadd.f32 %v3256, %v3502
      %v3570 = vadd.f32 %v3257, %v3504
      %v3571 = vadd.f32 %v3258, %v3507
      %v3572 = vadd.f32 %v3259, %v3509
      %v3573 = vadd.f32 %v3260, %v3512
      %v3574 = vadd.f32 %v3261, %v3514
      %v3575 = vadd.f32 %v3262, %v3517
      %v3576 = vadd.f32 %v3263, %v3519
      %v3577 = vadd.f32 %v3264, %v3522
      %v3578 = vadd.f32 %v3265, %v3524
      %v3579 = vadd.f32 %v3266, %v3527
      %v3580 = vadd.f32 %v3267, %v3529
      %v3581 = vadd.f32 %v3268, %v3532
      %v3582 = vadd.f32 %v3269, %v3534
      %v3583 = vadd.f32 %v3270, %v3537
      %v3584 = vadd.f32 %v3271, %v3539
      %v3585 = vadd.f32 %v3272, %v3542
      %v3586 = vadd.f32 %v3273, %v3544
      %v3587 = vadd.f32 %v3274, %v3547
      %v3588 = vadd.f32 %v3275, %v3549
      %v3589 = vadd.f32 %v3276, %v3552
      %v3590 = vadd.f32 %v3277, %v3554
      %v3591 = vadd.f32 %v3278, %v3557
      %v3592 = vadd.f32 %v3279, %v3559
      %v3593 = vld [vmem:[#allocation2 + $0x33] sm:$0xff]
      %v3594 = vld [vmem:[#allocation2 + $0x3b] sm:$0xff]
      %v3595 = vld [vmem:[#allocation2 + $0x43] sm:$0xff]
      %v3596 = vld [vmem:[#allocation2 + $0x4b] sm:$0xff]
      %v3597 = vld [vmem:[#allocation2 + $0x53] sm:$0xff]
      %v3598 = vld [vmem:[#allocation2 + $0x5b] sm:$0xff]
      %v3599 = vld [vmem:[#allocation2 + $0x63] sm:$0xff]
      %v3600 = vld [vmem:[#allocation2 + $0x6b] sm:$0xff]
      %v3601 = vld [vmem:[#allocation2 + $0x73] sm:$0xff]
      %v3602 = vld [vmem:[#allocation2 + $0x7b] sm:$0xff]
      %v3603 = vld [vmem:[#allocation2 + $0x83] sm:$0xff]
      %v3604 = vld [vmem:[#allocation2 + $0x8b] sm:$0xff]
      %v3605 = vld [vmem:[#allocation2 + $0x93] sm:$0xff]
      %v3606 = vld [vmem:[#allocation2 + $0x9b] sm:$0xff]
      %v3607 = vld [vmem:[#allocation2 + $0xa3] sm:$0xff]
      %v3608 = vld [vmem:[#allocation2 + $0xab] sm:$0xff]
      %v3609 = vld [vmem:[#allocation2 + $0xb3] sm:$0xff]
      %v3610 = vld [vmem:[#allocation2 + $0xbb] sm:$0xff]
      %v3611 = vld [vmem:[#allocation2 + $0xc3] sm:$0xff]
      %v3612 = vld [vmem:[#allocation2 + $0xcb] sm:$0xff]
      %v3613 = vld [vmem:[#allocation2 + $0xd3] sm:$0xff]
      %v3614 = vld [vmem:[#allocation2 + $0xdb] sm:$0xff]
      %v3615 = vld [vmem:[#allocation2 + $0xe3] sm:$0xff]
      %v3616 = vld [vmem:[#allocation2 + $0xeb] sm:$0xff]
      %v3617 = vld [vmem:[#allocation2 + $0xf3] sm:$0xff]
      %v3618 = vld [vmem:[#allocation2 + $0xfb] sm:$0xff]
      %v3619 = vld [vmem:[#allocation2 + $0x103] sm:$0xff]
      %v3620 = vld [vmem:[#allocation2 + $0x10b] sm:$0xff]
      %v3621 = vld [vmem:[#allocation2 + $0x113] sm:$0xff]
      %v3622 = vld [vmem:[#allocation2 + $0x11b] sm:$0xff]
      %v3623 = vld [vmem:[#allocation2 + $0x123] sm:$0xff]
      %v3624 = vld [vmem:[#allocation2 + $0x12b] sm:$0xff]
      %vm3625 = vcmp.lt.s32.totalorder %v1812, 13
      %vm3626 = vcmp.lt.s32.totalorder %v1813, 13
      %vm3627 = vcmp.lt.s32.totalorder %v1814, 13
      %vm3628 = vcmp.lt.s32.totalorder %v1815, 13
      %vm3629 = vcmp.lt.s32.totalorder %v1816, 13
      %vm3630 = vcmp.lt.s32.totalorder %v1817, 13
      %vm3631 = vcmp.lt.s32.totalorder %v1818, 13
      %vm3632 = vcmp.lt.s32.totalorder %v1819, 13
      %vm3633 = vcmp.lt.s32.totalorder %v1820, 13
      %vm3634 = vcmp.lt.s32.totalorder %v1821, 13
      %vm3635 = vcmp.lt.s32.totalorder %v1822, 13
      %vm3636 = vcmp.lt.s32.totalorder %v1823, 13
      %vm3637 = vcmp.lt.s32.totalorder %v1824, 13
      %vm3638 = vcmp.lt.s32.totalorder %v1825, 13
      %vm3639 = vcmp.lt.s32.totalorder %v1826, 13
      %vm3640 = vcmp.lt.s32.totalorder %v1827, 13
      %vm3641 = vcmp.lt.s32.totalorder %v1828, 13
      %vm3642 = vcmp.lt.s32.totalorder %v1829, 13
      %vm3643 = vcmp.lt.s32.totalorder %v1830, 13
      %vm3644 = vcmp.lt.s32.totalorder %v1831, 13
      %vm3645 = vcmp.lt.s32.totalorder %v1832, 13
      %vm3646 = vcmp.lt.s32.totalorder %v1833, 13
      %vm3647 = vcmp.lt.s32.totalorder %v1834, 13
      %vm3648 = vcmp.lt.s32.totalorder %v1835, 13
      %vm3649 = vcmp.lt.s32.totalorder %v1836, 13
      %vm3650 = vcmp.lt.s32.totalorder %v1837, 13
      %vm3651 = vcmp.lt.s32.totalorder %v1838, 13
      %vm3652 = vcmp.lt.s32.totalorder %v1839, 13
      %vm3653 = vcmp.lt.s32.totalorder %v1840, 13
      %vm3654 = vcmp.lt.s32.totalorder %v1841, 13
      %vm3655 = vcmp.lt.s32.totalorder %v1842, 13
      %vm3656 = vcmp.lt.s32.totalorder %v1843, 13
      %v3657 = vsel %vm3625, %v3593, 0.0
      %v3658 = vsel %vm3626, %v3594, 0.0
      %v3659 = vsel %vm3627, %v3595, 0.0
      %v3660 = vsel %vm3628, %v3596, 0.0
      %v3661 = vsel %vm3629, %v3597, 0.0
      %v3662 = vsel %vm3630, %v3598, 0.0
      %v3663 = vsel %vm3631, %v3599, 0.0
      %v3664 = vsel %vm3632, %v3600, 0.0
      %v3665 = vsel %vm3633, %v3601, 0.0
      %v3666 = vsel %vm3634, %v3602, 0.0
      %v3667 = vsel %vm3635, %v3603, 0.0
      %v3668 = vsel %vm3636, %v3604, 0.0
      %v3669 = vsel %vm3637, %v3605, 0.0
      %v3670 = vsel %vm3638, %v3606, 0.0
      %v3671 = vsel %vm3639, %v3607, 0.0
      %v3672 = vsel %vm3640, %v3608, 0.0
      %v3673 = vsel %vm3641, %v3609, 0.0
      %v3674 = vsel %vm3642, %v3610, 0.0
      %v3675 = vsel %vm3643, %v3611, 0.0
      %v3676 = vsel %vm3644, %v3612, 0.0
      %v3677 = vsel %vm3645, %v3613, 0.0
      %v3678 = vsel %vm3646, %v3614, 0.0
      %v3679 = vsel %vm3647, %v3615, 0.0
      %v3680 = vsel %vm3648, %v3616, 0.0
      %v3681 = vsel %vm3649, %v3617, 0.0
      %v3682 = vsel %vm3650, %v3618, 0.0
      %v3683 = vsel %vm3651, %v3619, 0.0
      %v3684 = vsel %vm3652, %v3620, 0.0
      %v3685 = vsel %vm3653, %v3621, 0.0
      %v3686 = vsel %vm3654, %v3622, 0.0
      %v3687 = vsel %vm3655, %v3623, 0.0
      %v3688 = vsel %vm3656, %v3624, 0.0
      %v3689 = vpack.c.bf16 %v3658, %v3657
      %v3690 = vpack.c.bf16 %v3660, %v3659
      %v3691 = vpack.c.bf16 %v3662, %v3661
      %v3692 = vpack.c.bf16 %v3664, %v3663
      %v3693 = vpack.c.bf16 %v3666, %v3665
      %v3694 = vpack.c.bf16 %v3668, %v3667
      %v3695 = vpack.c.bf16 %v3670, %v3669
      %v3696 = vpack.c.bf16 %v3672, %v3671
      %v3697 = vpack.c.bf16 %v3674, %v3673
      %v3698 = vpack.c.bf16 %v3676, %v3675
      %v3699 = vpack.c.bf16 %v3678, %v3677
      %v3700 = vpack.c.bf16 %v3680, %v3679
      %v3701 = vpack.c.bf16 %v3682, %v3681
      %v3702 = vpack.c.bf16 %v3684, %v3683
      %v3703 = vpack.c.bf16 %v3686, %v3685
      %v3704 = vpack.c.bf16 %v3688, %v3687
      %s3705 = scalar_lea.vmem %s3, 168
      %v3706 = vld [vmem:[%s3705] sm:$0xf]
      %v3707 = vld [vmem:[%s3705 + $0x4] sm:$0xf]
      %v3708 = vld [vmem:[%s3705 + $0x8] sm:$0xf]
      %v3709 = vld [vmem:[%s3705 + $0xc] sm:$0xf]
      %v3710 = vld [vmem:[%s3705 + $0x10] sm:$0xf]
      %v3711 = vld [vmem:[%s3705 + $0x14] sm:$0xf]
      %v3712 = vld [vmem:[%s3705 + $0x18] sm:$0xf]
      %v3720 = vunpack.c.l.b16 %v3706
      %v3721 = vunpack.c.l.b16 %v3707
      %v3722 = vunpack.c.l.b16 %v3708
      %v3723 = vunpack.c.l.b16 %v3709
      %v3724 = vunpack.c.l.b16 %v3710
      %v3725 = vunpack.c.l.b16 %v3711
      %v3726 = vunpack.c.l.b16 %v3712
      %v3727 = vpack.c.b16 %v3721, %v3720
      %v3728 = vpack.c.b16 %v3723, %v3722
      %v3729 = vpack.c.b16 %v3725, %v3724
      %v3730 = vpack.c.b16 %v3726, %v3726
      %v3735 = vsel %vm574, %v3689, 0
      %v3738 = vsel %vm574, %v3690, 0
      %v3741 = vsel %vm574, %v3691, 0
      %v3744 = vsel %vm574, %v3692, 0
      %v3747 = vsel %vm574, %v3693, 0
      %v3750 = vsel %vm574, %v3694, 0
      %v3753 = vsel %vm574, %v3695, 0
      %v3756 = vsel %vm574, %v3696, 0
      %v3759 = vsel %vm574, %v3697, 0
      %v3762 = vsel %vm574, %v3698, 0
      %v3765 = vsel %vm574, %v3699, 0
      %v3768 = vsel %vm574, %v3700, 0
      %v3771 = vsel %vm574, %v3701, 0
      %v3774 = vsel %vm574, %v3702, 0
      %v3777 = vsel %vm574, %v3703, 0
      %v3780 = vsel %vm574, %v3704, 0
      %v3783 = vsel %vm449, %v3730, 0
      %3785 = vmatpush.bf16.msra.mxu0 0
      %3786 = vmatpush.bf16.msra.mxu0 0
      %3787 = vmatpush.bf16.msra.mxu0 0
      %3788 = vmatpush.bf16.msra.mxu0 0
      %3789 = vmatpush.bf16.msra.mxu0 %v3783
      %3790 = vmatpush.bf16.msra.mxu0 %v3729
      %3791 = vmatpush.bf16.msra.mxu0 %v3728
      %3792 = vmatpush.bf16.msra.mxu0 %v3727
      %3793 = vmatmul.bf16.gmra.mxu0 %v3735
      %v3794 = vpop.f32.mrf.mxu0
      %v3795 = vadd.f32 0.0, %v3794
      %v3796 = vpop.f32.mrf.mxu0
      %v3797 = vadd.f32 0.0, %v3796
      %3798 = vmatmul.bf16.gmra.mxu0 %v3738
      %v3799 = vpop.f32.mrf.mxu0
      %v3800 = vadd.f32 0.0, %v3799
      %v3801 = vpop.f32.mrf.mxu0
      %v3802 = vadd.f32 0.0, %v3801
      %3803 = vmatmul.bf16.gmra.mxu0 %v3741
      %v3804 = vpop.f32.mrf.mxu0
      %v3805 = vadd.f32 0.0, %v3804
      %v3806 = vpop.f32.mrf.mxu0
      %v3807 = vadd.f32 0.0, %v3806
      %3808 = vmatmul.bf16.gmra.mxu0 %v3744
      %v3809 = vpop.f32.mrf.mxu0
      %v3810 = vadd.f32 0.0, %v3809
      %v3811 = vpop.f32.mrf.mxu0
      %v3812 = vadd.f32 0.0, %v3811
      %3813 = vmatmul.bf16.gmra.mxu0 %v3747
      %v3814 = vpop.f32.mrf.mxu0
      %v3815 = vadd.f32 0.0, %v3814
      %v3816 = vpop.f32.mrf.mxu0
      %v3817 = vadd.f32 0.0, %v3816
      %3818 = vmatmul.bf16.gmra.mxu0 %v3750
      %v3819 = vpop.f32.mrf.mxu0
      %v3820 = vadd.f32 0.0, %v3819
      %v3821 = vpop.f32.mrf.mxu0
      %v3822 = vadd.f32 0.0, %v3821
      %3823 = vmatmul.bf16.gmra.mxu0 %v3753
      %v3824 = vpop.f32.mrf.mxu0
      %v3825 = vadd.f32 0.0, %v3824
      %v3826 = vpop.f32.mrf.mxu0
      %v3827 = vadd.f32 0.0, %v3826
      %3828 = vmatmul.bf16.gmra.mxu0 %v3756
      %v3829 = vpop.f32.mrf.mxu0
      %v3830 = vadd.f32 0.0, %v3829
      %v3831 = vpop.f32.mrf.mxu0
      %v3832 = vadd.f32 0.0, %v3831
      %3833 = vmatmul.bf16.gmra.mxu0 %v3759
      %v3834 = vpop.f32.mrf.mxu0
      %v3835 = vadd.f32 0.0, %v3834
      %v3836 = vpop.f32.mrf.mxu0
      %v3837 = vadd.f32 0.0, %v3836
      %3838 = vmatmul.bf16.gmra.mxu0 %v3762
      %v3839 = vpop.f32.mrf.mxu0
      %v3840 = vadd.f32 0.0, %v3839
      %v3841 = vpop.f32.mrf.mxu0
      %v3842 = vadd.f32 0.0, %v3841
      %3843 = vmatmul.bf16.gmra.mxu0 %v3765
      %v3844 = vpop.f32.mrf.mxu0
      %v3845 = vadd.f32 0.0, %v3844
      %v3846 = vpop.f32.mrf.mxu0
      %v3847 = vadd.f32 0.0, %v3846
      %3848 = vmatmul.bf16.gmra.mxu0 %v3768
      %v3849 = vpop.f32.mrf.mxu0
      %v3850 = vadd.f32 0.0, %v3849
      %v3851 = vpop.f32.mrf.mxu0
      %v3852 = vadd.f32 0.0, %v3851
      %3853 = vmatmul.bf16.gmra.mxu0 %v3771
      %v3854 = vpop.f32.mrf.mxu0
      %v3855 = vadd.f32 0.0, %v3854
      %v3856 = vpop.f32.mrf.mxu0
      %v3857 = vadd.f32 0.0, %v3856
      %3858 = vmatmul.bf16.gmra.mxu0 %v3774
      %v3859 = vpop.f32.mrf.mxu0
      %v3860 = vadd.f32 0.0, %v3859
      %v3861 = vpop.f32.mrf.mxu0
      %v3862 = vadd.f32 0.0, %v3861
      %3863 = vmatmul.bf16.gmra.mxu0 %v3777
      %v3864 = vpop.f32.mrf.mxu0
      %v3865 = vadd.f32 0.0, %v3864
      %v3866 = vpop.f32.mrf.mxu0
      %v3867 = vadd.f32 0.0, %v3866
      %3868 = vmatmul.bf16.gmra.mxu0 %v3780
      %v3869 = vpop.f32.mrf.mxu0
      %v3870 = vadd.f32 0.0, %v3869
      %v3871 = vpop.f32.mrf.mxu0
      %v3872 = vadd.f32 0.0, %v3871
      %3873 = vdwg.mxu0
      %v3874 = vadd.f32 %v3561, %v3795
      %v3875 = vadd.f32 %v3562, %v3797
      %v3876 = vadd.f32 %v3563, %v3800
      %v3877 = vadd.f32 %v3564, %v3802
      %v3878 = vadd.f32 %v3565, %v3805
      %v3879 = vadd.f32 %v3566, %v3807
      %v3880 = vadd.f32 %v3567, %v3810
      %v3881 = vadd.f32 %v3568, %v3812
      %v3882 = vadd.f32 %v3569, %v3815
      %v3883 = vadd.f32 %v3570, %v3817
      %v3884 = vadd.f32 %v3571, %v3820
      %v3885 = vadd.f32 %v3572, %v3822
      %v3886 = vadd.f32 %v3573, %v3825
      %v3887 = vadd.f32 %v3574, %v3827
      %v3888 = vadd.f32 %v3575, %v3830
      %v3889 = vadd.f32 %v3576, %v3832
      %v3890 = vadd.f32 %v3577, %v3835
      %v3891 = vadd.f32 %v3578, %v3837
      %v3892 = vadd.f32 %v3579, %v3840
      %v3893 = vadd.f32 %v3580, %v3842
      %v3894 = vadd.f32 %v3581, %v3845
      %v3895 = vadd.f32 %v3582, %v3847
      %v3896 = vadd.f32 %v3583, %v3850
      %v3897 = vadd.f32 %v3584, %v3852
      %v3898 = vadd.f32 %v3585, %v3855
      %v3899 = vadd.f32 %v3586, %v3857
      %v3900 = vadd.f32 %v3587, %v3860
      %v3901 = vadd.f32 %v3588, %v3862
      %v3902 = vadd.f32 %v3589, %v3865
      %v3903 = vadd.f32 %v3590, %v3867
      %v3904 = vadd.f32 %v3591, %v3870
      %v3905 = vadd.f32 %v3592, %v3872
      %v3906 = vld [vmem:[%s4] sm:$0x1]
      %v3908 = vperm.slane %v3906, 0
      %v3910 = vadd.f32 %v3874, %v3908
      %v3911 = vadd.f32 %v3875, %v3908
      %v3912 = vadd.f32 %v3876, %v3908
      %v3913 = vadd.f32 %v3877, %v3908
      %v3914 = vadd.f32 %v3878, %v3908
      %v3915 = vadd.f32 %v3879, %v3908
      %v3916 = vadd.f32 %v3880, %v3908
      %v3917 = vadd.f32 %v3881, %v3908
      %v3918 = vadd.f32 %v3882, %v3908
      %v3919 = vadd.f32 %v3883, %v3908
      %v3920 = vadd.f32 %v3884, %v3908
      %v3921 = vadd.f32 %v3885, %v3908
      %v3922 = vadd.f32 %v3886, %v3908
      %v3923 = vadd.f32 %v3887, %v3908
      %v3924 = vadd.f32 %v3888, %v3908
      %v3925 = vadd.f32 %v3889, %v3908
      %v3926 = vadd.f32 %v3890, %v3908
      %v3927 = vadd.f32 %v3891, %v3908
      %v3928 = vadd.f32 %v3892, %v3908
      %v3929 = vadd.f32 %v3893, %v3908
      %v3930 = vadd.f32 %v3894, %v3908
      %v3931 = vadd.f32 %v3895, %v3908
      %v3932 = vadd.f32 %v3896, %v3908
      %v3933 = vadd.f32 %v3897, %v3908
      %v3934 = vadd.f32 %v3898, %v3908
      %v3935 = vadd.f32 %v3899, %v3908
      %v3936 = vadd.f32 %v3900, %v3908
      %v3937 = vadd.f32 %v3901, %v3908
      %v3938 = vadd.f32 %v3902, %v3908
      %v3939 = vadd.f32 %v3903, %v3908
      %v3940 = vadd.f32 %v3904, %v3908
      %v3941 = vadd.f32 %v3905, %v3908
      %v3942 = vmax.f32 %v3910, 0.0
      %v3943 = vmax.f32 %v3911, 0.0
      %v3944 = vmax.f32 %v3912, 0.0
      %v3945 = vmax.f32 %v3913, 0.0
      %v3946 = vmax.f32 %v3914, 0.0
      %v3947 = vmax.f32 %v3915, 0.0
      %v3948 = vmax.f32 %v3916, 0.0
      %v3949 = vmax.f32 %v3917, 0.0
      %v3950 = vmax.f32 %v3918, 0.0
      %v3951 = vmax.f32 %v3919, 0.0
      %v3952 = vmax.f32 %v3920, 0.0
      %v3953 = vmax.f32 %v3921, 0.0
      %v3954 = vmax.f32 %v3922, 0.0
      %v3955 = vmax.f32 %v3923, 0.0
      %v3956 = vmax.f32 %v3924, 0.0
      %v3957 = vmax.f32 %v3925, 0.0
      %v3958 = vmax.f32 %v3926, 0.0
      %v3959 = vmax.f32 %v3927, 0.0
      %v3960 = vmax.f32 %v3928, 0.0
      %v3961 = vmax.f32 %v3929, 0.0
      %v3962 = vmax.f32 %v3930, 0.0
      %v3963 = vmax.f32 %v3931, 0.0
      %v3964 = vmax.f32 %v3932, 0.0
      %v3965 = vmax.f32 %v3933, 0.0
      %v3966 = vmax.f32 %v3934, 0.0
      %v3967 = vmax.f32 %v3935, 0.0
      %v3968 = vmax.f32 %v3936, 0.0
      %v3969 = vmax.f32 %v3937, 0.0
      %v3970 = vmax.f32 %v3938, 0.0
      %v3971 = vmax.f32 %v3939, 0.0
      %v3972 = vmax.f32 %v3940, 0.0
      %v3973 = vmax.f32 %v3941, 0.0
      %v3974 = vpack.c.bf16 %v3943, %v3942
      %v3975 = vpack.c.bf16 %v3945, %v3944
      %v3976 = vpack.c.bf16 %v3947, %v3946
      %v3977 = vpack.c.bf16 %v3949, %v3948
      %v3978 = vpack.c.bf16 %v3951, %v3950
      %v3979 = vpack.c.bf16 %v3953, %v3952
      %v3980 = vpack.c.bf16 %v3955, %v3954
      %v3981 = vpack.c.bf16 %v3957, %v3956
      %v3982 = vpack.c.bf16 %v3959, %v3958
      %v3983 = vpack.c.bf16 %v3961, %v3960
      %v3984 = vpack.c.bf16 %v3963, %v3962
      %v3985 = vpack.c.bf16 %v3965, %v3964
      %v3986 = vpack.c.bf16 %v3967, %v3966
      %v3987 = vpack.c.bf16 %v3969, %v3968
      %v3988 = vpack.c.bf16 %v3971, %v3970
      %v3989 = vpack.c.bf16 %v3973, %v3972
      %v3990 = vld [vmem:[%s5] sm:$0xf]
      %v3991 = vld [vmem:[%s6] sm:$0x1]
      %v3993 = vperm.slane %v3991, 0
      %v3996 = vsel %vm400, %v3974, 0
      %v3999 = vsel %vm400, %v3975, 0
      %v4002 = vsel %vm400, %v3976, 0
      %v4005 = vsel %vm400, %v3977, 0
      %v4008 = vsel %vm400, %v3978, 0
      %v4011 = vsel %vm400, %v3979, 0
      %v4014 = vsel %vm400, %v3980, 0
      %v4017 = vsel %vm400, %v3981, 0
      %v4020 = vsel %vm400, %v3982, 0
      %v4023 = vsel %vm400, %v3983, 0
      %v4026 = vsel %vm400, %v3984, 0
      %v4029 = vsel %vm400, %v3985, 0
      %v4032 = vsel %vm400, %v3986, 0
      %v4035 = vsel %vm400, %v3987, 0
      %v4038 = vsel %vm400, %v3988, 0
      %v4041 = vsel %vm400, %v3989, 0
      %v4044 = vsel %vm449, %v3990, 0
      %4046 = vmatpush.bf16.msra.mxu0 0
      %4047 = vmatpush.bf16.msra.mxu0 0
      %4048 = vmatpush.bf16.msra.mxu0 0
      %4049 = vmatpush.bf16.msra.mxu0 0
      %4050 = vmatpush.bf16.msra.mxu0 0
      %4051 = vmatpush.bf16.msra.mxu0 0
      %4052 = vmatpush.bf16.msra.mxu0 0
      %4053 = vmatpush.bf16.msra.mxu0 %v4044
      %4054 = vmatmul.bf16.gmra.mxu0 %v3996
      %v4055 = vpop.f32.mrf.mxu0
      %v4056 = vadd.f32 %v3993, %v4055
      %v4057 = vpop.f32.mrf.mxu0
      %v4058 = vadd.f32 %v3993, %v4057
      %4059 = vmatmul.bf16.gmra.mxu0 %v3999
      %v4060 = vpop.f32.mrf.mxu0
      %v4061 = vadd.f32 %v3993, %v4060
      %v4062 = vpop.f32.mrf.mxu0
      %v4063 = vadd.f32 %v3993, %v4062
      %4064 = vmatmul.bf16.gmra.mxu0 %v4002
      %v4065 = vpop.f32.mrf.mxu0
      %v4066 = vadd.f32 %v3993, %v4065
      %v4067 = vpop.f32.mrf.mxu0
      %v4068 = vadd.f32 %v3993, %v4067
      %4069 = vmatmul.bf16.gmra.mxu0 %v4005
      %v4070 = vpop.f32.mrf.mxu0
      %v4071 = vadd.f32 %v3993, %v4070
      %v4072 = vpop.f32.mrf.mxu0
      %v4073 = vadd.f32 %v3993, %v4072
      %4074 = vmatmul.bf16.gmra.mxu0 %v4008
      %v4075 = vpop.f32.mrf.mxu0
      %v4076 = vadd.f32 %v3993, %v4075
      %v4077 = vpop.f32.mrf.mxu0
      %v4078 = vadd.f32 %v3993, %v4077
      %4079 = vmatmul.bf16.gmra.mxu0 %v4011
      %v4080 = vpop.f32.mrf.mxu0
      %v4081 = vadd.f32 %v3993, %v4080
      %v4082 = vpop.f32.mrf.mxu0
      %v4083 = vadd.f32 %v3993, %v4082
      %4084 = vmatmul.bf16.gmra.mxu0 %v4014
      %v4085 = vpop.f32.mrf.mxu0
      %v4086 = vadd.f32 %v3993, %v4085
      %v4087 = vpop.f32.mrf.mxu0
      %v4088 = vadd.f32 %v3993, %v4087
      %4089 = vmatmul.bf16.gmra.mxu0 %v4017
      %v4090 = vpop.f32.mrf.mxu0
      %v4091 = vadd.f32 %v3993, %v4090
      %v4092 = vpop.f32.mrf.mxu0
      %v4093 = vadd.f32 %v3993, %v4092
      %4094 = vmatmul.bf16.gmra.mxu0 %v4020
      %v4095 = vpop.f32.mrf.mxu0
      %v4096 = vadd.f32 %v3993, %v4095
      %v4097 = vpop.f32.mrf.mxu0
      %v4098 = vadd.f32 %v3993, %v4097
      %4099 = vmatmul.bf16.gmra.mxu0 %v4023
      %v4100 = vpop.f32.mrf.mxu0
      %v4101 = vadd.f32 %v3993, %v4100
      %v4102 = vpop.f32.mrf.mxu0
      %v4103 = vadd.f32 %v3993, %v4102
      %4104 = vmatmul.bf16.gmra.mxu0 %v4026
      %v4105 = vpop.f32.mrf.mxu0
      %v4106 = vadd.f32 %v3993, %v4105
      %v4107 = vpop.f32.mrf.mxu0
      %v4108 = vadd.f32 %v3993, %v4107
      %4109 = vmatmul.bf16.gmra.mxu0 %v4029
      %v4110 = vpop.f32.mrf.mxu0
      %v4111 = vadd.f32 %v3993, %v4110
      %v4112 = vpop.f32.mrf.mxu0
      %v4113 = vadd.f32 %v3993, %v4112
      %4114 = vmatmul.bf16.gmra.mxu0 %v4032
      %v4115 = vpop.f32.mrf.mxu0
      %v4116 = vadd.f32 %v3993, %v4115
      %v4117 = vpop.f32.mrf.mxu0
      %v4118 = vadd.f32 %v3993, %v4117
      %4119 = vmatmul.bf16.gmra.mxu0 %v4035
      %v4120 = vpop.f32.mrf.mxu0
      %v4121 = vadd.f32 %v3993, %v4120
      %v4122 = vpop.f32.mrf.mxu0
      %v4123 = vadd.f32 %v3993, %v4122
      %4124 = vmatmul.bf16.gmra.mxu0 %v4038
      %v4125 = vpop.f32.mrf.mxu0
      %v4126 = vadd.f32 %v3993, %v4125
      %v4127 = vpop.f32.mrf.mxu0
      %v4128 = vadd.f32 %v3993, %v4127
      %4129 = vmatmul.bf16.gmra.mxu0 %v4041
      %v4130 = vpop.f32.mrf.mxu0
      %v4131 = vadd.f32 %v3993, %v4130
      %v4132 = vpop.f32.mrf.mxu0
      %v4133 = vadd.f32 %v3993, %v4132
      %4134 = vdwg.mxu0
      %v4135 = vunpack.c.l.bf16 %v283
      %v4136 = vunpack.c.l.bf16 %v284
      %v4137 = vunpack.c.l.bf16 %v285
      %v4138 = vunpack.c.l.bf16 %v286
      %v4139 = vunpack.c.l.bf16 %v287
      %v4140 = vunpack.c.l.bf16 %v288
      %v4141 = vunpack.c.l.bf16 %v289
      %v4142 = vunpack.c.l.bf16 %v290
      %v4143 = vunpack.c.l.bf16 %v291
      %v4144 = vunpack.c.l.bf16 %v292
      %v4145 = vunpack.c.l.bf16 %v293
      %v4146 = vunpack.c.l.bf16 %v294
      %v4147 = vunpack.c.l.bf16 %v295
      %v4148 = vunpack.c.l.bf16 %v296
      %v4149 = vunpack.c.l.bf16 %v297
      %v4150 = vunpack.c.l.bf16 %v298
      %v4151 = vunpack.c.l.bf16 %v299
      %v4152 = vunpack.c.l.bf16 %v300
      %v4153 = vunpack.c.l.bf16 %v301
      %v4154 = vunpack.c.l.bf16 %v302
      %v4155 = vunpack.c.l.bf16 %v303
      %v4156 = vunpack.c.l.bf16 %v304
      %v4157 = vunpack.c.l.bf16 %v305
      %v4158 = vunpack.c.l.bf16 %v306
      %v4159 = vunpack.c.l.bf16 %v307
      %v4160 = vunpack.c.l.bf16 %v308
      %v4161 = vunpack.c.l.bf16 %v309
      %v4162 = vunpack.c.l.bf16 %v310
      %v4163 = vunpack.c.l.bf16 %v311
      %v4164 = vunpack.c.l.bf16 %v312
      %v4165 = vunpack.c.l.bf16 %v313
      %v4166 = vunpack.c.l.bf16 %v314
      %v4167 = vadd.f32 %v4056, %v4135
      %v4168 = vadd.f32 %v4058, %v4136
      %v4169 = vadd.f32 %v4061, %v4137
      %v4170 = vadd.f32 %v4063, %v4138
      %v4171 = vadd.f32 %v4066, %v4139
      %v4172 = vadd.f32 %v4068, %v4140
      %v4173 = vadd.f32 %v4071, %v4141
      %v4174 = vadd.f32 %v4073, %v4142
      %v4175 = vadd.f32 %v4076, %v4143
      %v4176 = vadd.f32 %v4078, %v4144
      %v4177 = vadd.f32 %v4081, %v4145
      %v4178 = vadd.f32 %v4083, %v4146
      %v4179 = vadd.f32 %v4086, %v4147
      %v4180 = vadd.f32 %v4088, %v4148
      %v4181 = vadd.f32 %v4091, %v4149
      %v4182 = vadd.f32 %v4093, %v4150
      %v4183 = vadd.f32 %v4096, %v4151
      %v4184 = vadd.f32 %v4098, %v4152
      %v4185 = vadd.f32 %v4101, %v4153
      %v4186 = vadd.f32 %v4103, %v4154
      %v4187 = vadd.f32 %v4106, %v4155
      %v4188 = vadd.f32 %v4108, %v4156
      %v4189 = vadd.f32 %v4111, %v4157
      %v4190 = vadd.f32 %v4113, %v4158
      %v4191 = vadd.f32 %v4116, %v4159
      %v4192 = vadd.f32 %v4118, %v4160
      %v4193 = vadd.f32 %v4121, %v4161
      %v4194 = vadd.f32 %v4123, %v4162
      %v4195 = vadd.f32 %v4126, %v4163
      %v4196 = vadd.f32 %v4128, %v4164
      %v4197 = vadd.f32 %v4131, %v4165
      %v4198 = vadd.f32 %v4133, %v4166
      %v4199 = vmax.f32 %v4167, 0.0
      %v4200 = vmax.f32 %v4168, 0.0
      %v4201 = vmax.f32 %v4169, 0.0
      %v4202 = vmax.f32 %v4170, 0.0
      %v4203 = vmax.f32 %v4171, 0.0
      %v4204 = vmax.f32 %v4172, 0.0
      %v4205 = vmax.f32 %v4173, 0.0
      %v4206 = vmax.f32 %v4174, 0.0
      %v4207 = vmax.f32 %v4175, 0.0
      %v4208 = vmax.f32 %v4176, 0.0
      %v4209 = vmax.f32 %v4177, 0.0
      %v4210 = vmax.f32 %v4178, 0.0
      %v4211 = vmax.f32 %v4179, 0.0
      %v4212 = vmax.f32 %v4180, 0.0
      %v4213 = vmax.f32 %v4181, 0.0
      %v4214 = vmax.f32 %v4182, 0.0
      %v4215 = vmax.f32 %v4183, 0.0
      %v4216 = vmax.f32 %v4184, 0.0
      %v4217 = vmax.f32 %v4185, 0.0
      %v4218 = vmax.f32 %v4186, 0.0
      %v4219 = vmax.f32 %v4187, 0.0
      %v4220 = vmax.f32 %v4188, 0.0
      %v4221 = vmax.f32 %v4189, 0.0
      %v4222 = vmax.f32 %v4190, 0.0
      %v4223 = vmax.f32 %v4191, 0.0
      %v4224 = vmax.f32 %v4192, 0.0
      %v4225 = vmax.f32 %v4193, 0.0
      %v4226 = vmax.f32 %v4194, 0.0
      %v4227 = vmax.f32 %v4195, 0.0
      %v4228 = vmax.f32 %v4196, 0.0
      %v4229 = vmax.f32 %v4197, 0.0
      %v4230 = vmax.f32 %v4198, 0.0
      %v4231 = vpack.c.bf16 %v4199, %v4199
      %v4232 = vpack.c.bf16 %v4200, %v4200
      %v4233 = vpack.c.bf16 %v4201, %v4201
      %v4234 = vpack.c.bf16 %v4202, %v4202
      %v4235 = vpack.c.bf16 %v4203, %v4203
      %v4236 = vpack.c.bf16 %v4204, %v4204
      %v4237 = vpack.c.bf16 %v4205, %v4205
      %v4238 = vpack.c.bf16 %v4206, %v4206
      %v4239 = vpack.c.bf16 %v4207, %v4207
      %v4240 = vpack.c.bf16 %v4208, %v4208
      %v4241 = vpack.c.bf16 %v4209, %v4209
      %v4242 = vpack.c.bf16 %v4210, %v4210
      %v4243 = vpack.c.bf16 %v4211, %v4211
      %v4244 = vpack.c.bf16 %v4212, %v4212
      %v4245 = vpack.c.bf16 %v4213, %v4213
      %v4246 = vpack.c.bf16 %v4214, %v4214
      %v4247 = vpack.c.bf16 %v4215, %v4215
      %v4248 = vpack.c.bf16 %v4216, %v4216
      %v4249 = vpack.c.bf16 %v4217, %v4217
      %v4250 = vpack.c.bf16 %v4218, %v4218
      %v4251 = vpack.c.bf16 %v4219, %v4219
      %v4252 = vpack.c.bf16 %v4220, %v4220
      %v4253 = vpack.c.bf16 %v4221, %v4221
      %v4254 = vpack.c.bf16 %v4222, %v4222
      %v4255 = vpack.c.bf16 %v4223, %v4223
      %v4256 = vpack.c.bf16 %v4224, %v4224
      %v4257 = vpack.c.bf16 %v4225, %v4225
      %v4258 = vpack.c.bf16 %v4226, %v4226
      %v4259 = vpack.c.bf16 %v4227, %v4227
      %v4260 = vpack.c.bf16 %v4228, %v4228
      %v4261 = vpack.c.bf16 %v4229, %v4229
      %v4262 = vpack.c.bf16 %v4230, %v4230
      %vm4263 = vcmask 60416
      %4264 = vst.msk [vmem:[%s280] sm:$0xf] %vm4263, %v4231
      %4265 = vst.msk [vmem:[%s280 + $0x4] sm:$0xf] %vm4263, %v4232
      %4266 = vst.msk [vmem:[%s280 + $0x8] sm:$0xf] %vm4263, %v4233
      %4267 = vst.msk [vmem:[%s280 + $0xc] sm:$0xf] %vm4263, %v4234
      %4268 = vst.msk [vmem:[%s280 + $0x10] sm:$0xf] %vm4263, %v4235
      %4269 = vst.msk [vmem:[%s280 + $0x14] sm:$0xf] %vm4263, %v4236
      %4270 = vst.msk [vmem:[%s280 + $0x18] sm:$0xf] %vm4263, %v4237
      %4271 = vst.msk [vmem:[%s280 + $0x1c] sm:$0xf] %vm4263, %v4238
      %4272 = vst.msk [vmem:[%s280 + $0x20] sm:$0xf] %vm4263, %v4239
      %4273 = vst.msk [vmem:[%s280 + $0x24] sm:$0xf] %vm4263, %v4240
      %4274 = vst.msk [vmem:[%s280 + $0x28] sm:$0xf] %vm4263, %v4241
      %4275 = vst.msk [vmem:[%s280 + $0x2c] sm:$0xf] %vm4263, %v4242
      %4276 = vst.msk [vmem:[%s280 + $0x30] sm:$0xf] %vm4263, %v4243
      %4277 = vst.msk [vmem:[%s280 + $0x34] sm:$0xf] %vm4263, %v4244
      %4278 = vst.msk [vmem:[%s280 + $0x38] sm:$0xf] %vm4263, %v4245
      %4279 = vst.msk [vmem:[%s280 + $0x3c] sm:$0xf] %vm4263, %v4246
      %4280 = vst.msk [vmem:[%s280 + $0x40] sm:$0xf] %vm4263, %v4247
      %4281 = vst.msk [vmem:[%s280 + $0x44] sm:$0xf] %vm4263, %v4248
      %4282 = vst.msk [vmem:[%s280 + $0x48] sm:$0xf] %vm4263, %v4249
      %4283 = vst.msk [vmem:[%s280 + $0x4c] sm:$0xf] %vm4263, %v4250
      %4284 = vst.msk [vmem:[%s280 + $0x50] sm:$0xf] %vm4263, %v4251
      %4285 = vst.msk [vmem:[%s280 + $0x54] sm:$0xf] %vm4263, %v4252
      %4286 = vst.msk [vmem:[%s280 + $0x58] sm:$0xf] %vm4263, %v4253
      %4287 = vst.msk [vmem:[%s280 + $0x5c] sm:$0xf] %vm4263, %v4254
      %4288 = vst.msk [vmem:[%s280 + $0x60] sm:$0xf] %vm4263, %v4255
      %4289 = vst.msk [vmem:[%s280 + $0x64] sm:$0xf] %vm4263, %v4256
      %4290 = vst.msk [vmem:[%s280 + $0x68] sm:$0xf] %vm4263, %v4257
      %4291 = vst.msk [vmem:[%s280 + $0x6c] sm:$0xf] %vm4263, %v4258
      %4292 = vst.msk [vmem:[%s280 + $0x70] sm:$0xf] %vm4263, %v4259
      %4293 = vst.msk [vmem:[%s280 + $0x74] sm:$0xf] %vm4263, %v4260
      %4294 = vst.msk [vmem:[%s280 + $0x78] sm:$0xf] %vm4263, %v4261
      %4295 = vst.msk [vmem:[%s280 + $0x7c] sm:$0xf] %vm4263, %v4262
      %s4296 = smul.u32 32, %s18
      %p4297 = scmp.lt.s32.totalorder %s4296, 63
      %s4298 = scalar_select %p4297, %s4296, 63
      %s4299 = smul.addr %s4298, 4
      %s4300 = scalar_lea.vmem %s7, %s4299
      // Predicated region
      $region49: #{tpu_custom_call.1} parent=47 // pred_check
        %p4301 = pneg %p188
      $region50: #{tpu_custom_call.1} parent=47 // pred_check_branch
        %4303 = sbr.rel (%p4301) target = $region52
      $region51: #{tpu_custom_call.1} parent=47 // pred_region
        %s4304 = smul.u32 32, %s18
      $region52: #{tpu_custom_call.1} parent=47 // pred_fallthru
        _
    $region48: #{tpu_custom_call.1} parent=5 // pred_fallthru
      _
    %p4305 = scmp.le.s32.totalorder 2, %s13
    // Predicated region
    $region53: #{tpu_custom_call.1} parent=5 // pred_check
      %p4306 = pneg %p4305
    $region54: #{tpu_custom_call.1} parent=5 // pred_check_branch
      %4308 = sbr.rel (%p4306) target = $region56
    $region55: #{tpu_custom_call.1} parent=5 // pred_region
      %s4309 = ssub.s32 %s13, 2
      // Predicated region
      $region57: #{tpu_custom_call.1} parent=55 // pred_check
        %p4310 = pneg %p194
      $region58: #{tpu_custom_call.1} parent=55 // pred_check_branch
        %4312 = sbr.rel (%p4310) target = $region60
      $region59: #{tpu_custom_call.1} parent=55 // pred_region
        %s4313 = smul.u32 32, %s19
        %p4314 = scmp.lt.s32.totalorder %s4313, 63
        %s4315 = scalar_select %p4314, %s4313, 63
        %s4316 = smul.addr %s4315, 4
        %s4317 = scalar_lea.vmem %s7, %s4316
      $region60: #{tpu_custom_call.1} parent=55 // pred_fallthru
        _
    $region56: #{tpu_custom_call.1} parent=5 // pred_fallthru
      _
  $region6: #{tpu_custom_call.1} parent=0 // loop_footer
    %s17 = sadd.s32 1, %s13
  $region7: #{tpu_custom_call.1} parent=0 // loop_footer_branch
    %12 = sbr.rel target = $region3
  $region8: #{tpu_custom_call.1} parent=0 // loop_exit
    _

</llo_original>
